<compile_context>
chip_gen: v5e
topology: v5e:2x2
jax: 0.10.0
libtpu: 0.0.40
codegen_flags: <defaults>
</compile_context>

<pallas_src>
import functools

import numpy as np
import jax
import jax.numpy as jnp
from jax.experimental import pallas as pl
from jax.experimental.pallas import tpu as pltpu

_CHANNELS = (4, 8, 16, 32, 64, 64, 64)          # conv output channels, in order
_NUM_LAYERS = len(_CHANNELS)
_SPATIAL = 128                                   # 128 -> 64 -> ... -> 1 over 7 layers


def _round_up(x, m):
    return (x + m - 1) // m * m


# 8-aligned sublane row offsets of each layer inside the packed weight/bias slabs.
_ROW_OFF = []
_o = 0
for _co in _CHANNELS:
    _ROW_OFF.append(_o)
    _o += _round_up(_co, 8)
_SLAB_ROWS = _o                                  # 256


# ---------------------------------------------------------------------------
# Fused kernel factory: one grid step == one block of images; all 7 layers.
# ---------------------------------------------------------------------------
def _make_kernel(c0, b_blk):
    cin = (c0,) + _CHANNELS[:-1]
    cout = _CHANNELS
    n = [(_SPATIAL * _SPATIAL) >> (2 * (l + 1)) for l in range(_NUM_LAYERS)]
    m = [b_blk * x for x in n]                   # lane extent of each layer's output

    def kernel(x_ref, w_ref, b_ref, out_ref, *acts):
        # acts: VMEM scratch (bf16) for the first `len(acts)` intermediate
        # activations; smaller ones are chained as traced values (stay in vregs).
        num_scratch = len(acts)

        def bias_col(li):                        # (cout, 1) f32, broadcasts over lanes
            r = _ROW_OFF[li]
            return b_ref[r:r + cout[li], :]

        # ---- layer 1: single K-packed matmul (rows of x are (kh, kw, cin)) ----
        r0 = _ROW_OFF[0]
        w0 = w_ref[r0:r0 + cout[0], 0:4 * c0]                       # (4, 4*c0) bf16
        y = jnp.dot(w0, x_ref[...], preferred_element_type=jnp.float32)
        y = jnp.maximum(y + bias_col(0), 0.0).astype(jnp.bfloat16)  # (4, m[0])

        prev_val, prev_ref = None, None
        if num_scratch > 0:
            acts[0][...] = y
            prev_ref = acts[0]
        else:
            prev_val = y

        # ---- layers 2..7: 4 tap matmuls over contiguous lane blocks ----------
        # Column ordering guarantees: tap t (= 2*kh + kw) of every output column q
        # is column t*m_out + q of the previous activation, so tap t is the
        # contiguous lane block [t*m_out, (t+1)*m_out).
        for li in range(1, _NUM_LAYERS):
            k = cin[li]
            co = cout[li]
            mo = m[li]
            r = _ROW_OFF[li]
            parts = []
            for t in range(4):
                wt = w_ref[t * _SLAB_ROWS + r:t * _SLAB_ROWS + r + co, 0:k]  # (co,k)
                if prev_ref is not None:
                    a_blk = prev_ref[:, t * mo:(t + 1) * mo]                 # (k, mo)
                else:
                    a_blk = prev_val[:, t * mo:(t + 1) * mo]
                parts.append(jnp.dot(wt, a_blk,
                                     preferred_element_type=jnp.float32))
            acc = (parts[0] + parts[1]) + (parts[2] + parts[3])   # tree add, no chain
            y = jnp.maximum(acc + bias_col(li), 0.0)              # f32 epilogue

            if li == _NUM_LAYERS - 1:
                out_ref[...] = y                                  # (64, b_blk) f32
            else:
                y = y.astype(jnp.bfloat16)
                if li < num_scratch:
                    acts[li][...] = y
                    prev_ref, prev_val = acts[li], None
                else:
                    prev_val, prev_ref = y, None

    return kernel


# ---------------------------------------------------------------------------
# Host-side one-time input repack: pure reshape/transpose (NO gather).
# ---------------------------------------------------------------------------
def _pack_input(image_nhwc, images_per_step):
    """NHWC image -> (num_blocks, 4*C, images_per_step * (H/2)*(W/2)) bf16.

    Rows = (kh, kw, cin) of the layer-1 2x2 patch; columns follow the nested
    "finest-bit-pair outermost, image innermost" order so every later layer's
    conv taps are contiguous lane blocks.  Implemented as a chain of small
    rank<=7 transposes (a static bit permutation), never a gather."""
    nb, h, w, c = image_nhwc.shape
    b_blk = images_per_step
    nblk = nb // b_blk
    x = image_nhwc.astype(jnp.bfloat16)
    x = x.reshape(nblk, b_blk, h, w, c)
    x = jnp.transpose(x, (0, 2, 3, 4, 1))                 # (nblk, H, W, C, B)

    levels = h.bit_length() - 1                           # 7 for 128
    hk, g = h, b_blk
    for _ in range(levels - 1):                           # peel 6 MSB (h,w) pairs
        x = x.reshape(nblk, 2, hk // 2, 2, hk // 2, c, g)
        x = jnp.transpose(x, (0, 2, 4, 5, 1, 3, 6))
        hk //= 2
        g *= 4
        x = x.reshape(nblk, hk, hk, c, g)
    # x: (nblk, 2, 2, C, B*(H/2)*(W/2)); leading (h0, w0, C) are the patch rows.
    return x.reshape(nblk, 4 * c, g)


# ---------------------------------------------------------------------------
# Parameters (PyTorch layout) and the one-time packing into 2 slabs.
# ---------------------------------------------------------------------------
def init_params(key, image_channels):
    """PyTorch Conv2d default init: uniform(+-1/sqrt(fan_in)), OIHW weights."""
    chans = (image_channels,) + _CHANNELS
    params = []
    for i in range(_NUM_LAYERS):
        ci, co = chans[i], chans[i + 1]
        key, kw_, kb_ = jax.random.split(key, 3)
        bound = 1.0 / float(np.sqrt(ci * 2 * 2))
        w = jax.random.uniform(kw_, (co, ci, 2, 2), jnp.float32, -bound, bound)
        b = jax.random.uniform(kb_, (co,), jnp.float32, -bound, bound)
        params.append((w, b))
    return params


def pack_params(params):
    """Hoisted one-time repack (not in the forward hot path).

    w_slab: (4*_SLAB_ROWS, max(64, 4*Cin0)) bf16.  Tap-plane t holds layer-l
            weights W_l[:, :, kh, kw] (t = 2*kh + kw) at rows
            [t*_SLAB_ROWS + _ROW_OFF[l], +cout), cols [0, cin).  Layer 1 is
            stored K-packed ((kh,kw,cin) columns) in plane 0.
    b_slab: (_SLAB_ROWS, 1) f32 bias column at the same row offsets."""
    c0 = int(params[0][0].shape[1])
    slab_cols = max(64, 4 * c0)
    w_slab = np.zeros((4, _SLAB_ROWS, slab_cols), np.float32)
    b_slab = np.zeros((_SLAB_ROWS, 1), np.float32)
    for li, (w, b) in enumerate(params):
        w = np.asarray(w, np.float32)
        b = np.asarray(b, np.float32)
        co, ci, _, _ = w.shape
        r = _ROW_OFF[li]
        b_slab[r:r + co, 0] = b
        if li == 0:
            # (O,I,kh,kw) -> (O,kh,kw,I) -> (O,4I); col = (2*kh+kw)*I + i
            w_slab[0, r:r + co, 0:4 * ci] = np.transpose(w, (0, 2, 3, 1)).reshape(co, 4 * ci)
        else:
            for t in range(4):
                w_slab[t, r:r + co, 0:ci] = w[:, :, t // 2, t % 2]
    w_slab = w_slab.reshape(4 * _SLAB_ROWS, slab_cols)
    return jnp.asarray(w_slab, jnp.bfloat16), jnp.asarray(b_slab, jnp.float32)


# ---------------------------------------------------------------------------
# Forward pass
# ---------------------------------------------------------------------------
@functools.partial(jax.jit, static_argnames=("images_per_step",))
def feature_extractor_forward(image_nhwc, w_slab, b_slab, images_per_step=None):
    """image_nhwc: (N, 128, 128, C) float32 -> (N, 64, 1, 1) NCHW (PyTorch parity).

    images_per_step: images processed per grid step.  Default = biggest power of
    two (<=8) dividing the batch — one/few big steps (best on single-TC v5e/v6e).
    On v7x pick a value giving an even number of >=2 grid steps to feed both TCs."""
    nb, h, w, c0 = image_nhwc.shape
    assert h == _SPATIAL and w == _SPATIAL, "kernel assumes 128x128 input images"
    if images_per_step is None:
        images_per_step = next(d for d in (8, 4, 2, 1) if nb % d == 0)
    assert nb % images_per_step == 0
    b_blk = images_per_step
    nblk = nb // b_blk

    x1 = _pack_input(image_nhwc, b_blk)            # (nblk, 4*C0, b_blk*4096) bf16
    m = [b_blk * ((_SPATIAL * _SPATIAL) >> (2 * (l + 1))) for l in range(_NUM_LAYERS)]

    # VMEM scratch only for intermediate activations too big to chain in vregs
    # (sizes are monotonically decreasing, so this is always a prefix of layers).
    num_scratch = sum(1 for li in range(_NUM_LAYERS - 1)
                      if _CHANNELS[li] * m[li] * 2 > 32 * 1024)
    scratch_shapes = [pltpu.VMEM((_CHANNELS[li], m[li]), jnp.bfloat16)
                      for li in range(num_scratch)]

    kernel = _make_kernel(c0, b_blk)

    in_specs = [
        pl.BlockSpec((pl.Squeezed(), 4 * c0, m[0]), lambda b: (b, 0, 0)),
        pl.BlockSpec(w_slab.shape, lambda b: (0, 0)),       # weight slab, resident
        pl.BlockSpec(b_slab.shape, lambda b: (0, 0)),       # bias slab, resident
    ]
    out_specs = pl.BlockSpec((pl.Squeezed(), _CHANNELS[-1], b_blk),
                             lambda b: (b, 0, 0))

    out = pl.pallas_call(
        kernel,
        grid=(nblk,),
        in_specs=in_specs,
        out_specs=out_specs,
        out_shape=jax.ShapeDtypeStruct((nblk, _CHANNELS[-1], b_blk), jnp.float32),
        scratch_shapes=scratch_shapes,
        compiler_params=pltpu.CompilerParams(
            dimension_semantics=("parallel",),     # image-block axis over TCs (v7x)
            vmem_limit_bytes=32 * 1024 * 1024),    # explicit (v5e default is 16 MiB)
    )(x1, w_slab, b_slab)

    # (nblk, 64, b_blk) -> (N, 64, 1, 1)
    out = jnp.transpose(out, (0, 2, 1)).reshape(nb, _CHANNELS[-1], 1, 1)
    return out


# ---------------------------------------------------------------------------
# Pure-JAX reference (lax conv, f32) for correctness
# ---------------------------------------------------------------------------
def reference_forward(image_nhwc, params):
    x = jnp.transpose(image_nhwc, (0, 3, 1, 2))              # the module's permute
    for w, b in params:
        x = jax.lax.conv_general_dilated(
            x, w, window_strides=(2, 2), padding="VALID",
            dimension_numbers=("NCHW", "OIHW", "NCHW"))
        x = jnp.maximum(x + b.reshape(1, -1, 1, 1), 0.0)
    return x


if __name__ == "__main__":
    key = jax.random.PRNGKey(0)
    kx, kp = jax.random.split(key)

    image_channels = 3
    batch = 2
    # 128x128 is the smallest spatial size for which the module's 7 stride-2
    # convs are valid (output (N, 64, 1, 1)).
    image = jax.random.normal(kx, (batch, _SPATIAL, _SPATIAL, image_channels),
                              jnp.float32)
    params = init_params(kp, image_channels)
    w_slab, b_slab = pack_params(params)                     # hoisted, one-time

    out = feature_extractor_forward(image, w_slab, b_slab)
    out = jax.block_until_ready(out)

    ref = reference_forward(image, params)
    assert out.shape == ref.shape == (batch, 64, 1, 1), (out.shape, ref.shape)
    # bf16 weights/patches with f32 accumulation: slightly relaxed tolerance.
    if not bool(jnp.allclose(out, ref, atol=2e-2, rtol=2e-2)):
        raise AssertionError(
            f"Pallas output mismatch, max abs err = {float(jnp.max(jnp.abs(out - ref)))}")

    print("KERNEL_OK")
</pallas_src>

<mosaic_0001>
module attributes {stable_mosaic.version = 11 : i64} {
  func.func @kernel(%arg0: i32, %arg1: memref<1x12x8192xbf16, #tpu.memory_space<vmem>>, %arg2: memref<1024x64xbf16, #tpu.memory_space<vmem>>, %arg3: memref<256x1xf32, #tpu.memory_space<vmem>>, %arg4: memref<1x64x2xf32, #tpu.memory_space<vmem>>, %arg5: memref<4x8192xbf16, #tpu.memory_space<vmem>>) attributes {dimension_semantics = [#tpu.dimension_semantics<parallel>], iteration_bounds = array<i64: 1>, scalar_prefetch = 0 : i64, scratch_operands = 1 : i64, tpu.core_type = #tpu.core_type<tc>, window_params = [{transform_indices = @transform_0, window_bounds = array<i64: 1, 12, 8192>}, {pipeline_mode = #tpu.pipeline_mode<synchronous>, transform_indices = @transform_1, window_bounds = array<i64: 1024, 64>}, {pipeline_mode = #tpu.pipeline_mode<synchronous>, transform_indices = @transform_2, window_bounds = array<i64: 256, 1>}, {transform_indices = @transform_3, window_bounds = array<i64: 1, 64, 2>}]} {
    %c0 = arith.constant 0 : index
    %c0_0 = arith.constant 0 : index
    %0 = vector.load %arg2[%c0, %c0_0] : memref<1024x64xbf16, #tpu.memory_space<vmem>>, vector<4x12xbf16>
    %c0_1 = arith.constant 0 : index
    %c0_2 = arith.constant 0 : index
    %c0_3 = arith.constant 0 : index
    %1 = vector.load %arg1[%c0_1, %c0_2, %c0_3] : memref<1x12x8192xbf16, #tpu.memory_space<vmem>>, vector<1x12x8192xbf16>
    %2 = vector.shape_cast %1 : vector<1x12x8192xbf16> to vector<12x8192xbf16>
    %cst = arith.constant dense<0.000000e+00> : vector<4x8192xf32>
    %3 = tpu.matmul %0, %2, %cst {dimension_numbers = #tpu.dot_dimension_numbers<[1], [0], [0], [1], [0, 0, 1, 1], [], []>} : vector<4x12xbf16>, vector<12x8192xbf16>, vector<4x8192xf32> -> vector<4x8192xf32>
    %c0_4 = arith.constant 0 : index
    %c0_5 = arith.constant 0 : index
    %4 = vector.load %arg3[%c0_4, %c0_5] : memref<256x1xf32, #tpu.memory_space<vmem>>, vector<4x1xf32>
    %5 = vector.broadcast %4 : vector<4x1xf32> to vector<4x8192xf32>
    %6 = arith.addf %3, %5 : vector<4x8192xf32>
    %cst_6 = arith.constant 0.000000e+00 : f32
    %7 = vector.broadcast %cst_6 : f32 to vector<4x8192xf32>
    %8 = arith.maximumf %6, %7 : vector<4x8192xf32>
    %9 = arith.truncf %8 : vector<4x8192xf32> to vector<4x8192xbf16>
    %c0_7 = arith.constant 0 : index
    %c0_8 = arith.constant 0 : index
    %10 = vector.load %arg5[%c0_7, %c0_8] : memref<4x8192xbf16, #tpu.memory_space<vmem>>, vector<4x8192xbf16>
    tpu.vector_store %arg5[%c0_7, %c0_8], %9 {strides = array<i32>} : memref<4x8192xbf16, #tpu.memory_space<vmem>>, vector<4x8192xbf16>,
    %c8 = arith.constant 8 : index
    %c0_9 = arith.constant 0 : index
    %11 = vector.load %arg2[%c8, %c0_9] : memref<1024x64xbf16, #tpu.memory_space<vmem>>, vector<8x4xbf16>
    %c0_10 = arith.constant 0 : index
    %c0_11 = arith.constant 0 : index
    %12 = vector.load %arg5[%c0_10, %c0_11] : memref<4x8192xbf16, #tpu.memory_space<vmem>>, vector<4x2048xbf16>
    %cst_12 = arith.constant dense<0.000000e+00> : vector<8x2048xf32>
    %13 = tpu.matmul %11, %12, %cst_12 {dimension_numbers = #tpu.dot_dimension_numbers<[1], [0], [0], [1], [0, 0, 1, 1], [], []>} : vector<8x4xbf16>, vector<4x2048xbf16>, vector<8x2048xf32> -> vector<8x2048xf32>
    %c264 = arith.constant 264 : index
    %c0_13 = arith.constant 0 : index
    %14 = vector.load %arg2[%c264, %c0_13] : memref<1024x64xbf16, #tpu.memory_space<vmem>>, vector<8x4xbf16>
    %c0_14 = arith.constant 0 : index
    %c2048 = arith.constant 2048 : index
    %15 = vector.load %arg5[%c0_14, %c2048] : memref<4x8192xbf16, #tpu.memory_space<vmem>>, vector<4x2048xbf16>
    %cst_15 = arith.constant dense<0.000000e+00> : vector<8x2048xf32>
    %16 = tpu.matmul %14, %15, %cst_15 {dimension_numbers = #tpu.dot_dimension_numbers<[1], [0], [0], [1], [0, 0, 1, 1], [], []>} : vector<8x4xbf16>, vector<4x2048xbf16>, vector<8x2048xf32> -> vector<8x2048xf32>
    %c520 = arith.constant 520 : index
    %c0_16 = arith.constant 0 : index
    %17 = vector.load %arg2[%c520, %c0_16] : memref<1024x64xbf16, #tpu.memory_space<vmem>>, vector<8x4xbf16>
    %c0_17 = arith.constant 0 : index
    %c4096 = arith.constant 4096 : index
    %18 = vector.load %arg5[%c0_17, %c4096] : memref<4x8192xbf16, #tpu.memory_space<vmem>>, vector<4x2048xbf16>
    %cst_18 = arith.constant dense<0.000000e+00> : vector<8x2048xf32>
    %19 = tpu.matmul %17, %18, %cst_18 {dimension_numbers = #tpu.dot_dimension_numbers<[1], [0], [0], [1], [0, 0, 1, 1], [], []>} : vector<8x4xbf16>, vector<4x2048xbf16>, vector<8x2048xf32> -> vector<8x2048xf32>
    %c776 = arith.constant 776 : index
    %c0_19 = arith.constant 0 : index
    %20 = vector.load %arg2[%c776, %c0_19] : memref<1024x64xbf16, #tpu.memory_space<vmem>>, vector<8x4xbf16>
    %c0_20 = arith.constant 0 : index
    %c6144 = arith.constant 6144 : index
    %21 = vector.load %arg5[%c0_20, %c6144] : memref<4x8192xbf16, #tpu.memory_space<vmem>>, vector<4x2048xbf16>
    %cst_21 = arith.constant dense<0.000000e+00> : vector<8x2048xf32>
    %22 = tpu.matmul %20, %21, %cst_21 {dimension_numbers = #tpu.dot_dimension_numbers<[1], [0], [0], [1], [0, 0, 1, 1], [], []>} : vector<8x4xbf16>, vector<4x2048xbf16>, vector<8x2048xf32> -> vector<8x2048xf32>
    %23 = arith.addf %13, %16 : vector<8x2048xf32>
    %24 = arith.addf %19, %22 : vector<8x2048xf32>
    %25 = arith.addf %23, %24 : vector<8x2048xf32>
    %c8_22 = arith.constant 8 : index
    %c0_23 = arith.constant 0 : index
    %26 = vector.load %arg3[%c8_22, %c0_23] : memref<256x1xf32, #tpu.memory_space<vmem>>, vector<8x1xf32>
    %27 = vector.broadcast %26 : vector<8x1xf32> to vector<8x2048xf32>
    %28 = arith.addf %25, %27 : vector<8x2048xf32>
    %cst_24 = arith.constant 0.000000e+00 : f32
    %29 = vector.broadcast %cst_24 : f32 to vector<8x2048xf32>
    %30 = arith.maximumf %28, %29 : vector<8x2048xf32>
    %31 = arith.truncf %30 : vector<8x2048xf32> to vector<8x2048xbf16>
    %c16 = arith.constant 16 : index
    %c0_25 = arith.constant 0 : index
    %32 = vector.load %arg2[%c16, %c0_25] : memref<1024x64xbf16, #tpu.memory_space<vmem>>, vector<16x8xbf16>
    %33 = vector.extract_strided_slice %31 {offsets = [0, 0], sizes = [8, 512], strides = [1, 1]} : vector<8x2048xbf16> to vector<8x512xbf16>
    %cst_26 = arith.constant dense<0.000000e+00> : vector<16x512xf32>
    %34 = tpu.matmul %32, %33, %cst_26 {dimension_numbers = #tpu.dot_dimension_numbers<[1], [0], [0], [1], [0, 0, 1, 1], [], []>} : vector<16x8xbf16>, vector<8x512xbf16>, vector<16x512xf32> -> vector<16x512xf32>
    %c272 = arith.constant 272 : index
    %c0_27 = arith.constant 0 : index
    %35 = vector.load %arg2[%c272, %c0_27] : memref<1024x64xbf16, #tpu.memory_space<vmem>>, vector<16x8xbf16>
    %36 = vector.extract_strided_slice %31 {offsets = [0, 512], sizes = [8, 512], strides = [1, 1]} : vector<8x2048xbf16> to vector<8x512xbf16>
    %cst_28 = arith.constant dense<0.000000e+00> : vector<16x512xf32>
    %37 = tpu.matmul %35, %36, %cst_28 {dimension_numbers = #tpu.dot_dimension_numbers<[1], [0], [0], [1], [0, 0, 1, 1], [], []>} : vector<16x8xbf16>, vector<8x512xbf16>, vector<16x512xf32> -> vector<16x512xf32>
    %c528 = arith.constant 528 : index
    %c0_29 = arith.constant 0 : index
    %38 = vector.load %arg2[%c528, %c0_29] : memref<1024x64xbf16, #tpu.memory_space<vmem>>, vector<16x8xbf16>
    %39 = vector.extract_strided_slice %31 {offsets = [0, 1024], sizes = [8, 512], strides = [1, 1]} : vector<8x2048xbf16> to vector<8x512xbf16>
    %cst_30 = arith.constant dense<0.000000e+00> : vector<16x512xf32>
    %40 = tpu.matmul %38, %39, %cst_30 {dimension_numbers = #tpu.dot_dimension_numbers<[1], [0], [0], [1], [0, 0, 1, 1], [], []>} : vector<16x8xbf16>, vector<8x512xbf16>, vector<16x512xf32> -> vector<16x512xf32>
    %c784 = arith.constant 784 : index
    %c0_31 = arith.constant 0 : index
    %41 = vector.load %arg2[%c784, %c0_31] : memref<1024x64xbf16, #tpu.memory_space<vmem>>, vector<16x8xbf16>
    %42 = vector.extract_strided_slice %31 {offsets = [0, 1536], sizes = [8, 512], strides = [1, 1]} : vector<8x2048xbf16> to vector<8x512xbf16>
    %cst_32 = arith.constant dense<0.000000e+00> : vector<16x512xf32>
    %43 = tpu.matmul %41, %42, %cst_32 {dimension_numbers = #tpu.dot_dimension_numbers<[1], [0], [0], [1], [0, 0, 1, 1], [], []>} : vector<16x8xbf16>, vector<8x512xbf16>, vector<16x512xf32> -> vector<16x512xf32>
    %44 = arith.addf %34, %37 : vector<16x512xf32>
    %45 = arith.addf %40, %43 : vector<16x512xf32>
    %46 = arith.addf %44, %45 : vector<16x512xf32>
    %c16_33 = arith.constant 16 : index
    %c0_34 = arith.constant 0 : index
    %47 = vector.load %arg3[%c16_33, %c0_34] : memref<256x1xf32, #tpu.memory_space<vmem>>, vector<16x1xf32>
    %48 = vector.broadcast %47 : vector<16x1xf32> to vector<16x512xf32>
    %49 = arith.addf %46, %48 : vector<16x512xf32>
    %cst_35 = arith.constant 0.000000e+00 : f32
    %50 = vector.broadcast %cst_35 : f32 to vector<16x512xf32>
    %51 = arith.maximumf %49, %50 : vector<16x512xf32>
    %52 = arith.truncf %51 : vector<16x512xf32> to vector<16x512xbf16>
    %c32 = arith.constant 32 : index
    %c0_36 = arith.constant 0 : index
    %53 = vector.load %arg2[%c32, %c0_36] : memref<1024x64xbf16, #tpu.memory_space<vmem>>, vector<32x16xbf16>
    %54 = vector.extract_strided_slice %52 {offsets = [0, 0], sizes = [16, 128], strides = [1, 1]} : vector<16x512xbf16> to vector<16x128xbf16>
    %cst_37 = arith.constant dense<0.000000e+00> : vector<32x128xf32>
    %55 = tpu.matmul %53, %54, %cst_37 {dimension_numbers = #tpu.dot_dimension_numbers<[1], [0], [0], [1], [0, 0, 1, 1], [], []>} : vector<32x16xbf16>, vector<16x128xbf16>, vector<32x128xf32> -> vector<32x128xf32>
    %c288 = arith.constant 288 : index
    %c0_38 = arith.constant 0 : index
    %56 = vector.load %arg2[%c288, %c0_38] : memref<1024x64xbf16, #tpu.memory_space<vmem>>, vector<32x16xbf16>
    %57 = vector.extract_strided_slice %52 {offsets = [0, 128], sizes = [16, 128], strides = [1, 1]} : vector<16x512xbf16> to vector<16x128xbf16>
    %cst_39 = arith.constant dense<0.000000e+00> : vector<32x128xf32>
    %58 = tpu.matmul %56, %57, %cst_39 {dimension_numbers = #tpu.dot_dimension_numbers<[1], [0], [0], [1], [0, 0, 1, 1], [], []>} : vector<32x16xbf16>, vector<16x128xbf16>, vector<32x128xf32> -> vector<32x128xf32>
    %c544 = arith.constant 544 : index
    %c0_40 = arith.constant 0 : index
    %59 = vector.load %arg2[%c544, %c0_40] : memref<1024x64xbf16, #tpu.memory_space<vmem>>, vector<32x16xbf16>
    %60 = vector.extract_strided_slice %52 {offsets = [0, 256], sizes = [16, 128], strides = [1, 1]} : vector<16x512xbf16> to vector<16x128xbf16>
    %cst_41 = arith.constant dense<0.000000e+00> : vector<32x128xf32>
    %61 = tpu.matmul %59, %60, %cst_41 {dimension_numbers = #tpu.dot_dimension_numbers<[1], [0], [0], [1], [0, 0, 1, 1], [], []>} : vector<32x16xbf16>, vector<16x128xbf16>, vector<32x128xf32> -> vector<32x128xf32>
    %c800 = arith.constant 800 : index
    %c0_42 = arith.constant 0 : index
    %62 = vector.load %arg2[%c800, %c0_42] : memref<1024x64xbf16, #tpu.memory_space<vmem>>, vector<32x16xbf16>
    %63 = vector.extract_strided_slice %52 {offsets = [0, 384], sizes = [16, 128], strides = [1, 1]} : vector<16x512xbf16> to vector<16x128xbf16>
    %cst_43 = arith.constant dense<0.000000e+00> : vector<32x128xf32>
    %64 = tpu.matmul %62, %63, %cst_43 {dimension_numbers = #tpu.dot_dimension_numbers<[1], [0], [0], [1], [0, 0, 1, 1], [], []>} : vector<32x16xbf16>, vector<16x128xbf16>, vector<32x128xf32> -> vector<32x128xf32>
    %65 = arith.addf %55, %58 : vector<32x128xf32>
    %66 = arith.addf %61, %64 : vector<32x128xf32>
    %67 = arith.addf %65, %66 : vector<32x128xf32>
    %c32_44 = arith.constant 32 : index
    %c0_45 = arith.constant 0 : index
    %68 = vector.load %arg3[%c32_44, %c0_45] : memref<256x1xf32, #tpu.memory_space<vmem>>, vector<32x1xf32>
    %69 = vector.broadcast %68 : vector<32x1xf32> to vector<32x128xf32>
    %70 = arith.addf %67, %69 : vector<32x128xf32>
    %cst_46 = arith.constant 0.000000e+00 : f32
    %71 = vector.broadcast %cst_46 : f32 to vector<32x128xf32>
    %72 = arith.maximumf %70, %71 : vector<32x128xf32>
    %73 = arith.truncf %72 : vector<32x128xf32> to vector<32x128xbf16>
    %c64 = arith.constant 64 : index
    %c0_47 = arith.constant 0 : index
    %74 = vector.load %arg2[%c64, %c0_47] : memref<1024x64xbf16, #tpu.memory_space<vmem>>, vector<64x32xbf16>
    %75 = vector.extract_strided_slice %73 {offsets = [0, 0], sizes = [32, 32], strides = [1, 1]} : vector<32x128xbf16> to vector<32x32xbf16>
    %cst_48 = arith.constant dense<0.000000e+00> : vector<64x32xf32>
    %76 = tpu.matmul %74, %75, %cst_48 {dimension_numbers = #tpu.dot_dimension_numbers<[1], [0], [0], [1], [0, 0, 1, 1], [], []>} : vector<64x32xbf16>, vector<32x32xbf16>, vector<64x32xf32> -> vector<64x32xf32>
    %c320 = arith.constant 320 : index
    %c0_49 = arith.constant 0 : index
    %77 = vector.load %arg2[%c320, %c0_49] : memref<1024x64xbf16, #tpu.memory_space<vmem>>, vector<64x32xbf16>
    %78 = vector.extract_strided_slice %73 {offsets = [0, 32], sizes = [32, 32], strides = [1, 1]} : vector<32x128xbf16> to vector<32x32xbf16>
    %cst_50 = arith.constant dense<0.000000e+00> : vector<64x32xf32>
    %79 = tpu.matmul %77, %78, %cst_50 {dimension_numbers = #tpu.dot_dimension_numbers<[1], [0], [0], [1], [0, 0, 1, 1], [], []>} : vector<64x32xbf16>, vector<32x32xbf16>, vector<64x32xf32> -> vector<64x32xf32>
    %c576 = arith.constant 576 : index
    %c0_51 = arith.constant 0 : index
    %80 = vector.load %arg2[%c576, %c0_51] : memref<1024x64xbf16, #tpu.memory_space<vmem>>, vector<64x32xbf16>
    %81 = vector.extract_strided_slice %73 {offsets = [0, 64], sizes = [32, 32], strides = [1, 1]} : vector<32x128xbf16> to vector<32x32xbf16>
    %cst_52 = arith.constant dense<0.000000e+00> : vector<64x32xf32>
    %82 = tpu.matmul %80, %81, %cst_52 {dimension_numbers = #tpu.dot_dimension_numbers<[1], [0], [0], [1], [0, 0, 1, 1], [], []>} : vector<64x32xbf16>, vector<32x32xbf16>, vector<64x32xf32> -> vector<64x32xf32>
    %c832 = arith.constant 832 : index
    %c0_53 = arith.constant 0 : index
    %83 = vector.load %arg2[%c832, %c0_53] : memref<1024x64xbf16, #tpu.memory_space<vmem>>, vector<64x32xbf16>
    %84 = vector.extract_strided_slice %73 {offsets = [0, 96], sizes = [32, 32], strides = [1, 1]} : vector<32x128xbf16> to vector<32x32xbf16>
    %cst_54 = arith.constant dense<0.000000e+00> : vector<64x32xf32>
    %85 = tpu.matmul %83, %84, %cst_54 {dimension_numbers = #tpu.dot_dimension_numbers<[1], [0], [0], [1], [0, 0, 1, 1], [], []>} : vector<64x32xbf16>, vector<32x32xbf16>, vector<64x32xf32> -> vector<64x32xf32>
    %86 = arith.addf %76, %79 : vector<64x32xf32>
    %87 = arith.addf %82, %85 : vector<64x32xf32>
    %88 = arith.addf %86, %87 : vector<64x32xf32>
    %c64_55 = arith.constant 64 : index
    %c0_56 = arith.constant 0 : index
    %89 = vector.load %arg3[%c64_55, %c0_56] : memref<256x1xf32, #tpu.memory_space<vmem>>, vector<64x1xf32>
    %90 = vector.broadcast %89 : vector<64x1xf32> to vector<64x32xf32>
    %91 = arith.addf %88, %90 : vector<64x32xf32>
    %cst_57 = arith.constant 0.000000e+00 : f32
    %92 = vector.broadcast %cst_57 : f32 to vector<64x32xf32>
    %93 = arith.maximumf %91, %92 : vector<64x32xf32>
    %94 = arith.truncf %93 : vector<64x32xf32> to vector<64x32xbf16>
    %c128 = arith.constant 128 : index
    %c0_58 = arith.constant 0 : index
    %95 = vector.load %arg2[%c128, %c0_58] : memref<1024x64xbf16, #tpu.memory_space<vmem>>, vector<64x64xbf16>
    %96 = vector.extract_strided_slice %94 {offsets = [0, 0], sizes = [64, 8], strides = [1, 1]} : vector<64x32xbf16> to vector<64x8xbf16>
    %cst_59 = arith.constant dense<0.000000e+00> : vector<64x8xf32>
    %97 = tpu.matmul %95, %96, %cst_59 {dimension_numbers = #tpu.dot_dimension_numbers<[1], [0], [0], [1], [0, 0, 1, 1], [], []>} : vector<64x64xbf16>, vector<64x8xbf16>, vector<64x8xf32> -> vector<64x8xf32>
    %c384 = arith.constant 384 : index
    %c0_60 = arith.constant 0 : index
    %98 = vector.load %arg2[%c384, %c0_60] : memref<1024x64xbf16, #tpu.memory_space<vmem>>, vector<64x64xbf16>
    %99 = vector.extract_strided_slice %94 {offsets = [0, 8], sizes = [64, 8], strides = [1, 1]} : vector<64x32xbf16> to vector<64x8xbf16>
    %cst_61 = arith.constant dense<0.000000e+00> : vector<64x8xf32>
    %100 = tpu.matmul %98, %99, %cst_61 {dimension_numbers = #tpu.dot_dimension_numbers<[1], [0], [0], [1], [0, 0, 1, 1], [], []>} : vector<64x64xbf16>, vector<64x8xbf16>, vector<64x8xf32> -> vector<64x8xf32>
    %c640 = arith.constant 640 : index
    %c0_62 = arith.constant 0 : index
    %101 = vector.load %arg2[%c640, %c0_62] : memref<1024x64xbf16, #tpu.memory_space<vmem>>, vector<64x64xbf16>
    %102 = vector.extract_strided_slice %94 {offsets = [0, 16], sizes = [64, 8], strides = [1, 1]} : vector<64x32xbf16> to vector<64x8xbf16>
    %cst_63 = arith.constant dense<0.000000e+00> : vector<64x8xf32>
    %103 = tpu.matmul %101, %102, %cst_63 {dimension_numbers = #tpu.dot_dimension_numbers<[1], [0], [0], [1], [0, 0, 1, 1], [], []>} : vector<64x64xbf16>, vector<64x8xbf16>, vector<64x8xf32> -> vector<64x8xf32>
    %c896 = arith.constant 896 : index
    %c0_64 = arith.constant 0 : index
    %104 = vector.load %arg2[%c896, %c0_64] : memref<1024x64xbf16, #tpu.memory_space<vmem>>, vector<64x64xbf16>
    %105 = vector.extract_strided_slice %94 {offsets = [0, 24], sizes = [64, 8], strides = [1, 1]} : vector<64x32xbf16> to vector<64x8xbf16>
    %cst_65 = arith.constant dense<0.000000e+00> : vector<64x8xf32>
    %106 = tpu.matmul %104, %105, %cst_65 {dimension_numbers = #tpu.dot_dimension_numbers<[1], [0], [0], [1], [0, 0, 1, 1], [], []>} : vector<64x64xbf16>, vector<64x8xbf16>, vector<64x8xf32> -> vector<64x8xf32>
    %107 = arith.addf %97, %100 : vector<64x8xf32>
    %108 = arith.addf %103, %106 : vector<64x8xf32>
    %109 = arith.addf %107, %108 : vector<64x8xf32>
    %c128_66 = arith.constant 128 : index
    %c0_67 = arith.constant 0 : index
    %110 = vector.load %arg3[%c128_66, %c0_67] : memref<256x1xf32, #tpu.memory_space<vmem>>, vector<64x1xf32>
    %111 = vector.broadcast %110 : vector<64x1xf32> to vector<64x8xf32>
    %112 = arith.addf %109, %111 : vector<64x8xf32>
    %cst_68 = arith.constant 0.000000e+00 : f32
    %113 = vector.broadcast %cst_68 : f32 to vector<64x8xf32>
    %114 = arith.maximumf %112, %113 : vector<64x8xf32>
    %115 = arith.truncf %114 : vector<64x8xf32> to vector<64x8xbf16>
    %c192 = arith.constant 192 : index
    %c0_69 = arith.constant 0 : index
    %116 = vector.load %arg2[%c192, %c0_69] : memref<1024x64xbf16, #tpu.memory_space<vmem>>, vector<64x64xbf16>
    %117 = vector.extract_strided_slice %115 {offsets = [0, 0], sizes = [64, 2], strides = [1, 1]} : vector<64x8xbf16> to vector<64x2xbf16>
    %cst_70 = arith.constant dense<0.000000e+00> : vector<64x2xf32>
    %118 = tpu.matmul %116, %117, %cst_70 {dimension_numbers = #tpu.dot_dimension_numbers<[1], [0], [0], [1], [0, 0, 1, 1], [], []>} : vector<64x64xbf16>, vector<64x2xbf16>, vector<64x2xf32> -> vector<64x2xf32>
    %c448 = arith.constant 448 : index
    %c0_71 = arith.constant 0 : index
    %119 = vector.load %arg2[%c448, %c0_71] : memref<1024x64xbf16, #tpu.memory_space<vmem>>, vector<64x64xbf16>
    %120 = vector.extract_strided_slice %115 {offsets = [0, 2], sizes = [64, 2], strides = [1, 1]} : vector<64x8xbf16> to vector<64x2xbf16>
    %cst_72 = arith.constant dense<0.000000e+00> : vector<64x2xf32>
    %121 = tpu.matmul %119, %120, %cst_72 {dimension_numbers = #tpu.dot_dimension_numbers<[1], [0], [0], [1], [0, 0, 1, 1], [], []>} : vector<64x64xbf16>, vector<64x2xbf16>, vector<64x2xf32> -> vector<64x2xf32>
    %c704 = arith.constant 704 : index
    %c0_73 = arith.constant 0 : index
    %122 = vector.load %arg2[%c704, %c0_73] : memref<1024x64xbf16, #tpu.memory_space<vmem>>, vector<64x64xbf16>
    %123 = vector.extract_strided_slice %115 {offsets = [0, 4], sizes = [64, 2], strides = [1, 1]} : vector<64x8xbf16> to vector<64x2xbf16>
    %cst_74 = arith.constant dense<0.000000e+00> : vector<64x2xf32>
    %124 = tpu.matmul %122, %123, %cst_74 {dimension_numbers = #tpu.dot_dimension_numbers<[1], [0], [0], [1], [0, 0, 1, 1], [], []>} : vector<64x64xbf16>, vector<64x2xbf16>, vector<64x2xf32> -> vector<64x2xf32>
    %c960 = arith.constant 960 : index
    %c0_75 = arith.constant 0 : index
    %125 = vector.load %arg2[%c960, %c0_75] : memref<1024x64xbf16, #tpu.memory_space<vmem>>, vector<64x64xbf16>
    %126 = vector.extract_strided_slice %115 {offsets = [0, 6], sizes = [64, 2], strides = [1, 1]} : vector<64x8xbf16> to vector<64x2xbf16>
    %cst_76 = arith.constant dense<0.000000e+00> : vector<64x2xf32>
    %127 = tpu.matmul %125, %126, %cst_76 {dimension_numbers = #tpu.dot_dimension_numbers<[1], [0], [0], [1], [0, 0, 1, 1], [], []>} : vector<64x64xbf16>, vector<64x2xbf16>, vector<64x2xf32> -> vector<64x2xf32>
    %128 = arith.addf %118, %121 : vector<64x2xf32>
    %129 = arith.addf %124, %127 : vector<64x2xf32>
    %130 = arith.addf %128, %129 : vector<64x2xf32>
    %c192_77 = arith.constant 192 : index
    %c0_78 = arith.constant 0 : index
    %131 = vector.load %arg3[%c192_77, %c0_78] : memref<256x1xf32, #tpu.memory_space<vmem>>, vector<64x1xf32>
    %132 = vector.broadcast %131 : vector<64x1xf32> to vector<64x2xf32>
    %133 = arith.addf %130, %132 : vector<64x2xf32>
    %cst_79 = arith.constant 0.000000e+00 : f32
    %134 = vector.broadcast %cst_79 : f32 to vector<64x2xf32>
    %135 = arith.maximumf %133, %134 : vector<64x2xf32>
    %c0_80 = arith.constant 0 : index
    %c0_81 = arith.constant 0 : index
    %c0_82 = arith.constant 0 : index
    %136 = vector.load %arg4[%c0_80, %c0_81, %c0_82] : memref<1x64x2xf32, #tpu.memory_space<vmem>>, vector<1x64x2xf32>
    %137 = vector.shape_cast %136 : vector<1x64x2xf32> to vector<64x2xf32>
    %138 = vector.shape_cast %135 : vector<64x2xf32> to vector<1x64x2xf32>
    tpu.vector_store %arg4[%c0_80, %c0_81, %c0_82], %138 {strides = array<i32>} : memref<1x64x2xf32, #tpu.memory_space<vmem>>, vector<1x64x2xf32>,
    return
  }
  func.func @transform_0(%arg0: i32) -> (i32, i32, i32) {
    %c0_i32 = arith.constant 0 : i32
    %c0_i32_0 = arith.constant 0 : i32
    %c0_i32_1 = arith.constant 0 : i32
    return %arg0, %c0_i32, %c0_i32_0 : i32, i32, i32
  }
  func.func @transform_1(%arg0: i32) -> (i32, i32) {
    %c0_i32 = arith.constant 0 : i32
    %c0_i32_0 = arith.constant 0 : i32
    %c0_i32_1 = arith.constant 0 : i32
    return %c0_i32, %c0_i32_0 : i32, i32
  }
  func.func @transform_2(%arg0: i32) -> (i32, i32) {
    %c0_i32 = arith.constant 0 : i32
    %c0_i32_0 = arith.constant 0 : i32
    %c0_i32_1 = arith.constant 0 : i32
    return %c0_i32, %c0_i32_0 : i32, i32
  }
  func.func @transform_3(%arg0: i32) -> (i32, i32, i32) {
    %c0_i32 = arith.constant 0 : i32
    %c0_i32_0 = arith.constant 0 : i32
    %c0_i32_1 = arith.constant 0 : i32
    return %arg0, %c0_i32, %c0_i32_0 : i32, i32, i32
  }
}

</mosaic_0001>

<llo_original>
// kernel: feature_extractor_forward.1
$region0: #{feature_extractor_forward.1}
  #allocation0 [shape = 'u32[]', space=smem, size = 0x4, offset = 0x4, fixed_abs, tag = 'smem constant byte address 0x4 - core index']
  #allocation1 [shape = 'u32[72,128]{1,0:T(1,128)}', space=vmem, size = 0x9000, scoped, tag = 'internal scratch']
  #allocation2 [shape = 'bf16[4,8192]{1,0:T(4,128)(2,1)}', space=vmem, size = 0x10000, scoped, tag = 'scratch operand']
  %s0 = inlined_call_operand.vmem [shape: bf16[1,12,8192], index: 0, kind: input, shape index: {}]
  %s1 = inlined_call_operand.vmem [shape: bf16[1024,64], index: 1, kind: input, shape index: {}]
  %s2 = inlined_call_operand.vmem [shape: f32[256,1], index: 2, kind: input, shape index: {}]
  %s3 = inlined_call_operand.vmem [shape: f32[1,64,2], index: 3, kind: output, shape index: {}]
  %s4 = sld [smem:[#allocation0]]
  $region22: #{feature_extractor_forward.1} parent=0
    _
  %s6 = ssub.s32 1, %s4
  %s7 = scalar_select 0, %s6, %s4
  // Predicated region
  $region2: #{feature_extractor_forward.1} parent=0 // pred_check
    _
  $region3: #{feature_extractor_forward.1} parent=0 // pred_check_branch
    %9 = sbr.rel (0) target = $region5
  $region4: #{feature_extractor_forward.1} parent=0 // pred_region
    _
  $region5: #{feature_extractor_forward.1} parent=0 // pred_fallthru
    _
  // Predicated region
  $region6: #{feature_extractor_forward.1} parent=0 // pred_check
    _
  $region7: #{feature_extractor_forward.1} parent=0 // pred_check_branch
    %11 = sbr.rel (0) target = $region9
  $region8: #{feature_extractor_forward.1} parent=0 // pred_region
    _
  $region9: #{feature_extractor_forward.1} parent=0 // pred_fallthru
    _
  // Predicated region
  $region10: #{feature_extractor_forward.1} parent=0 // pred_check
    _
  $region11: #{feature_extractor_forward.1} parent=0 // pred_check_branch
    %13 = sbr.rel (0) target = $region13
  $region12: #{feature_extractor_forward.1} parent=0 // pred_region
    _
  $region13: #{feature_extractor_forward.1} parent=0 // pred_fallthru
    _
  %v15 = vld [vmem:[%s1] sm:$0x3]
  %v16 = vld [vmem:[%s0] sm:$0xff]
  %v17 = vld [vmem:[%s0 + $0x8] sm:$0xff]
  %v18 = vld [vmem:[%s0 + $0x10] sm:$0xff]
  %v19 = vld [vmem:[%s0 + $0x18] sm:$0xff]
  %v20 = vld [vmem:[%s0 + $0x20] sm:$0xff]
  %v21 = vld [vmem:[%s0 + $0x28] sm:$0xff]
  %v22 = vld [vmem:[%s0 + $0x30] sm:$0xff]
  %v23 = vld [vmem:[%s0 + $0x38] sm:$0xff]
  %v24 = vld [vmem:[%s0 + $0x40] sm:$0xff]
  %v25 = vld [vmem:[%s0 + $0x48] sm:$0xff]
  %v26 = vld [vmem:[%s0 + $0x50] sm:$0xff]
  %v27 = vld [vmem:[%s0 + $0x58] sm:$0xff]
  %v28 = vld [vmem:[%s0 + $0x60] sm:$0xff]
  %v29 = vld [vmem:[%s0 + $0x68] sm:$0xff]
  %v30 = vld [vmem:[%s0 + $0x70] sm:$0xff]
  %v31 = vld [vmem:[%s0 + $0x78] sm:$0xff]
  %v32 = vld [vmem:[%s0 + $0x80] sm:$0xff]
  %v33 = vld [vmem:[%s0 + $0x88] sm:$0xff]
  %v34 = vld [vmem:[%s0 + $0x90] sm:$0xff]
  %v35 = vld [vmem:[%s0 + $0x98] sm:$0xff]
  %v36 = vld [vmem:[%s0 + $0xa0] sm:$0xff]
  %v37 = vld [vmem:[%s0 + $0xa8] sm:$0xff]
  %v38 = vld [vmem:[%s0 + $0xb0] sm:$0xff]
  %v39 = vld [vmem:[%s0 + $0xb8] sm:$0xff]
  %v40 = vld [vmem:[%s0 + $0xc0] sm:$0xff]
  %v41 = vld [vmem:[%s0 + $0xc8] sm:$0xff]
  %v42 = vld [vmem:[%s0 + $0xd0] sm:$0xff]
  %v43 = vld [vmem:[%s0 + $0xd8] sm:$0xff]
  %v44 = vld [vmem:[%s0 + $0xe0] sm:$0xff]
  %v45 = vld [vmem:[%s0 + $0xe8] sm:$0xff]
  %v46 = vld [vmem:[%s0 + $0xf0] sm:$0xff]
  %v47 = vld [vmem:[%s0 + $0xf8] sm:$0xff]
  %v48 = vld [vmem:[%s0 + $0x100] sm:$0x33]
  %v49 = vld [vmem:[%s0 + $0x108] sm:$0x33]
  %v50 = vld [vmem:[%s0 + $0x110] sm:$0x33]
  %v51 = vld [vmem:[%s0 + $0x118] sm:$0x33]
  %v52 = vld [vmem:[%s0 + $0x120] sm:$0x33]
  %v53 = vld [vmem:[%s0 + $0x128] sm:$0x33]
  %v54 = vld [vmem:[%s0 + $0x130] sm:$0x33]
  %v55 = vld [vmem:[%s0 + $0x138] sm:$0x33]
  %v56 = vld [vmem:[%s0 + $0x140] sm:$0x33]
  %v57 = vld [vmem:[%s0 + $0x148] sm:$0x33]
  %v58 = vld [vmem:[%s0 + $0x150] sm:$0x33]
  %v59 = vld [vmem:[%s0 + $0x158] sm:$0x33]
  %v60 = vld [vmem:[%s0 + $0x160] sm:$0x33]
  %v61 = vld [vmem:[%s0 + $0x168] sm:$0x33]
  %v62 = vld [vmem:[%s0 + $0x170] sm:$0x33]
  %v63 = vld [vmem:[%s0 + $0x178] sm:$0x33]
  %v64 = vld [vmem:[%s0 + $0x180] sm:$0x33]
  %v65 = vld [vmem:[%s0 + $0x188] sm:$0x33]
  %v66 = vld [vmem:[%s0 + $0x190] sm:$0x33]
  %v67 = vld [vmem:[%s0 + $0x198] sm:$0x33]
  %v68 = vld [vmem:[%s0 + $0x1a0] sm:$0x33]
  %v69 = vld [vmem:[%s0 + $0x1a8] sm:$0x33]
  %v70 = vld [vmem:[%s0 + $0x1b0] sm:$0x33]
  %v71 = vld [vmem:[%s0 + $0x1b8] sm:$0x33]
  %v72 = vld [vmem:[%s0 + $0x1c0] sm:$0x33]
  %v73 = vld [vmem:[%s0 + $0x1c8] sm:$0x33]
  %v74 = vld [vmem:[%s0 + $0x1d0] sm:$0x33]
  %v75 = vld [vmem:[%s0 + $0x1d8] sm:$0x33]
  %v76 = vld [vmem:[%s0 + $0x1e0] sm:$0x33]
  %v77 = vld [vmem:[%s0 + $0x1e8] sm:$0x33]
  %v78 = vld [vmem:[%s0 + $0x1f0] sm:$0x33]
  %v79 = vld [vmem:[%s0 + $0x1f8] sm:$0x33]
  %v80 = vld [vmem:[%s2] sm:$0xf]
  %82 = vset.pattern.permute.xlu0 0
  %83 = vperm.xlu0 %82, %v80
  %v84 = vpop.permute.xlu0 %83
  %v150 = vunpack.c.l.b16 %v16
  %v151 = vunpack.c.h.b16 %v16
  %v152 = vunpack.c.l.b16 %v17
  %v153 = vunpack.c.h.b16 %v17
  %v154 = vunpack.c.l.b16 %v18
  %v155 = vunpack.c.h.b16 %v18
  %v156 = vunpack.c.l.b16 %v19
  %v157 = vunpack.c.h.b16 %v19
  %v158 = vunpack.c.l.b16 %v20
  %v159 = vunpack.c.h.b16 %v20
  %v160 = vunpack.c.l.b16 %v21
  %v161 = vunpack.c.h.b16 %v21
  %v162 = vunpack.c.l.b16 %v22
  %v163 = vunpack.c.h.b16 %v22
  %v164 = vunpack.c.l.b16 %v23
  %v165 = vunpack.c.h.b16 %v23
  %v166 = vunpack.c.l.b16 %v24
  %v167 = vunpack.c.h.b16 %v24
  %v168 = vunpack.c.l.b16 %v25
  %v169 = vunpack.c.h.b16 %v25
  %v170 = vunpack.c.l.b16 %v26
  %v171 = vunpack.c.h.b16 %v26
  %v172 = vunpack.c.l.b16 %v27
  %v173 = vunpack.c.h.b16 %v27
  %v174 = vunpack.c.l.b16 %v28
  %v175 = vunpack.c.h.b16 %v28
  %v176 = vunpack.c.l.b16 %v29
  %v177 = vunpack.c.h.b16 %v29
  %v178 = vunpack.c.l.b16 %v30
  %v179 = vunpack.c.h.b16 %v30
  %v180 = vunpack.c.l.b16 %v31
  %v181 = vunpack.c.h.b16 %v31
  %v182 = vunpack.c.l.b16 %v32
  %v183 = vunpack.c.h.b16 %v32
  %v184 = vunpack.c.l.b16 %v33
  %v185 = vunpack.c.h.b16 %v33
  %v186 = vunpack.c.l.b16 %v34
  %v187 = vunpack.c.h.b16 %v34
  %v188 = vunpack.c.l.b16 %v35
  %v189 = vunpack.c.h.b16 %v35
  %v190 = vunpack.c.l.b16 %v36
  %v191 = vunpack.c.h.b16 %v36
  %v192 = vunpack.c.l.b16 %v37
  %v193 = vunpack.c.h.b16 %v37
  %v194 = vunpack.c.l.b16 %v38
  %v195 = vunpack.c.h.b16 %v38
  %v196 = vunpack.c.l.b16 %v39
  %v197 = vunpack.c.h.b16 %v39
  %v198 = vunpack.c.l.b16 %v40
  %v199 = vunpack.c.h.b16 %v40
  %v200 = vunpack.c.l.b16 %v41
  %v201 = vunpack.c.h.b16 %v41
  %v202 = vunpack.c.l.b16 %v42
  %v203 = vunpack.c.h.b16 %v42
  %v204 = vunpack.c.l.b16 %v43
  %v205 = vunpack.c.h.b16 %v43
  %v206 = vunpack.c.l.b16 %v44
  %v207 = vunpack.c.h.b16 %v44
  %v208 = vunpack.c.l.b16 %v45
  %v209 = vunpack.c.h.b16 %v45
  %v210 = vunpack.c.l.b16 %v46
  %v211 = vunpack.c.h.b16 %v46
  %v212 = vunpack.c.l.b16 %v47
  %v213 = vunpack.c.h.b16 %v47
  %v214 = vunpack.c.l.b16 %v48
  %v215 = vunpack.c.h.b16 %v48
  %v216 = vunpack.c.l.b16 %v49
  %v217 = vunpack.c.h.b16 %v49
  %v218 = vunpack.c.l.b16 %v50
  %v219 = vunpack.c.h.b16 %v50
  %v220 = vunpack.c.l.b16 %v51
  %v221 = vunpack.c.h.b16 %v51
  %v222 = vunpack.c.l.b16 %v52
  %v223 = vunpack.c.h.b16 %v52
  %v224 = vunpack.c.l.b16 %v53
  %v225 = vunpack.c.h.b16 %v53
  %v226 = vunpack.c.l.b16 %v54
  %v227 = vunpack.c.h.b16 %v54
  %v228 = vunpack.c.l.b16 %v55
  %v229 = vunpack.c.h.b16 %v55
  %v230 = vunpack.c.l.b16 %v56
  %v231 = vunpack.c.h.b16 %v56
  %v232 = vunpack.c.l.b16 %v57
  %v233 = vunpack.c.h.b16 %v57
  %v234 = vunpack.c.l.b16 %v58
  %v235 = vunpack.c.h.b16 %v58
  %v236 = vunpack.c.l.b16 %v59
  %v237 = vunpack.c.h.b16 %v59
  %v238 = vunpack.c.l.b16 %v60
  %v239 = vunpack.c.h.b16 %v60
  %v240 = vunpack.c.l.b16 %v61
  %v241 = vunpack.c.h.b16 %v61
  %v242 = vunpack.c.l.b16 %v62
  %v243 = vunpack.c.h.b16 %v62
  %v244 = vunpack.c.l.b16 %v63
  %v245 = vunpack.c.h.b16 %v63
  %v246 = vunpack.c.l.b16 %v64
  %v247 = vunpack.c.h.b16 %v64
  %v248 = vunpack.c.l.b16 %v65
  %v249 = vunpack.c.h.b16 %v65
  %v250 = vunpack.c.l.b16 %v66
  %v251 = vunpack.c.h.b16 %v66
  %v252 = vunpack.c.l.b16 %v67
  %v253 = vunpack.c.h.b16 %v67
  %v254 = vunpack.c.l.b16 %v68
  %v255 = vunpack.c.h.b16 %v68
  %v256 = vunpack.c.l.b16 %v69
  %v257 = vunpack.c.h.b16 %v69
  %v258 = vunpack.c.l.b16 %v70
  %v259 = vunpack.c.h.b16 %v70
  %v260 = vunpack.c.l.b16 %v71
  %v261 = vunpack.c.h.b16 %v71
  %v262 = vunpack.c.l.b16 %v72
  %v263 = vunpack.c.h.b16 %v72
  %v264 = vunpack.c.l.b16 %v73
  %v265 = vunpack.c.h.b16 %v73
  %v266 = vunpack.c.l.b16 %v74
  %v267 = vunpack.c.h.b16 %v74
  %v268 = vunpack.c.l.b16 %v75
  %v269 = vunpack.c.h.b16 %v75
  %v270 = vunpack.c.l.b16 %v76
  %v271 = vunpack.c.h.b16 %v76
  %v272 = vunpack.c.l.b16 %v77
  %v273 = vunpack.c.h.b16 %v77
  %v274 = vunpack.c.l.b16 %v78
  %v275 = vunpack.c.h.b16 %v78
  %v276 = vunpack.c.l.b16 %v79
  %v277 = vunpack.c.h.b16 %v79
  %v278 = vpack.c.b16 %v214, %v150
  %v279 = vpack.c.b16 %v215, %v151
  %v280 = vpack.c.b16 %v216, %v152
  %v281 = vpack.c.b16 %v217, %v153
  %v282 = vpack.c.b16 %v218, %v154
  %v283 = vpack.c.b16 %v219, %v155
  %v284 = vpack.c.b16 %v220, %v156
  %v285 = vpack.c.b16 %v221, %v157
  %v286 = vpack.c.b16 %v222, %v158
  %v287 = vpack.c.b16 %v223, %v159
  %v288 = vpack.c.b16 %v224, %v160
  %v289 = vpack.c.b16 %v225, %v161
  %v290 = vpack.c.b16 %v226, %v162
  %v291 = vpack.c.b16 %v227, %v163
  %v292 = vpack.c.b16 %v228, %v164
  %v293 = vpack.c.b16 %v229, %v165
  %v294 = vpack.c.b16 %v230, %v166
  %v295 = vpack.c.b16 %v231, %v167
  %v296 = vpack.c.b16 %v232, %v168
  %v297 = vpack.c.b16 %v233, %v169
  %v298 = vpack.c.b16 %v234, %v170
  %v299 = vpack.c.b16 %v235, %v171
  %v300 = vpack.c.b16 %v236, %v172
  %v301 = vpack.c.b16 %v237, %v173
  %v302 = vpack.c.b16 %v238, %v174
  %v303 = vpack.c.b16 %v239, %v175
  %v304 = vpack.c.b16 %v240, %v176
  %v305 = vpack.c.b16 %v241, %v177
  %v306 = vpack.c.b16 %v242, %v178
  %v307 = vpack.c.b16 %v243, %v179
  %v308 = vpack.c.b16 %v244, %v180
  %v309 = vpack.c.b16 %v245, %v181
  %v310 = vpack.c.b16 %v246, %v182
  %v311 = vpack.c.b16 %v247, %v183
  %v312 = vpack.c.b16 %v248, %v184
  %v313 = vpack.c.b16 %v249, %v185
  %v314 = vpack.c.b16 %v250, %v186
  %v315 = vpack.c.b16 %v251, %v187
  %v316 = vpack.c.b16 %v252, %v188
  %v317 = vpack.c.b16 %v253, %v189
  %v318 = vpack.c.b16 %v254, %v190
  %v319 = vpack.c.b16 %v255, %v191
  %v320 = vpack.c.b16 %v256, %v192
  %v321 = vpack.c.b16 %v257, %v193
  %v322 = vpack.c.b16 %v258, %v194
  %v323 = vpack.c.b16 %v259, %v195
  %v324 = vpack.c.b16 %v260, %v196
  %v325 = vpack.c.b16 %v261, %v197
  %v326 = vpack.c.b16 %v262, %v198
  %v327 = vpack.c.b16 %v263, %v199
  %v328 = vpack.c.b16 %v264, %v200
  %v329 = vpack.c.b16 %v265, %v201
  %v330 = vpack.c.b16 %v266, %v202
  %v331 = vpack.c.b16 %v267, %v203
  %v332 = vpack.c.b16 %v268, %v204
  %v333 = vpack.c.b16 %v269, %v205
  %v334 = vpack.c.b16 %v270, %v206
  %v335 = vpack.c.b16 %v271, %v207
  %v336 = vpack.c.b16 %v272, %v208
  %v337 = vpack.c.b16 %v273, %v209
  %v338 = vpack.c.b16 %v274, %v210
  %v339 = vpack.c.b16 %v275, %v211
  %v340 = vpack.c.b16 %v276, %v212
  %v341 = vpack.c.b16 %v277, %v213
  %vm342 = vcmask 97280
  %v344 = vsel %vm342, %v15, 0
  %vm346 = vcmask 1045504
  %v348 = vsel %vm346, %v278, 0
  %v351 = vsel %vm346, %v279, 0
  %v354 = vsel %vm346, %v280, 0
  %v357 = vsel %vm346, %v281, 0
  %v360 = vsel %vm346, %v282, 0
  %v363 = vsel %vm346, %v283, 0
  %v366 = vsel %vm346, %v284, 0
  %v369 = vsel %vm346, %v285, 0
  %v372 = vsel %vm346, %v286, 0
  %v375 = vsel %vm346, %v287, 0
  %v378 = vsel %vm346, %v288, 0
  %v381 = vsel %vm346, %v289, 0
  %v384 = vsel %vm346, %v290, 0
  %v387 = vsel %vm346, %v291, 0
  %v390 = vsel %vm346, %v292, 0
  %v393 = vsel %vm346, %v293, 0
  %v396 = vsel %vm346, %v294, 0
  %v399 = vsel %vm346, %v295, 0
  %v402 = vsel %vm346, %v296, 0
  %v405 = vsel %vm346, %v297, 0
  %v408 = vsel %vm346, %v298, 0
  %v411 = vsel %vm346, %v299, 0
  %v414 = vsel %vm346, %v300, 0
  %v417 = vsel %vm346, %v301, 0
  %v420 = vsel %vm346, %v302, 0
  %v423 = vsel %vm346, %v303, 0
  %v426 = vsel %vm346, %v304, 0
  %v429 = vsel %vm346, %v305, 0
  %v432 = vsel %vm346, %v306, 0
  %v435 = vsel %vm346, %v307, 0
  %v438 = vsel %vm346, %v308, 0
  %v441 = vsel %vm346, %v309, 0
  %v444 = vsel %vm346, %v310, 0
  %v447 = vsel %vm346, %v311, 0
  %v450 = vsel %vm346, %v312, 0
  %v453 = vsel %vm346, %v313, 0
  %v456 = vsel %vm346, %v314, 0
  %v459 = vsel %vm346, %v315, 0
  %v462 = vsel %vm346, %v316, 0
  %v465 = vsel %vm346, %v317, 0
  %v468 = vsel %vm346, %v318, 0
  %v471 = vsel %vm346, %v319, 0
  %v474 = vsel %vm346, %v320, 0
  %v477 = vsel %vm346, %v321, 0
  %v480 = vsel %vm346, %v322, 0
  %v483 = vsel %vm346, %v323, 0
  %v486 = vsel %vm346, %v324, 0
  %v489 = vsel %vm346, %v325, 0
  %v492 = vsel %vm346, %v326, 0
  %v495 = vsel %vm346, %v327, 0
  %v498 = vsel %vm346, %v328, 0
  %v501 = vsel %vm346, %v329, 0
  %v504 = vsel %vm346, %v330, 0
  %v507 = vsel %vm346, %v331, 0
  %v510 = vsel %vm346, %v332, 0
  %v513 = vsel %vm346, %v333, 0
  %v516 = vsel %vm346, %v334, 0
  %v519 = vsel %vm346, %v335, 0
  %v522 = vsel %vm346, %v336, 0
  %v525 = vsel %vm346, %v337, 0
  %v528 = vsel %vm346, %v338, 0
  %v531 = vsel %vm346, %v339, 0
  %v534 = vsel %vm346, %v340, 0
  %v537 = vsel %vm346, %v341, 0
  %539 = vmatpush.bf16.msra.mxu0 0
  %540 = vmatpush.bf16.msra.mxu0 0
  %541 = vmatpush.bf16.msra.mxu0 0
  %542 = vmatpush.bf16.msra.mxu0 0
  %543 = vmatpush.bf16.msra.mxu0 0
  %544 = vmatpush.bf16.msra.mxu0 0
  %545 = vmatpush.bf16.msra.mxu0 0
  %546 = vmatpush.bf16.msra.mxu0 %v348
  %547 = vmatmul.bf16.gmra.mxu0 %v344
  %v548 = vpop.f32.mrf.mxu0
  %v549 = vadd.f32 %v84, %v548
  %v550 = vpop.f32.mrf.mxu0
  %551 = vdwg.mxu0
  %552 = vmatpush.bf16.msra.mxu0 0
  %553 = vmatpush.bf16.msra.mxu0 0
  %554 = vmatpush.bf16.msra.mxu0 0
  %555 = vmatpush.bf16.msra.mxu0 0
  %556 = vmatpush.bf16.msra.mxu0 0
  %557 = vmatpush.bf16.msra.mxu0 0
  %558 = vmatpush.bf16.msra.mxu0 0
  %559 = vmatpush.bf16.msra.mxu0 %v351
  %560 = vmatmul.bf16.gmra.mxu0 %v344
  %v561 = vpop.f32.mrf.mxu0
  %v562 = vadd.f32 %v84, %v561
  %v563 = vpop.f32.mrf.mxu0
  %564 = vdwg.mxu0
  %565 = vmatpush.bf16.msra.mxu0 0
  %566 = vmatpush.bf16.msra.mxu0 0
  %567 = vmatpush.bf16.msra.mxu0 0
  %568 = vmatpush.bf16.msra.mxu0 0
  %569 = vmatpush.bf16.msra.mxu0 0
  %570 = vmatpush.bf16.msra.mxu0 0
  %571 = vmatpush.bf16.msra.mxu0 0
  %572 = vmatpush.bf16.msra.mxu0 %v354
  %573 = vmatmul.bf16.gmra.mxu0 %v344
  %v574 = vpop.f32.mrf.mxu0
  %v575 = vadd.f32 %v84, %v574
  %v576 = vpop.f32.mrf.mxu0
  %577 = vdwg.mxu0
  %578 = vmatpush.bf16.msra.mxu0 0
  %579 = vmatpush.bf16.msra.mxu0 0
  %580 = vmatpush.bf16.msra.mxu0 0
  %581 = vmatpush.bf16.msra.mxu0 0
  %582 = vmatpush.bf16.msra.mxu0 0
  %583 = vmatpush.bf16.msra.mxu0 0
  %584 = vmatpush.bf16.msra.mxu0 0
  %585 = vmatpush.bf16.msra.mxu0 %v357
  %586 = vmatmul.bf16.gmra.mxu0 %v344
  %v587 = vpop.f32.mrf.mxu0
  %v588 = vadd.f32 %v84, %v587
  %v589 = vpop.f32.mrf.mxu0
  %590 = vdwg.mxu0
  %591 = vmatpush.bf16.msra.mxu0 0
  %592 = vmatpush.bf16.msra.mxu0 0
  %593 = vmatpush.bf16.msra.mxu0 0
  %594 = vmatpush.bf16.msra.mxu0 0
  %595 = vmatpush.bf16.msra.mxu0 0
  %596 = vmatpush.bf16.msra.mxu0 0
  %597 = vmatpush.bf16.msra.mxu0 0
  %598 = vmatpush.bf16.msra.mxu0 %v360
  %599 = vmatmul.bf16.gmra.mxu0 %v344
  %v600 = vpop.f32.mrf.mxu0
  %v601 = vadd.f32 %v84, %v600
  %v602 = vpop.f32.mrf.mxu0
  %603 = vdwg.mxu0
  %604 = vmatpush.bf16.msra.mxu0 0
  %605 = vmatpush.bf16.msra.mxu0 0
  %606 = vmatpush.bf16.msra.mxu0 0
  %607 = vmatpush.bf16.msra.mxu0 0
  %608 = vmatpush.bf16.msra.mxu0 0
  %609 = vmatpush.bf16.msra.mxu0 0
  %610 = vmatpush.bf16.msra.mxu0 0
  %611 = vmatpush.bf16.msra.mxu0 %v363
  %612 = vmatmul.bf16.gmra.mxu0 %v344
  %v613 = vpop.f32.mrf.mxu0
  %v614 = vadd.f32 %v84, %v613
  %v615 = vpop.f32.mrf.mxu0
  %616 = vdwg.mxu0
  %617 = vmatpush.bf16.msra.mxu0 0
  %618 = vmatpush.bf16.msra.mxu0 0
  %619 = vmatpush.bf16.msra.mxu0 0
  %620 = vmatpush.bf16.msra.mxu0 0
  %621 = vmatpush.bf16.msra.mxu0 0
  %622 = vmatpush.bf16.msra.mxu0 0
  %623 = vmatpush.bf16.msra.mxu0 0
  %624 = vmatpush.bf16.msra.mxu0 %v366
  %625 = vmatmul.bf16.gmra.mxu0 %v344
  %v626 = vpop.f32.mrf.mxu0
  %v627 = vadd.f32 %v84, %v626
  %v628 = vpop.f32.mrf.mxu0
  %629 = vdwg.mxu0
  %630 = vmatpush.bf16.msra.mxu0 0
  %631 = vmatpush.bf16.msra.mxu0 0
  %632 = vmatpush.bf16.msra.mxu0 0
  %633 = vmatpush.bf16.msra.mxu0 0
  %634 = vmatpush.bf16.msra.mxu0 0
  %635 = vmatpush.bf16.msra.mxu0 0
  %636 = vmatpush.bf16.msra.mxu0 0
  %637 = vmatpush.bf16.msra.mxu0 %v369
  %638 = vmatmul.bf16.gmra.mxu0 %v344
  %v639 = vpop.f32.mrf.mxu0
  %v640 = vadd.f32 %v84, %v639
  %v641 = vpop.f32.mrf.mxu0
  %642 = vdwg.mxu0
  %643 = vmatpush.bf16.msra.mxu0 0
  %644 = vmatpush.bf16.msra.mxu0 0
  %645 = vmatpush.bf16.msra.mxu0 0
  %646 = vmatpush.bf16.msra.mxu0 0
  %647 = vmatpush.bf16.msra.mxu0 0
  %648 = vmatpush.bf16.msra.mxu0 0
  %649 = vmatpush.bf16.msra.mxu0 0
  %650 = vmatpush.bf16.msra.mxu0 %v372
  %651 = vmatmul.bf16.gmra.mxu0 %v344
  %v652 = vpop.f32.mrf.mxu0
  %v653 = vadd.f32 %v84, %v652
  %v654 = vpop.f32.mrf.mxu0
  %655 = vdwg.mxu0
  %656 = vmatpush.bf16.msra.mxu0 0
  %657 = vmatpush.bf16.msra.mxu0 0
  %658 = vmatpush.bf16.msra.mxu0 0
  %659 = vmatpush.bf16.msra.mxu0 0
  %660 = vmatpush.bf16.msra.mxu0 0
  %661 = vmatpush.bf16.msra.mxu0 0
  %662 = vmatpush.bf16.msra.mxu0 0
  %663 = vmatpush.bf16.msra.mxu0 %v375
  %664 = vmatmul.bf16.gmra.mxu0 %v344
  %v665 = vpop.f32.mrf.mxu0
  %v666 = vadd.f32 %v84, %v665
  %v667 = vpop.f32.mrf.mxu0
  %668 = vdwg.mxu0
  %669 = vmatpush.bf16.msra.mxu0 0
  %670 = vmatpush.bf16.msra.mxu0 0
  %671 = vmatpush.bf16.msra.mxu0 0
  %672 = vmatpush.bf16.msra.mxu0 0
  %673 = vmatpush.bf16.msra.mxu0 0
  %674 = vmatpush.bf16.msra.mxu0 0
  %675 = vmatpush.bf16.msra.mxu0 0
  %676 = vmatpush.bf16.msra.mxu0 %v378
  %677 = vmatmul.bf16.gmra.mxu0 %v344
  %v678 = vpop.f32.mrf.mxu0
  %v679 = vadd.f32 %v84, %v678
  %v680 = vpop.f32.mrf.mxu0
  %681 = vdwg.mxu0
  %682 = vmatpush.bf16.msra.mxu0 0
  %683 = vmatpush.bf16.msra.mxu0 0
  %684 = vmatpush.bf16.msra.mxu0 0
  %685 = vmatpush.bf16.msra.mxu0 0
  %686 = vmatpush.bf16.msra.mxu0 0
  %687 = vmatpush.bf16.msra.mxu0 0
  %688 = vmatpush.bf16.msra.mxu0 0
  %689 = vmatpush.bf16.msra.mxu0 %v381
  %690 = vmatmul.bf16.gmra.mxu0 %v344
  %v691 = vpop.f32.mrf.mxu0
  %v692 = vadd.f32 %v84, %v691
  %v693 = vpop.f32.mrf.mxu0
  %694 = vdwg.mxu0
  %695 = vmatpush.bf16.msra.mxu0 0
  %696 = vmatpush.bf16.msra.mxu0 0
  %697 = vmatpush.bf16.msra.mxu0 0
  %698 = vmatpush.bf16.msra.mxu0 0
  %699 = vmatpush.bf16.msra.mxu0 0
  %700 = vmatpush.bf16.msra.mxu0 0
  %701 = vmatpush.bf16.msra.mxu0 0
  %702 = vmatpush.bf16.msra.mxu0 %v384
  %703 = vmatmul.bf16.gmra.mxu0 %v344
  %v704 = vpop.f32.mrf.mxu0
  %v705 = vadd.f32 %v84, %v704
  %v706 = vpop.f32.mrf.mxu0
  %707 = vdwg.mxu0
  %708 = vmatpush.bf16.msra.mxu0 0
  %709 = vmatpush.bf16.msra.mxu0 0
  %710 = vmatpush.bf16.msra.mxu0 0
  %711 = vmatpush.bf16.msra.mxu0 0
  %712 = vmatpush.bf16.msra.mxu0 0
  %713 = vmatpush.bf16.msra.mxu0 0
  %714 = vmatpush.bf16.msra.mxu0 0
  %715 = vmatpush.bf16.msra.mxu0 %v387
  %716 = vmatmul.bf16.gmra.mxu0 %v344
  %v717 = vpop.f32.mrf.mxu0
  %v718 = vadd.f32 %v84, %v717
  %v719 = vpop.f32.mrf.mxu0
  %720 = vdwg.mxu0
  %721 = vmatpush.bf16.msra.mxu0 0
  %722 = vmatpush.bf16.msra.mxu0 0
  %723 = vmatpush.bf16.msra.mxu0 0
  %724 = vmatpush.bf16.msra.mxu0 0
  %725 = vmatpush.bf16.msra.mxu0 0
  %726 = vmatpush.bf16.msra.mxu0 0
  %727 = vmatpush.bf16.msra.mxu0 0
  %728 = vmatpush.bf16.msra.mxu0 %v390
  %729 = vmatmul.bf16.gmra.mxu0 %v344
  %v730 = vpop.f32.mrf.mxu0
  %v731 = vadd.f32 %v84, %v730
  %v732 = vpop.f32.mrf.mxu0
  %733 = vdwg.mxu0
  %734 = vmatpush.bf16.msra.mxu0 0
  %735 = vmatpush.bf16.msra.mxu0 0
  %736 = vmatpush.bf16.msra.mxu0 0
  %737 = vmatpush.bf16.msra.mxu0 0
  %738 = vmatpush.bf16.msra.mxu0 0
  %739 = vmatpush.bf16.msra.mxu0 0
  %740 = vmatpush.bf16.msra.mxu0 0
  %741 = vmatpush.bf16.msra.mxu0 %v393
  %742 = vmatmul.bf16.gmra.mxu0 %v344
  %v743 = vpop.f32.mrf.mxu0
  %v744 = vadd.f32 %v84, %v743
  %v745 = vpop.f32.mrf.mxu0
  %746 = vdwg.mxu0
  %747 = vmatpush.bf16.msra.mxu0 0
  %748 = vmatpush.bf16.msra.mxu0 0
  %749 = vmatpush.bf16.msra.mxu0 0
  %750 = vmatpush.bf16.msra.mxu0 0
  %751 = vmatpush.bf16.msra.mxu0 0
  %752 = vmatpush.bf16.msra.mxu0 0
  %753 = vmatpush.bf16.msra.mxu0 0
  %754 = vmatpush.bf16.msra.mxu0 %v396
  %755 = vmatmul.bf16.gmra.mxu0 %v344
  %v756 = vpop.f32.mrf.mxu0
  %v757 = vadd.f32 %v84, %v756
  %v758 = vpop.f32.mrf.mxu0
  %759 = vdwg.mxu0
  %760 = vmatpush.bf16.msra.mxu0 0
  %761 = vmatpush.bf16.msra.mxu0 0
  %762 = vmatpush.bf16.msra.mxu0 0
  %763 = vmatpush.bf16.msra.mxu0 0
  %764 = vmatpush.bf16.msra.mxu0 0
  %765 = vmatpush.bf16.msra.mxu0 0
  %766 = vmatpush.bf16.msra.mxu0 0
  %767 = vmatpush.bf16.msra.mxu0 %v399
  %768 = vmatmul.bf16.gmra.mxu0 %v344
  %v769 = vpop.f32.mrf.mxu0
  %v770 = vadd.f32 %v84, %v769
  %v771 = vpop.f32.mrf.mxu0
  %772 = vdwg.mxu0
  %773 = vmatpush.bf16.msra.mxu0 0
  %774 = vmatpush.bf16.msra.mxu0 0
  %775 = vmatpush.bf16.msra.mxu0 0
  %776 = vmatpush.bf16.msra.mxu0 0
  %777 = vmatpush.bf16.msra.mxu0 0
  %778 = vmatpush.bf16.msra.mxu0 0
  %779 = vmatpush.bf16.msra.mxu0 0
  %780 = vmatpush.bf16.msra.mxu0 %v402
  %781 = vmatmul.bf16.gmra.mxu0 %v344
  %v782 = vpop.f32.mrf.mxu0
  %v783 = vadd.f32 %v84, %v782
  %v784 = vpop.f32.mrf.mxu0
  %785 = vdwg.mxu0
  %786 = vmatpush.bf16.msra.mxu0 0
  %787 = vmatpush.bf16.msra.mxu0 0
  %788 = vmatpush.bf16.msra.mxu0 0
  %789 = vmatpush.bf16.msra.mxu0 0
  %790 = vmatpush.bf16.msra.mxu0 0
  %791 = vmatpush.bf16.msra.mxu0 0
  %792 = vmatpush.bf16.msra.mxu0 0
  %793 = vmatpush.bf16.msra.mxu0 %v405
  %794 = vmatmul.bf16.gmra.mxu0 %v344
  %v795 = vpop.f32.mrf.mxu0
  %v796 = vadd.f32 %v84, %v795
  %v797 = vpop.f32.mrf.mxu0
  %798 = vdwg.mxu0
  %799 = vmatpush.bf16.msra.mxu0 0
  %800 = vmatpush.bf16.msra.mxu0 0
  %801 = vmatpush.bf16.msra.mxu0 0
  %802 = vmatpush.bf16.msra.mxu0 0
  %803 = vmatpush.bf16.msra.mxu0 0
  %804 = vmatpush.bf16.msra.mxu0 0
  %805 = vmatpush.bf16.msra.mxu0 0
  %806 = vmatpush.bf16.msra.mxu0 %v408
  %807 = vmatmul.bf16.gmra.mxu0 %v344
  %v808 = vpop.f32.mrf.mxu0
  %v809 = vadd.f32 %v84, %v808
  %v810 = vpop.f32.mrf.mxu0
  %811 = vdwg.mxu0
  %812 = vmatpush.bf16.msra.mxu0 0
  %813 = vmatpush.bf16.msra.mxu0 0
  %814 = vmatpush.bf16.msra.mxu0 0
  %815 = vmatpush.bf16.msra.mxu0 0
  %816 = vmatpush.bf16.msra.mxu0 0
  %817 = vmatpush.bf16.msra.mxu0 0
  %818 = vmatpush.bf16.msra.mxu0 0
  %819 = vmatpush.bf16.msra.mxu0 %v411
  %820 = vmatmul.bf16.gmra.mxu0 %v344
  %v821 = vpop.f32.mrf.mxu0
  %v822 = vadd.f32 %v84, %v821
  %v823 = vpop.f32.mrf.mxu0
  %824 = vdwg.mxu0
  %825 = vmatpush.bf16.msra.mxu0 0
  %826 = vmatpush.bf16.msra.mxu0 0
  %827 = vmatpush.bf16.msra.mxu0 0
  %828 = vmatpush.bf16.msra.mxu0 0
  %829 = vmatpush.bf16.msra.mxu0 0
  %830 = vmatpush.bf16.msra.mxu0 0
  %831 = vmatpush.bf16.msra.mxu0 0
  %832 = vmatpush.bf16.msra.mxu0 %v414
  %833 = vmatmul.bf16.gmra.mxu0 %v344
  %v834 = vpop.f32.mrf.mxu0
  %v835 = vadd.f32 %v84, %v834
  %v836 = vpop.f32.mrf.mxu0
  %837 = vdwg.mxu0
  %838 = vmatpush.bf16.msra.mxu0 0
  %839 = vmatpush.bf16.msra.mxu0 0
  %840 = vmatpush.bf16.msra.mxu0 0
  %841 = vmatpush.bf16.msra.mxu0 0
  %842 = vmatpush.bf16.msra.mxu0 0
  %843 = vmatpush.bf16.msra.mxu0 0
  %844 = vmatpush.bf16.msra.mxu0 0
  %845 = vmatpush.bf16.msra.mxu0 %v417
  %846 = vmatmul.bf16.gmra.mxu0 %v344
  %v847 = vpop.f32.mrf.mxu0
  %v848 = vadd.f32 %v84, %v847
  %v849 = vpop.f32.mrf.mxu0
  %850 = vdwg.mxu0
  %851 = vmatpush.bf16.msra.mxu0 0
  %852 = vmatpush.bf16.msra.mxu0 0
  %853 = vmatpush.bf16.msra.mxu0 0
  %854 = vmatpush.bf16.msra.mxu0 0
  %855 = vmatpush.bf16.msra.mxu0 0
  %856 = vmatpush.bf16.msra.mxu0 0
  %857 = vmatpush.bf16.msra.mxu0 0
  %858 = vmatpush.bf16.msra.mxu0 %v420
  %859 = vmatmul.bf16.gmra.mxu0 %v344
  %v860 = vpop.f32.mrf.mxu0
  %v861 = vadd.f32 %v84, %v860
  %v862 = vpop.f32.mrf.mxu0
  %863 = vdwg.mxu0
  %864 = vmatpush.bf16.msra.mxu0 0
  %865 = vmatpush.bf16.msra.mxu0 0
  %866 = vmatpush.bf16.msra.mxu0 0
  %867 = vmatpush.bf16.msra.mxu0 0
  %868 = vmatpush.bf16.msra.mxu0 0
  %869 = vmatpush.bf16.msra.mxu0 0
  %870 = vmatpush.bf16.msra.mxu0 0
  %871 = vmatpush.bf16.msra.mxu0 %v423
  %872 = vmatmul.bf16.gmra.mxu0 %v344
  %v873 = vpop.f32.mrf.mxu0
  %v874 = vadd.f32 %v84, %v873
  %v875 = vpop.f32.mrf.mxu0
  %876 = vdwg.mxu0
  %877 = vmatpush.bf16.msra.mxu0 0
  %878 = vmatpush.bf16.msra.mxu0 0
  %879 = vmatpush.bf16.msra.mxu0 0
  %880 = vmatpush.bf16.msra.mxu0 0
  %881 = vmatpush.bf16.msra.mxu0 0
  %882 = vmatpush.bf16.msra.mxu0 0
  %883 = vmatpush.bf16.msra.mxu0 0
  %884 = vmatpush.bf16.msra.mxu0 %v426
  %885 = vmatmul.bf16.gmra.mxu0 %v344
  %v886 = vpop.f32.mrf.mxu0
  %v887 = vadd.f32 %v84, %v886
  %v888 = vpop.f32.mrf.mxu0
  %889 = vdwg.mxu0
  %890 = vmatpush.bf16.msra.mxu0 0
  %891 = vmatpush.bf16.msra.mxu0 0
  %892 = vmatpush.bf16.msra.mxu0 0
  %893 = vmatpush.bf16.msra.mxu0 0
  %894 = vmatpush.bf16.msra.mxu0 0
  %895 = vmatpush.bf16.msra.mxu0 0
  %896 = vmatpush.bf16.msra.mxu0 0
  %897 = vmatpush.bf16.msra.mxu0 %v429
  %898 = vmatmul.bf16.gmra.mxu0 %v344
  %v899 = vpop.f32.mrf.mxu0
  %v900 = vadd.f32 %v84, %v899
  %v901 = vpop.f32.mrf.mxu0
  %902 = vdwg.mxu0
  %903 = vmatpush.bf16.msra.mxu0 0
  %904 = vmatpush.bf16.msra.mxu0 0
  %905 = vmatpush.bf16.msra.mxu0 0
  %906 = vmatpush.bf16.msra.mxu0 0
  %907 = vmatpush.bf16.msra.mxu0 0
  %908 = vmatpush.bf16.msra.mxu0 0
  %909 = vmatpush.bf16.msra.mxu0 0
  %910 = vmatpush.bf16.msra.mxu0 %v432
  %911 = vmatmul.bf16.gmra.mxu0 %v344
  %v912 = vpop.f32.mrf.mxu0
  %v913 = vadd.f32 %v84, %v912
  %v914 = vpop.f32.mrf.mxu0
  %915 = vdwg.mxu0
  %916 = vmatpush.bf16.msra.mxu0 0
  %917 = vmatpush.bf16.msra.mxu0 0
  %918 = vmatpush.bf16.msra.mxu0 0
  %919 = vmatpush.bf16.msra.mxu0 0
  %920 = vmatpush.bf16.msra.mxu0 0
  %921 = vmatpush.bf16.msra.mxu0 0
  %922 = vmatpush.bf16.msra.mxu0 0
  %923 = vmatpush.bf16.msra.mxu0 %v435
  %924 = vmatmul.bf16.gmra.mxu0 %v344
  %v925 = vpop.f32.mrf.mxu0
  %v926 = vadd.f32 %v84, %v925
  %v927 = vpop.f32.mrf.mxu0
  %928 = vdwg.mxu0
  %929 = vmatpush.bf16.msra.mxu0 0
  %930 = vmatpush.bf16.msra.mxu0 0
  %931 = vmatpush.bf16.msra.mxu0 0
  %932 = vmatpush.bf16.msra.mxu0 0
  %933 = vmatpush.bf16.msra.mxu0 0
  %934 = vmatpush.bf16.msra.mxu0 0
  %935 = vmatpush.bf16.msra.mxu0 0
  %936 = vmatpush.bf16.msra.mxu0 %v438
  %937 = vmatmul.bf16.gmra.mxu0 %v344
  %v938 = vpop.f32.mrf.mxu0
  %v939 = vadd.f32 %v84, %v938
  %v940 = vpop.f32.mrf.mxu0
  %941 = vdwg.mxu0
  %942 = vmatpush.bf16.msra.mxu0 0
  %943 = vmatpush.bf16.msra.mxu0 0
  %944 = vmatpush.bf16.msra.mxu0 0
  %945 = vmatpush.bf16.msra.mxu0 0
  %946 = vmatpush.bf16.msra.mxu0 0
  %947 = vmatpush.bf16.msra.mxu0 0
  %948 = vmatpush.bf16.msra.mxu0 0
  %949 = vmatpush.bf16.msra.mxu0 %v441
  %950 = vmatmul.bf16.gmra.mxu0 %v344
  %v951 = vpop.f32.mrf.mxu0
  %v952 = vadd.f32 %v84, %v951
  %v953 = vpop.f32.mrf.mxu0
  %954 = vdwg.mxu0
  %955 = vmatpush.bf16.msra.mxu0 0
  %956 = vmatpush.bf16.msra.mxu0 0
  %957 = vmatpush.bf16.msra.mxu0 0
  %958 = vmatpush.bf16.msra.mxu0 0
  %959 = vmatpush.bf16.msra.mxu0 0
  %960 = vmatpush.bf16.msra.mxu0 0
  %961 = vmatpush.bf16.msra.mxu0 0
  %962 = vmatpush.bf16.msra.mxu0 %v444
  %963 = vmatmul.bf16.gmra.mxu0 %v344
  %v964 = vpop.f32.mrf.mxu0
  %v965 = vadd.f32 %v84, %v964
  %v966 = vpop.f32.mrf.mxu0
  %967 = vdwg.mxu0
  %968 = vmatpush.bf16.msra.mxu0 0
  %969 = vmatpush.bf16.msra.mxu0 0
  %970 = vmatpush.bf16.msra.mxu0 0
  %971 = vmatpush.bf16.msra.mxu0 0
  %972 = vmatpush.bf16.msra.mxu0 0
  %973 = vmatpush.bf16.msra.mxu0 0
  %974 = vmatpush.bf16.msra.mxu0 0
  %975 = vmatpush.bf16.msra.mxu0 %v447
  %976 = vmatmul.bf16.gmra.mxu0 %v344
  %v977 = vpop.f32.mrf.mxu0
  %v978 = vadd.f32 %v84, %v977
  %v979 = vpop.f32.mrf.mxu0
  %980 = vdwg.mxu0
  %981 = vmatpush.bf16.msra.mxu0 0
  %982 = vmatpush.bf16.msra.mxu0 0
  %983 = vmatpush.bf16.msra.mxu0 0
  %984 = vmatpush.bf16.msra.mxu0 0
  %985 = vmatpush.bf16.msra.mxu0 0
  %986 = vmatpush.bf16.msra.mxu0 0
  %987 = vmatpush.bf16.msra.mxu0 0
  %988 = vmatpush.bf16.msra.mxu0 %v450
  %989 = vmatmul.bf16.gmra.mxu0 %v344
  %v990 = vpop.f32.mrf.mxu0
  %v991 = vadd.f32 %v84, %v990
  %v992 = vpop.f32.mrf.mxu0
  %993 = vdwg.mxu0
  %994 = vmatpush.bf16.msra.mxu0 0
  %995 = vmatpush.bf16.msra.mxu0 0
  %996 = vmatpush.bf16.msra.mxu0 0
  %997 = vmatpush.bf16.msra.mxu0 0
  %998 = vmatpush.bf16.msra.mxu0 0
  %999 = vmatpush.bf16.msra.mxu0 0
  %1000 = vmatpush.bf16.msra.mxu0 0
  %1001 = vmatpush.bf16.msra.mxu0 %v453
  %1002 = vmatmul.bf16.gmra.mxu0 %v344
  %v1003 = vpop.f32.mrf.mxu0
  %v1004 = vadd.f32 %v84, %v1003
  %v1005 = vpop.f32.mrf.mxu0
  %1006 = vdwg.mxu0
  %1007 = vmatpush.bf16.msra.mxu0 0
  %1008 = vmatpush.bf16.msra.mxu0 0
  %1009 = vmatpush.bf16.msra.mxu0 0
  %1010 = vmatpush.bf16.msra.mxu0 0
  %1011 = vmatpush.bf16.msra.mxu0 0
  %1012 = vmatpush.bf16.msra.mxu0 0
  %1013 = vmatpush.bf16.msra.mxu0 0
  %1014 = vmatpush.bf16.msra.mxu0 %v456
  %1015 = vmatmul.bf16.gmra.mxu0 %v344
  %v1016 = vpop.f32.mrf.mxu0
  %v1017 = vadd.f32 %v84, %v1016
  %v1018 = vpop.f32.mrf.mxu0
  %1019 = vdwg.mxu0
  %1020 = vmatpush.bf16.msra.mxu0 0
  %1021 = vmatpush.bf16.msra.mxu0 0
  %1022 = vmatpush.bf16.msra.mxu0 0
  %1023 = vmatpush.bf16.msra.mxu0 0
  %1024 = vmatpush.bf16.msra.mxu0 0
  %1025 = vmatpush.bf16.msra.mxu0 0
  %1026 = vmatpush.bf16.msra.mxu0 0
  %1027 = vmatpush.bf16.msra.mxu0 %v459
  %1028 = vmatmul.bf16.gmra.mxu0 %v344
  %v1029 = vpop.f32.mrf.mxu0
  %v1030 = vadd.f32 %v84, %v1029
  %v1031 = vpop.f32.mrf.mxu0
  %1032 = vdwg.mxu0
  %1033 = vmatpush.bf16.msra.mxu0 0
  %1034 = vmatpush.bf16.msra.mxu0 0
  %1035 = vmatpush.bf16.msra.mxu0 0
  %1036 = vmatpush.bf16.msra.mxu0 0
  %1037 = vmatpush.bf16.msra.mxu0 0
  %1038 = vmatpush.bf16.msra.mxu0 0
  %1039 = vmatpush.bf16.msra.mxu0 0
  %1040 = vmatpush.bf16.msra.mxu0 %v462
  %1041 = vmatmul.bf16.gmra.mxu0 %v344
  %v1042 = vpop.f32.mrf.mxu0
  %v1043 = vadd.f32 %v84, %v1042
  %v1044 = vpop.f32.mrf.mxu0
  %1045 = vdwg.mxu0
  %1046 = vmatpush.bf16.msra.mxu0 0
  %1047 = vmatpush.bf16.msra.mxu0 0
  %1048 = vmatpush.bf16.msra.mxu0 0
  %1049 = vmatpush.bf16.msra.mxu0 0
  %1050 = vmatpush.bf16.msra.mxu0 0
  %1051 = vmatpush.bf16.msra.mxu0 0
  %1052 = vmatpush.bf16.msra.mxu0 0
  %1053 = vmatpush.bf16.msra.mxu0 %v465
  %1054 = vmatmul.bf16.gmra.mxu0 %v344
  %v1055 = vpop.f32.mrf.mxu0
  %v1056 = vadd.f32 %v84, %v1055
  %v1057 = vpop.f32.mrf.mxu0
  %1058 = vdwg.mxu0
  %1059 = vmatpush.bf16.msra.mxu0 0
  %1060 = vmatpush.bf16.msra.mxu0 0
  %1061 = vmatpush.bf16.msra.mxu0 0
  %1062 = vmatpush.bf16.msra.mxu0 0
  %1063 = vmatpush.bf16.msra.mxu0 0
  %1064 = vmatpush.bf16.msra.mxu0 0
  %1065 = vmatpush.bf16.msra.mxu0 0
  %1066 = vmatpush.bf16.msra.mxu0 %v468
  %1067 = vmatmul.bf16.gmra.mxu0 %v344
  %v1068 = vpop.f32.mrf.mxu0
  %v1069 = vadd.f32 %v84, %v1068
  %v1070 = vpop.f32.mrf.mxu0
  %1071 = vdwg.mxu0
  %1072 = vmatpush.bf16.msra.mxu0 0
  %1073 = vmatpush.bf16.msra.mxu0 0
  %1074 = vmatpush.bf16.msra.mxu0 0
  %1075 = vmatpush.bf16.msra.mxu0 0
  %1076 = vmatpush.bf16.msra.mxu0 0
  %1077 = vmatpush.bf16.msra.mxu0 0
  %1078 = vmatpush.bf16.msra.mxu0 0
  %1079 = vmatpush.bf16.msra.mxu0 %v471
  %1080 = vmatmul.bf16.gmra.mxu0 %v344
  %v1081 = vpop.f32.mrf.mxu0
  %v1082 = vadd.f32 %v84, %v1081
  %v1083 = vpop.f32.mrf.mxu0
  %1084 = vdwg.mxu0
  %1085 = vmatpush.bf16.msra.mxu0 0
  %1086 = vmatpush.bf16.msra.mxu0 0
  %1087 = vmatpush.bf16.msra.mxu0 0
  %1088 = vmatpush.bf16.msra.mxu0 0
  %1089 = vmatpush.bf16.msra.mxu0 0
  %1090 = vmatpush.bf16.msra.mxu0 0
  %1091 = vmatpush.bf16.msra.mxu0 0
  %1092 = vmatpush.bf16.msra.mxu0 %v474
  %1093 = vmatmul.bf16.gmra.mxu0 %v344
  %v1094 = vpop.f32.mrf.mxu0
  %v1095 = vadd.f32 %v84, %v1094
  %v1096 = vpop.f32.mrf.mxu0
  %1097 = vdwg.mxu0
  %1098 = vmatpush.bf16.msra.mxu0 0
  %1099 = vmatpush.bf16.msra.mxu0 0
  %1100 = vmatpush.bf16.msra.mxu0 0
  %1101 = vmatpush.bf16.msra.mxu0 0
  %1102 = vmatpush.bf16.msra.mxu0 0
  %1103 = vmatpush.bf16.msra.mxu0 0
  %1104 = vmatpush.bf16.msra.mxu0 0
  %1105 = vmatpush.bf16.msra.mxu0 %v477
  %1106 = vmatmul.bf16.gmra.mxu0 %v344
  %v1107 = vpop.f32.mrf.mxu0
  %v1108 = vadd.f32 %v84, %v1107
  %v1109 = vpop.f32.mrf.mxu0
  %1110 = vdwg.mxu0
  %1111 = vmatpush.bf16.msra.mxu0 0
  %1112 = vmatpush.bf16.msra.mxu0 0
  %1113 = vmatpush.bf16.msra.mxu0 0
  %1114 = vmatpush.bf16.msra.mxu0 0
  %1115 = vmatpush.bf16.msra.mxu0 0
  %1116 = vmatpush.bf16.msra.mxu0 0
  %1117 = vmatpush.bf16.msra.mxu0 0
  %1118 = vmatpush.bf16.msra.mxu0 %v480
  %1119 = vmatmul.bf16.gmra.mxu0 %v344
  %v1120 = vpop.f32.mrf.mxu0
  %v1121 = vadd.f32 %v84, %v1120
  %v1122 = vpop.f32.mrf.mxu0
  %1123 = vdwg.mxu0
  %1124 = vmatpush.bf16.msra.mxu0 0
  %1125 = vmatpush.bf16.msra.mxu0 0
  %1126 = vmatpush.bf16.msra.mxu0 0
  %1127 = vmatpush.bf16.msra.mxu0 0
  %1128 = vmatpush.bf16.msra.mxu0 0
  %1129 = vmatpush.bf16.msra.mxu0 0
  %1130 = vmatpush.bf16.msra.mxu0 0
  %1131 = vmatpush.bf16.msra.mxu0 %v483
  %1132 = vmatmul.bf16.gmra.mxu0 %v344
  %v1133 = vpop.f32.mrf.mxu0
  %v1134 = vadd.f32 %v84, %v1133
  %v1135 = vpop.f32.mrf.mxu0
  %1136 = vdwg.mxu0
  %1137 = vmatpush.bf16.msra.mxu0 0
  %1138 = vmatpush.bf16.msra.mxu0 0
  %1139 = vmatpush.bf16.msra.mxu0 0
  %1140 = vmatpush.bf16.msra.mxu0 0
  %1141 = vmatpush.bf16.msra.mxu0 0
  %1142 = vmatpush.bf16.msra.mxu0 0
  %1143 = vmatpush.bf16.msra.mxu0 0
  %1144 = vmatpush.bf16.msra.mxu0 %v486
  %1145 = vmatmul.bf16.gmra.mxu0 %v344
  %v1146 = vpop.f32.mrf.mxu0
  %v1147 = vadd.f32 %v84, %v1146
  %v1148 = vpop.f32.mrf.mxu0
  %1149 = vdwg.mxu0
  %1150 = vmatpush.bf16.msra.mxu0 0
  %1151 = vmatpush.bf16.msra.mxu0 0
  %1152 = vmatpush.bf16.msra.mxu0 0
  %1153 = vmatpush.bf16.msra.mxu0 0
  %1154 = vmatpush.bf16.msra.mxu0 0
  %1155 = vmatpush.bf16.msra.mxu0 0
  %1156 = vmatpush.bf16.msra.mxu0 0
  %1157 = vmatpush.bf16.msra.mxu0 %v489
  %1158 = vmatmul.bf16.gmra.mxu0 %v344
  %v1159 = vpop.f32.mrf.mxu0
  %v1160 = vadd.f32 %v84, %v1159
  %v1161 = vpop.f32.mrf.mxu0
  %1162 = vdwg.mxu0
  %1163 = vmatpush.bf16.msra.mxu0 0
  %1164 = vmatpush.bf16.msra.mxu0 0
  %1165 = vmatpush.bf16.msra.mxu0 0
  %1166 = vmatpush.bf16.msra.mxu0 0
  %1167 = vmatpush.bf16.msra.mxu0 0
  %1168 = vmatpush.bf16.msra.mxu0 0
  %1169 = vmatpush.bf16.msra.mxu0 0
  %1170 = vmatpush.bf16.msra.mxu0 %v492
  %1171 = vmatmul.bf16.gmra.mxu0 %v344
  %v1172 = vpop.f32.mrf.mxu0
  %v1173 = vadd.f32 %v84, %v1172
  %v1174 = vpop.f32.mrf.mxu0
  %1175 = vdwg.mxu0
  %1176 = vmatpush.bf16.msra.mxu0 0
  %1177 = vmatpush.bf16.msra.mxu0 0
  %1178 = vmatpush.bf16.msra.mxu0 0
  %1179 = vmatpush.bf16.msra.mxu0 0
  %1180 = vmatpush.bf16.msra.mxu0 0
  %1181 = vmatpush.bf16.msra.mxu0 0
  %1182 = vmatpush.bf16.msra.mxu0 0
  %1183 = vmatpush.bf16.msra.mxu0 %v495
  %1184 = vmatmul.bf16.gmra.mxu0 %v344
  %v1185 = vpop.f32.mrf.mxu0
  %v1186 = vadd.f32 %v84, %v1185
  %v1187 = vpop.f32.mrf.mxu0
  %1188 = vdwg.mxu0
  %1189 = vmatpush.bf16.msra.mxu0 0
  %1190 = vmatpush.bf16.msra.mxu0 0
  %1191 = vmatpush.bf16.msra.mxu0 0
  %1192 = vmatpush.bf16.msra.mxu0 0
  %1193 = vmatpush.bf16.msra.mxu0 0
  %1194 = vmatpush.bf16.msra.mxu0 0
  %1195 = vmatpush.bf16.msra.mxu0 0
  %1196 = vmatpush.bf16.msra.mxu0 %v498
  %1197 = vmatmul.bf16.gmra.mxu0 %v344
  %v1198 = vpop.f32.mrf.mxu0
  %v1199 = vadd.f32 %v84, %v1198
  %v1200 = vpop.f32.mrf.mxu0
  %1201 = vdwg.mxu0
  %1202 = vmatpush.bf16.msra.mxu0 0
  %1203 = vmatpush.bf16.msra.mxu0 0
  %1204 = vmatpush.bf16.msra.mxu0 0
  %1205 = vmatpush.bf16.msra.mxu0 0
  %1206 = vmatpush.bf16.msra.mxu0 0
  %1207 = vmatpush.bf16.msra.mxu0 0
  %1208 = vmatpush.bf16.msra.mxu0 0
  %1209 = vmatpush.bf16.msra.mxu0 %v501
  %1210 = vmatmul.bf16.gmra.mxu0 %v344
  %v1211 = vpop.f32.mrf.mxu0
  %v1212 = vadd.f32 %v84, %v1211
  %v1213 = vpop.f32.mrf.mxu0
  %1214 = vdwg.mxu0
  %1215 = vmatpush.bf16.msra.mxu0 0
  %1216 = vmatpush.bf16.msra.mxu0 0
  %1217 = vmatpush.bf16.msra.mxu0 0
  %1218 = vmatpush.bf16.msra.mxu0 0
  %1219 = vmatpush.bf16.msra.mxu0 0
  %1220 = vmatpush.bf16.msra.mxu0 0
  %1221 = vmatpush.bf16.msra.mxu0 0
  %1222 = vmatpush.bf16.msra.mxu0 %v504
  %1223 = vmatmul.bf16.gmra.mxu0 %v344
  %v1224 = vpop.f32.mrf.mxu0
  %v1225 = vadd.f32 %v84, %v1224
  %v1226 = vpop.f32.mrf.mxu0
  %1227 = vdwg.mxu0
  %1228 = vmatpush.bf16.msra.mxu0 0
  %1229 = vmatpush.bf16.msra.mxu0 0
  %1230 = vmatpush.bf16.msra.mxu0 0
  %1231 = vmatpush.bf16.msra.mxu0 0
  %1232 = vmatpush.bf16.msra.mxu0 0
  %1233 = vmatpush.bf16.msra.mxu0 0
  %1234 = vmatpush.bf16.msra.mxu0 0
  %1235 = vmatpush.bf16.msra.mxu0 %v507
  %1236 = vmatmul.bf16.gmra.mxu0 %v344
  %v1237 = vpop.f32.mrf.mxu0
  %v1238 = vadd.f32 %v84, %v1237
  %v1239 = vpop.f32.mrf.mxu0
  %1240 = vdwg.mxu0
  %1241 = vmatpush.bf16.msra.mxu0 0
  %1242 = vmatpush.bf16.msra.mxu0 0
  %1243 = vmatpush.bf16.msra.mxu0 0
  %1244 = vmatpush.bf16.msra.mxu0 0
  %1245 = vmatpush.bf16.msra.mxu0 0
  %1246 = vmatpush.bf16.msra.mxu0 0
  %1247 = vmatpush.bf16.msra.mxu0 0
  %1248 = vmatpush.bf16.msra.mxu0 %v510
  %1249 = vmatmul.bf16.gmra.mxu0 %v344
  %v1250 = vpop.f32.mrf.mxu0
  %v1251 = vadd.f32 %v84, %v1250
  %v1252 = vpop.f32.mrf.mxu0
  %1253 = vdwg.mxu0
  %1254 = vmatpush.bf16.msra.mxu0 0
  %1255 = vmatpush.bf16.msra.mxu0 0
  %1256 = vmatpush.bf16.msra.mxu0 0
  %1257 = vmatpush.bf16.msra.mxu0 0
  %1258 = vmatpush.bf16.msra.mxu0 0
  %1259 = vmatpush.bf16.msra.mxu0 0
  %1260 = vmatpush.bf16.msra.mxu0 0
  %1261 = vmatpush.bf16.msra.mxu0 %v513
  %1262 = vmatmul.bf16.gmra.mxu0 %v344
  %v1263 = vpop.f32.mrf.mxu0
  %v1264 = vadd.f32 %v84, %v1263
  %v1265 = vpop.f32.mrf.mxu0
  %1266 = vdwg.mxu0
  %1267 = vmatpush.bf16.msra.mxu0 0
  %1268 = vmatpush.bf16.msra.mxu0 0
  %1269 = vmatpush.bf16.msra.mxu0 0
  %1270 = vmatpush.bf16.msra.mxu0 0
  %1271 = vmatpush.bf16.msra.mxu0 0
  %1272 = vmatpush.bf16.msra.mxu0 0
  %1273 = vmatpush.bf16.msra.mxu0 0
  %1274 = vmatpush.bf16.msra.mxu0 %v516
  %1275 = vmatmul.bf16.gmra.mxu0 %v344
  %v1276 = vpop.f32.mrf.mxu0
  %v1277 = vadd.f32 %v84, %v1276
  %v1278 = vpop.f32.mrf.mxu0
  %1279 = vdwg.mxu0
  %1280 = vmatpush.bf16.msra.mxu0 0
  %1281 = vmatpush.bf16.msra.mxu0 0
  %1282 = vmatpush.bf16.msra.mxu0 0
  %1283 = vmatpush.bf16.msra.mxu0 0
  %1284 = vmatpush.bf16.msra.mxu0 0
  %1285 = vmatpush.bf16.msra.mxu0 0
  %1286 = vmatpush.bf16.msra.mxu0 0
  %1287 = vmatpush.bf16.msra.mxu0 %v519
  %1288 = vmatmul.bf16.gmra.mxu0 %v344
  %v1289 = vpop.f32.mrf.mxu0
  %v1290 = vadd.f32 %v84, %v1289
  %v1291 = vpop.f32.mrf.mxu0
  %1292 = vdwg.mxu0
  %1293 = vmatpush.bf16.msra.mxu0 0
  %1294 = vmatpush.bf16.msra.mxu0 0
  %1295 = vmatpush.bf16.msra.mxu0 0
  %1296 = vmatpush.bf16.msra.mxu0 0
  %1297 = vmatpush.bf16.msra.mxu0 0
  %1298 = vmatpush.bf16.msra.mxu0 0
  %1299 = vmatpush.bf16.msra.mxu0 0
  %1300 = vmatpush.bf16.msra.mxu0 %v522
  %1301 = vmatmul.bf16.gmra.mxu0 %v344
  %v1302 = vpop.f32.mrf.mxu0
  %v1303 = vadd.f32 %v84, %v1302
  %v1304 = vpop.f32.mrf.mxu0
  %1305 = vdwg.mxu0
  %1306 = vmatpush.bf16.msra.mxu0 0
  %1307 = vmatpush.bf16.msra.mxu0 0
  %1308 = vmatpush.bf16.msra.mxu0 0
  %1309 = vmatpush.bf16.msra.mxu0 0
  %1310 = vmatpush.bf16.msra.mxu0 0
  %1311 = vmatpush.bf16.msra.mxu0 0
  %1312 = vmatpush.bf16.msra.mxu0 0
  %1313 = vmatpush.bf16.msra.mxu0 %v525
  %1314 = vmatmul.bf16.gmra.mxu0 %v344
  %v1315 = vpop.f32.mrf.mxu0
  %v1316 = vadd.f32 %v84, %v1315
  %v1317 = vpop.f32.mrf.mxu0
  %1318 = vdwg.mxu0
  %1319 = vmatpush.bf16.msra.mxu0 0
  %1320 = vmatpush.bf16.msra.mxu0 0
  %1321 = vmatpush.bf16.msra.mxu0 0
  %1322 = vmatpush.bf16.msra.mxu0 0
  %1323 = vmatpush.bf16.msra.mxu0 0
  %1324 = vmatpush.bf16.msra.mxu0 0
  %1325 = vmatpush.bf16.msra.mxu0 0
  %1326 = vmatpush.bf16.msra.mxu0 %v528
  %1327 = vmatmul.bf16.gmra.mxu0 %v344
  %v1328 = vpop.f32.mrf.mxu0
  %v1329 = vadd.f32 %v84, %v1328
  %v1330 = vpop.f32.mrf.mxu0
  %1331 = vdwg.mxu0
  %1332 = vmatpush.bf16.msra.mxu0 0
  %1333 = vmatpush.bf16.msra.mxu0 0
  %1334 = vmatpush.bf16.msra.mxu0 0
  %1335 = vmatpush.bf16.msra.mxu0 0
  %1336 = vmatpush.bf16.msra.mxu0 0
  %1337 = vmatpush.bf16.msra.mxu0 0
  %1338 = vmatpush.bf16.msra.mxu0 0
  %1339 = vmatpush.bf16.msra.mxu0 %v531
  %1340 = vmatmul.bf16.gmra.mxu0 %v344
  %v1341 = vpop.f32.mrf.mxu0
  %v1342 = vadd.f32 %v84, %v1341
  %v1343 = vpop.f32.mrf.mxu0
  %1344 = vdwg.mxu0
  %1345 = vmatpush.bf16.msra.mxu0 0
  %1346 = vmatpush.bf16.msra.mxu0 0
  %1347 = vmatpush.bf16.msra.mxu0 0
  %1348 = vmatpush.bf16.msra.mxu0 0
  %1349 = vmatpush.bf16.msra.mxu0 0
  %1350 = vmatpush.bf16.msra.mxu0 0
  %1351 = vmatpush.bf16.msra.mxu0 0
  %1352 = vmatpush.bf16.msra.mxu0 %v534
  %1353 = vmatmul.bf16.gmra.mxu0 %v344
  %v1354 = vpop.f32.mrf.mxu0
  %v1355 = vadd.f32 %v84, %v1354
  %v1356 = vpop.f32.mrf.mxu0
  %1357 = vdwg.mxu0
  %1358 = vmatpush.bf16.msra.mxu0 0
  %1359 = vmatpush.bf16.msra.mxu0 0
  %1360 = vmatpush.bf16.msra.mxu0 0
  %1361 = vmatpush.bf16.msra.mxu0 0
  %1362 = vmatpush.bf16.msra.mxu0 0
  %1363 = vmatpush.bf16.msra.mxu0 0
  %1364 = vmatpush.bf16.msra.mxu0 0
  %1365 = vmatpush.bf16.msra.mxu0 %v537
  %1366 = vmatmul.bf16.gmra.mxu0 %v344
  %v1367 = vpop.f32.mrf.mxu0
  %v1368 = vadd.f32 %v84, %v1367
  %v1369 = vpop.f32.mrf.mxu0
  %1370 = vdwg.mxu0
  %v1371 = vmax.f32 %v549, 0.0
  %v1372 = vmax.f32 %v562, 0.0
  %v1373 = vmax.f32 %v575, 0.0
  %v1374 = vmax.f32 %v588, 0.0
  %v1375 = vmax.f32 %v601, 0.0
  %v1376 = vmax.f32 %v614, 0.0
  %v1377 = vmax.f32 %v627, 0.0
  %v1378 = vmax.f32 %v640, 0.0
  %v1379 = vmax.f32 %v653, 0.0
  %v1380 = vmax.f32 %v666, 0.0
  %v1381 = vmax.f32 %v679, 0.0
  %v1382 = vmax.f32 %v692, 0.0
  %v1383 = vmax.f32 %v705, 0.0
  %v1384 = vmax.f32 %v718, 0.0
  %v1385 = vmax.f32 %v731, 0.0
  %v1386 = vmax.f32 %v744, 0.0
  %v1387 = vmax.f32 %v757, 0.0
  %v1388 = vmax.f32 %v770, 0.0
  %v1389 = vmax.f32 %v783, 0.0
  %v1390 = vmax.f32 %v796, 0.0
  %v1391 = vmax.f32 %v809, 0.0
  %v1392 = vmax.f32 %v822, 0.0
  %v1393 = vmax.f32 %v835, 0.0
  %v1394 = vmax.f32 %v848, 0.0
  %v1395 = vmax.f32 %v861, 0.0
  %v1396 = vmax.f32 %v874, 0.0
  %v1397 = vmax.f32 %v887, 0.0
  %v1398 = vmax.f32 %v900, 0.0
  %v1399 = vmax.f32 %v913, 0.0
  %v1400 = vmax.f32 %v926, 0.0
  %v1401 = vmax.f32 %v939, 0.0
  %v1402 = vmax.f32 %v952, 0.0
  %v1403 = vmax.f32 %v965, 0.0
  %v1404 = vmax.f32 %v978, 0.0
  %v1405 = vmax.f32 %v991, 0.0
  %v1406 = vmax.f32 %v1004, 0.0
  %v1407 = vmax.f32 %v1017, 0.0
  %v1408 = vmax.f32 %v1030, 0.0
  %v1409 = vmax.f32 %v1043, 0.0
  %v1410 = vmax.f32 %v1056, 0.0
  %v1411 = vmax.f32 %v1069, 0.0
  %v1412 = vmax.f32 %v1082, 0.0
  %v1413 = vmax.f32 %v1095, 0.0
  %v1414 = vmax.f32 %v1108, 0.0
  %v1415 = vmax.f32 %v1121, 0.0
  %v1416 = vmax.f32 %v1134, 0.0
  %v1417 = vmax.f32 %v1147, 0.0
  %v1418 = vmax.f32 %v1160, 0.0
  %v1419 = vmax.f32 %v1173, 0.0
  %v1420 = vmax.f32 %v1186, 0.0
  %v1421 = vmax.f32 %v1199, 0.0
  %v1422 = vmax.f32 %v1212, 0.0
  %v1423 = vmax.f32 %v1225, 0.0
  %v1424 = vmax.f32 %v1238, 0.0
  %v1425 = vmax.f32 %v1251, 0.0
  %v1426 = vmax.f32 %v1264, 0.0
  %v1427 = vmax.f32 %v1277, 0.0
  %v1428 = vmax.f32 %v1290, 0.0
  %v1429 = vmax.f32 %v1303, 0.0
  %v1430 = vmax.f32 %v1316, 0.0
  %v1431 = vmax.f32 %v1329, 0.0
  %v1432 = vmax.f32 %v1342, 0.0
  %v1433 = vmax.f32 %v1355, 0.0
  %v1434 = vmax.f32 %v1368, 0.0
  %v1435 = vpack.c.bf16 %v1372, %v1371
  %v1436 = vpack.c.bf16 %v1374, %v1373
  %v1437 = vpack.c.bf16 %v1376, %v1375
  %v1438 = vpack.c.bf16 %v1378, %v1377
  %v1439 = vpack.c.bf16 %v1380, %v1379
  %v1440 = vpack.c.bf16 %v1382, %v1381
  %v1441 = vpack.c.bf16 %v1384, %v1383
  %v1442 = vpack.c.bf16 %v1386, %v1385
  %v1443 = vpack.c.bf16 %v1388, %v1387
  %v1444 = vpack.c.bf16 %v1390, %v1389
  %v1445 = vpack.c.bf16 %v1392, %v1391
  %v1446 = vpack.c.bf16 %v1394, %v1393
  %v1447 = vpack.c.bf16 %v1396, %v1395
  %v1448 = vpack.c.bf16 %v1398, %v1397
  %v1449 = vpack.c.bf16 %v1400, %v1399
  %v1450 = vpack.c.bf16 %v1402, %v1401
  %v1451 = vpack.c.bf16 %v1404, %v1403
  %v1452 = vpack.c.bf16 %v1406, %v1405
  %v1453 = vpack.c.bf16 %v1408, %v1407
  %v1454 = vpack.c.bf16 %v1410, %v1409
  %v1455 = vpack.c.bf16 %v1412, %v1411
  %v1456 = vpack.c.bf16 %v1414, %v1413
  %v1457 = vpack.c.bf16 %v1416, %v1415
  %v1458 = vpack.c.bf16 %v1418, %v1417
  %v1459 = vpack.c.bf16 %v1420, %v1419
  %v1460 = vpack.c.bf16 %v1422, %v1421
  %v1461 = vpack.c.bf16 %v1424, %v1423
  %v1462 = vpack.c.bf16 %v1426, %v1425
  %v1463 = vpack.c.bf16 %v1428, %v1427
  %v1464 = vpack.c.bf16 %v1430, %v1429
  %v1465 = vpack.c.bf16 %v1432, %v1431
  %v1466 = vpack.c.bf16 %v1434, %v1433
  %v1499 = vrot.slane %v1435, 2
  %v1500 = vrot.slane %v1436, 4
  %v1501 = vrot.slane %v1436, 6
  %v1502 = vrot.slane %v1437, 2
  %v1503 = vrot.slane %v1438, 4
  %v1504 = vrot.slane %v1438, 6
  %v1505 = vrot.slane %v1439, 2
  %v1506 = vrot.slane %v1440, 4
  %v1507 = vrot.slane %v1440, 6
  %v1508 = vrot.slane %v1441, 2
  %v1509 = vrot.slane %v1442, 4
  %v1510 = vrot.slane %v1442, 6
  %v1511 = vrot.slane %v1443, 2
  %v1512 = vrot.slane %v1444, 4
  %v1513 = vrot.slane %v1444, 6
  %v1514 = vrot.slane %v1445, 2
  %v1515 = vrot.slane %v1446, 4
  %v1516 = vrot.slane %v1446, 6
  %v1517 = vrot.slane %v1447, 2
  %v1518 = vrot.slane %v1448, 4
  %v1519 = vrot.slane %v1448, 6
  %v1520 = vrot.slane %v1449, 2
  %v1521 = vrot.slane %v1450, 4
  %v1522 = vrot.slane %v1450, 6
  %v1523 = vrot.slane %v1451, 2
  %v1524 = vrot.slane %v1452, 4
  %v1525 = vrot.slane %v1452, 6
  %v1526 = vrot.slane %v1453, 2
  %v1527 = vrot.slane %v1454, 4
  %v1528 = vrot.slane %v1454, 6
  %v1529 = vrot.slane %v1455, 2
  %v1530 = vrot.slane %v1456, 4
  %v1531 = vrot.slane %v1456, 6
  %v1532 = vrot.slane %v1457, 2
  %v1533 = vrot.slane %v1458, 4
  %v1534 = vrot.slane %v1458, 6
  %v1535 = vrot.slane %v1459, 2
  %v1536 = vrot.slane %v1460, 4
  %v1537 = vrot.slane %v1460, 6
  %v1538 = vrot.slane %v1461, 2
  %v1539 = vrot.slane %v1462, 4
  %v1540 = vrot.slane %v1462, 6
  %v1541 = vrot.slane %v1463, 2
  %v1542 = vrot.slane %v1464, 4
  %v1543 = vrot.slane %v1464, 6
  %v1544 = vrot.slane %v1465, 2
  %v1545 = vrot.slane %v1466, 4
  %v1546 = vrot.slane %v1466, 6
  %vm1547 = vcmask 1041408
  %v1550 = vsel %vm1547, %v1435, %v1499
  %vm1551 = vcmask 1045508
  %v1554 = vsel %vm1551, %v1500, %v1501
  %vm1555 = vcmask 1043456
  %v1556 = vsel %vm1555, %v1550, %v1554
  %v1559 = vsel %vm1547, %v1437, %v1502
  %v1562 = vsel %vm1551, %v1503, %v1504
  %v1563 = vsel %vm1555, %v1559, %v1562
  %v1566 = vsel %vm1547, %v1439, %v1505
  %v1569 = vsel %vm1551, %v1506, %v1507
  %v1570 = vsel %vm1555, %v1566, %v1569
  %v1573 = vsel %vm1547, %v1441, %v1508
  %v1576 = vsel %vm1551, %v1509, %v1510
  %v1577 = vsel %vm1555, %v1573, %v1576
  %v1580 = vsel %vm1547, %v1443, %v1511
  %v1583 = vsel %vm1551, %v1512, %v1513
  %v1584 = vsel %vm1555, %v1580, %v1583
  %v1587 = vsel %vm1547, %v1445, %v1514
  %v1590 = vsel %vm1551, %v1515, %v1516
  %v1591 = vsel %vm1555, %v1587, %v1590
  %v1594 = vsel %vm1547, %v1447, %v1517
  %v1597 = vsel %vm1551, %v1518, %v1519
  %v1598 = vsel %vm1555, %v1594, %v1597
  %v1601 = vsel %vm1547, %v1449, %v1520
  %v1604 = vsel %vm1551, %v1521, %v1522
  %v1605 = vsel %vm1555, %v1601, %v1604
  %v1608 = vsel %vm1547, %v1451, %v1523
  %v1611 = vsel %vm1551, %v1524, %v1525
  %v1612 = vsel %vm1555, %v1608, %v1611
  %v1615 = vsel %vm1547, %v1453, %v1526
  %v1618 = vsel %vm1551, %v1527, %v1528
  %v1619 = vsel %vm1555, %v1615, %v1618
  %v1622 = vsel %vm1547, %v1455, %v1529
  %v1625 = vsel %vm1551, %v1530, %v1531
  %v1626 = vsel %vm1555, %v1622, %v1625
  %v1629 = vsel %vm1547, %v1457, %v1532
  %v1632 = vsel %vm1551, %v1533, %v1534
  %v1633 = vsel %vm1555, %v1629, %v1632
  %v1636 = vsel %vm1547, %v1459, %v1535
  %v1639 = vsel %vm1551, %v1536, %v1537
  %v1640 = vsel %vm1555, %v1636, %v1639
  %v1643 = vsel %vm1547, %v1461, %v1538
  %v1646 = vsel %vm1551, %v1539, %v1540
  %v1647 = vsel %vm1555, %v1643, %v1646
  %v1650 = vsel %vm1547, %v1463, %v1541
  %v1653 = vsel %vm1551, %v1542, %v1543
  %v1654 = vsel %vm1555, %v1650, %v1653
  %v1657 = vsel %vm1547, %v1465, %v1544
  %v1660 = vsel %vm1551, %v1545, %v1546
  %v1661 = vsel %vm1555, %v1657, %v1660
  %1678 = vst [vmem:[#allocation2] sm:$0xff] %v1556
  %1679 = vst [vmem:[#allocation2 + $0x8] sm:$0xff] %v1563
  %1680 = vst [vmem:[#allocation2 + $0x10] sm:$0xff] %v1570
  %1681 = vst [vmem:[#allocation2 + $0x18] sm:$0xff] %v1577
  %1682 = vst [vmem:[#allocation2 + $0x20] sm:$0xff] %v1584
  %1683 = vst [vmem:[#allocation2 + $0x28] sm:$0xff] %v1591
  %1684 = vst [vmem:[#allocation2 + $0x30] sm:$0xff] %v1598
  %1685 = vst [vmem:[#allocation2 + $0x38] sm:$0xff] %v1605
  %1686 = vst [vmem:[#allocation2 + $0x40] sm:$0xff] %v1612
  %1687 = vst [vmem:[#allocation2 + $0x48] sm:$0xff] %v1619
  %1688 = vst [vmem:[#allocation2 + $0x50] sm:$0xff] %v1626
  %1689 = vst [vmem:[#allocation2 + $0x58] sm:$0xff] %v1633
  %1690 = vst [vmem:[#allocation2 + $0x60] sm:$0xff] %v1640
  %1691 = vst [vmem:[#allocation2 + $0x68] sm:$0xff] %v1647
  %1692 = vst [vmem:[#allocation2 + $0x70] sm:$0xff] %v1654
  %1693 = vst [vmem:[#allocation2 + $0x78] sm:$0xff] %v1661
  %v1694 = vld [vmem:[%s1 + $0x4] sm:$0xf]
  %v1695 = vld [vmem:[#allocation2] sm:$0xff]
  %v1696 = vld [vmem:[#allocation2 + $0x8] sm:$0xff]
  %v1697 = vld [vmem:[#allocation2 + $0x10] sm:$0xff]
  %v1698 = vld [vmem:[#allocation2 + $0x18] sm:$0xff]
  %v1699 = vld [vmem:[%s1 + $0x84] sm:$0xf]
  %v1700 = vld [vmem:[#allocation2 + $0x20] sm:$0xff]
  %v1701 = vld [vmem:[#allocation2 + $0x28] sm:$0xff]
  %v1702 = vld [vmem:[#allocation2 + $0x30] sm:$0xff]
  %v1703 = vld [vmem:[#allocation2 + $0x38] sm:$0xff]
  %1705 = vst [vmem:[#allocation1] ss:$4 sm:$0xff] %v1700
  %s1707 = scalar_lea.vmem [#allocation1], 32
  %1708 = vst [vmem:[%s1707] ss:$4 sm:$0xff] %v1701
  %v1709 = vld.sshfl [vmem:[#allocation1] sm:$0xff pattern:$0x73625140]
  %v1710 = vld.sshfl [vmem:[#allocation1 + $0x8] sm:$0xff pattern:$0x73625140]
  %v1711 = vld.sshfl [vmem:[#allocation1 + $0x10] sm:$0xff pattern:$0x73625140]
  %v1712 = vld.sshfl [vmem:[#allocation1 + $0x18] sm:$0xff pattern:$0x73625140]
  %v1713 = vld.sshfl [vmem:[#allocation1 + $0x20] sm:$0xff pattern:$0x73625140]
  %v1714 = vld.sshfl [vmem:[#allocation1 + $0x28] sm:$0xff pattern:$0x73625140]
  %v1715 = vld.sshfl [vmem:[#allocation1 + $0x30] sm:$0xff pattern:$0x73625140]
  %v1716 = vld.sshfl [vmem:[#allocation1 + $0x38] sm:$0xff pattern:$0x73625140]
  %1718 = vst [vmem:[#allocation1] ss:$4 sm:$0xff] %v1702
  %1720 = vst [vmem:[%s1707] ss:$4 sm:$0xff] %v1703
  %v1721 = vld.sshfl [vmem:[#allocation1] sm:$0xff pattern:$0x73625140]
  %v1722 = vld.sshfl [vmem:[#allocation1 + $0x8] sm:$0xff pattern:$0x73625140]
  %v1723 = vld.sshfl [vmem:[#allocation1 + $0x10] sm:$0xff pattern:$0x73625140]
  %v1724 = vld.sshfl [vmem:[#allocation1 + $0x18] sm:$0xff pattern:$0x73625140]
  %v1725 = vld.sshfl [vmem:[#allocation1 + $0x20] sm:$0xff pattern:$0x73625140]
  %v1726 = vld.sshfl [vmem:[#allocation1 + $0x28] sm:$0xff pattern:$0x73625140]
  %v1727 = vld.sshfl [vmem:[#allocation1 + $0x30] sm:$0xff pattern:$0x73625140]
  %v1728 = vld.sshfl [vmem:[#allocation1 + $0x38] sm:$0xff pattern:$0x73625140]
  %vm1729 = vcmask 31744
  %v1731 = vsel %vm1729, %v1699, 0
  %v1733 = vsel %vm1547, %v1709, 0
  %v1735 = vsel %vm1547, %v1710, 0
  %v1737 = vsel %vm1547, %v1711, 0
  %v1739 = vsel %vm1547, %v1712, 0
  %v1741 = vsel %vm1547, %v1713, 0
  %v1743 = vsel %vm1547, %v1714, 0
  %v1745 = vsel %vm1547, %v1715, 0
  %v1747 = vsel %vm1547, %v1716, 0
  %v1749 = vsel %vm1547, %v1721, 0
  %v1751 = vsel %vm1547, %v1722, 0
  %v1753 = vsel %vm1547, %v1723, 0
  %v1755 = vsel %vm1547, %v1724, 0
  %v1757 = vsel %vm1547, %v1725, 0
  %v1759 = vsel %vm1547, %v1726, 0
  %v1761 = vsel %vm1547, %v1727, 0
  %v1763 = vsel %vm1547, %v1728, 0
  %1765 = vmatpush.bf16.msra.mxu0 0
  %1766 = vmatpush.bf16.msra.mxu0 0
  %1767 = vmatpush.bf16.msra.mxu0 0
  %1768 = vmatpush.bf16.msra.mxu0 0
  %1769 = vmatpush.bf16.msra.mxu0 0
  %1770 = vmatpush.bf16.msra.mxu0 0
  %1771 = vmatpush.bf16.msra.mxu0 0
  %1772 = vmatpush.bf16.msra.mxu0 %v1733
  %1773 = vmatmul.bf16.gmra.mxu0 %v1731
  %v1774 = vpop.f32.mrf.mxu0
  %v1775 = vadd.f32 0.0, %v1774
  %v1776 = vpop.f32.mrf.mxu0
  %1777 = vdwg.mxu0
  %1778 = vmatpush.bf16.msra.mxu0 0
  %1779 = vmatpush.bf16.msra.mxu0 0
  %1780 = vmatpush.bf16.msra.mxu0 0
  %1781 = vmatpush.bf16.msra.mxu0 0
  %1782 = vmatpush.bf16.msra.mxu0 0
  %1783 = vmatpush.bf16.msra.mxu0 0
  %1784 = vmatpush.bf16.msra.mxu0 0
  %1785 = vmatpush.bf16.msra.mxu0 %v1735
  %1786 = vmatmul.bf16.gmra.mxu0 %v1731
  %v1787 = vpop.f32.mrf.mxu0
  %v1788 = vadd.f32 0.0, %v1787
  %v1789 = vpop.f32.mrf.mxu0
  %1790 = vdwg.mxu0
  %1791 = vmatpush.bf16.msra.mxu0 0
  %1792 = vmatpush.bf16.msra.mxu0 0
  %1793 = vmatpush.bf16.msra.mxu0 0
  %1794 = vmatpush.bf16.msra.mxu0 0
  %1795 = vmatpush.bf16.msra.mxu0 0
  %1796 = vmatpush.bf16.msra.mxu0 0
  %1797 = vmatpush.bf16.msra.mxu0 0
  %1798 = vmatpush.bf16.msra.mxu0 %v1737
  %1799 = vmatmul.bf16.gmra.mxu0 %v1731
  %v1800 = vpop.f32.mrf.mxu0
  %v1801 = vadd.f32 0.0, %v1800
  %v1802 = vpop.f32.mrf.mxu0
  %1803 = vdwg.mxu0
  %1804 = vmatpush.bf16.msra.mxu0 0
  %1805 = vmatpush.bf16.msra.mxu0 0
  %1806 = vmatpush.bf16.msra.mxu0 0
  %1807 = vmatpush.bf16.msra.mxu0 0
  %1808 = vmatpush.bf16.msra.mxu0 0
  %1809 = vmatpush.bf16.msra.mxu0 0
  %1810 = vmatpush.bf16.msra.mxu0 0
  %1811 = vmatpush.bf16.msra.mxu0 %v1739
  %1812 = vmatmul.bf16.gmra.mxu0 %v1731
  %v1813 = vpop.f32.mrf.mxu0
  %v1814 = vadd.f32 0.0, %v1813
  %v1815 = vpop.f32.mrf.mxu0
  %1816 = vdwg.mxu0
  %1817 = vmatpush.bf16.msra.mxu0 0
  %1818 = vmatpush.bf16.msra.mxu0 0
  %1819 = vmatpush.bf16.msra.mxu0 0
  %1820 = vmatpush.bf16.msra.mxu0 0
  %1821 = vmatpush.bf16.msra.mxu0 0
  %1822 = vmatpush.bf16.msra.mxu0 0
  %1823 = vmatpush.bf16.msra.mxu0 0
  %1824 = vmatpush.bf16.msra.mxu0 %v1741
  %1825 = vmatmul.bf16.gmra.mxu0 %v1731
  %v1826 = vpop.f32.mrf.mxu0
  %v1827 = vadd.f32 0.0, %v1826
  %v1828 = vpop.f32.mrf.mxu0
  %1829 = vdwg.mxu0
  %1830 = vmatpush.bf16.msra.mxu0 0
  %1831 = vmatpush.bf16.msra.mxu0 0
  %1832 = vmatpush.bf16.msra.mxu0 0
  %1833 = vmatpush.bf16.msra.mxu0 0
  %1834 = vmatpush.bf16.msra.mxu0 0
  %1835 = vmatpush.bf16.msra.mxu0 0
  %1836 = vmatpush.bf16.msra.mxu0 0
  %1837 = vmatpush.bf16.msra.mxu0 %v1743
  %1838 = vmatmul.bf16.gmra.mxu0 %v1731
  %v1839 = vpop.f32.mrf.mxu0
  %v1840 = vadd.f32 0.0, %v1839
  %v1841 = vpop.f32.mrf.mxu0
  %1842 = vdwg.mxu0
  %1843 = vmatpush.bf16.msra.mxu0 0
  %1844 = vmatpush.bf16.msra.mxu0 0
  %1845 = vmatpush.bf16.msra.mxu0 0
  %1846 = vmatpush.bf16.msra.mxu0 0
  %1847 = vmatpush.bf16.msra.mxu0 0
  %1848 = vmatpush.bf16.msra.mxu0 0
  %1849 = vmatpush.bf16.msra.mxu0 0
  %1850 = vmatpush.bf16.msra.mxu0 %v1745
  %1851 = vmatmul.bf16.gmra.mxu0 %v1731
  %v1852 = vpop.f32.mrf.mxu0
  %v1853 = vadd.f32 0.0, %v1852
  %v1854 = vpop.f32.mrf.mxu0
  %1855 = vdwg.mxu0
  %1856 = vmatpush.bf16.msra.mxu0 0
  %1857 = vmatpush.bf16.msra.mxu0 0
  %1858 = vmatpush.bf16.msra.mxu0 0
  %1859 = vmatpush.bf16.msra.mxu0 0
  %1860 = vmatpush.bf16.msra.mxu0 0
  %1861 = vmatpush.bf16.msra.mxu0 0
  %1862 = vmatpush.bf16.msra.mxu0 0
  %1863 = vmatpush.bf16.msra.mxu0 %v1747
  %1864 = vmatmul.bf16.gmra.mxu0 %v1731
  %v1865 = vpop.f32.mrf.mxu0
  %v1866 = vadd.f32 0.0, %v1865
  %v1867 = vpop.f32.mrf.mxu0
  %1868 = vdwg.mxu0
  %1869 = vmatpush.bf16.msra.mxu0 0
  %1870 = vmatpush.bf16.msra.mxu0 0
  %1871 = vmatpush.bf16.msra.mxu0 0
  %1872 = vmatpush.bf16.msra.mxu0 0
  %1873 = vmatpush.bf16.msra.mxu0 0
  %1874 = vmatpush.bf16.msra.mxu0 0
  %1875 = vmatpush.bf16.msra.mxu0 0
  %1876 = vmatpush.bf16.msra.mxu0 %v1749
  %1877 = vmatmul.bf16.gmra.mxu0 %v1731
  %v1878 = vpop.f32.mrf.mxu0
  %v1879 = vadd.f32 0.0, %v1878
  %v1880 = vpop.f32.mrf.mxu0
  %1881 = vdwg.mxu0
  %1882 = vmatpush.bf16.msra.mxu0 0
  %1883 = vmatpush.bf16.msra.mxu0 0
  %1884 = vmatpush.bf16.msra.mxu0 0
  %1885 = vmatpush.bf16.msra.mxu0 0
  %1886 = vmatpush.bf16.msra.mxu0 0
  %1887 = vmatpush.bf16.msra.mxu0 0
  %1888 = vmatpush.bf16.msra.mxu0 0
  %1889 = vmatpush.bf16.msra.mxu0 %v1751
  %1890 = vmatmul.bf16.gmra.mxu0 %v1731
  %v1891 = vpop.f32.mrf.mxu0
  %v1892 = vadd.f32 0.0, %v1891
  %v1893 = vpop.f32.mrf.mxu0
  %1894 = vdwg.mxu0
  %1895 = vmatpush.bf16.msra.mxu0 0
  %1896 = vmatpush.bf16.msra.mxu0 0
  %1897 = vmatpush.bf16.msra.mxu0 0
  %1898 = vmatpush.bf16.msra.mxu0 0
  %1899 = vmatpush.bf16.msra.mxu0 0
  %1900 = vmatpush.bf16.msra.mxu0 0
  %1901 = vmatpush.bf16.msra.mxu0 0
  %1902 = vmatpush.bf16.msra.mxu0 %v1753
  %1903 = vmatmul.bf16.gmra.mxu0 %v1731
  %v1904 = vpop.f32.mrf.mxu0
  %v1905 = vadd.f32 0.0, %v1904
  %v1906 = vpop.f32.mrf.mxu0
  %1907 = vdwg.mxu0
  %1908 = vmatpush.bf16.msra.mxu0 0
  %1909 = vmatpush.bf16.msra.mxu0 0
  %1910 = vmatpush.bf16.msra.mxu0 0
  %1911 = vmatpush.bf16.msra.mxu0 0
  %1912 = vmatpush.bf16.msra.mxu0 0
  %1913 = vmatpush.bf16.msra.mxu0 0
  %1914 = vmatpush.bf16.msra.mxu0 0
  %1915 = vmatpush.bf16.msra.mxu0 %v1755
  %1916 = vmatmul.bf16.gmra.mxu0 %v1731
  %v1917 = vpop.f32.mrf.mxu0
  %v1918 = vadd.f32 0.0, %v1917
  %v1919 = vpop.f32.mrf.mxu0
  %1920 = vdwg.mxu0
  %1921 = vmatpush.bf16.msra.mxu0 0
  %1922 = vmatpush.bf16.msra.mxu0 0
  %1923 = vmatpush.bf16.msra.mxu0 0
  %1924 = vmatpush.bf16.msra.mxu0 0
  %1925 = vmatpush.bf16.msra.mxu0 0
  %1926 = vmatpush.bf16.msra.mxu0 0
  %1927 = vmatpush.bf16.msra.mxu0 0
  %1928 = vmatpush.bf16.msra.mxu0 %v1757
  %1929 = vmatmul.bf16.gmra.mxu0 %v1731
  %v1930 = vpop.f32.mrf.mxu0
  %v1931 = vadd.f32 0.0, %v1930
  %v1932 = vpop.f32.mrf.mxu0
  %1933 = vdwg.mxu0
  %1934 = vmatpush.bf16.msra.mxu0 0
  %1935 = vmatpush.bf16.msra.mxu0 0
  %1936 = vmatpush.bf16.msra.mxu0 0
  %1937 = vmatpush.bf16.msra.mxu0 0
  %1938 = vmatpush.bf16.msra.mxu0 0
  %1939 = vmatpush.bf16.msra.mxu0 0
  %1940 = vmatpush.bf16.msra.mxu0 0
  %1941 = vmatpush.bf16.msra.mxu0 %v1759
  %1942 = vmatmul.bf16.gmra.mxu0 %v1731
  %v1943 = vpop.f32.mrf.mxu0
  %v1944 = vadd.f32 0.0, %v1943
  %v1945 = vpop.f32.mrf.mxu0
  %1946 = vdwg.mxu0
  %1947 = vmatpush.bf16.msra.mxu0 0
  %1948 = vmatpush.bf16.msra.mxu0 0
  %1949 = vmatpush.bf16.msra.mxu0 0
  %1950 = vmatpush.bf16.msra.mxu0 0
  %1951 = vmatpush.bf16.msra.mxu0 0
  %1952 = vmatpush.bf16.msra.mxu0 0
  %1953 = vmatpush.bf16.msra.mxu0 0
  %1954 = vmatpush.bf16.msra.mxu0 %v1761
  %1955 = vmatmul.bf16.gmra.mxu0 %v1731
  %v1956 = vpop.f32.mrf.mxu0
  %v1957 = vadd.f32 0.0, %v1956
  %v1958 = vpop.f32.mrf.mxu0
  %1959 = vdwg.mxu0
  %1960 = vmatpush.bf16.msra.mxu0 0
  %1961 = vmatpush.bf16.msra.mxu0 0
  %1962 = vmatpush.bf16.msra.mxu0 0
  %1963 = vmatpush.bf16.msra.mxu0 0
  %1964 = vmatpush.bf16.msra.mxu0 0
  %1965 = vmatpush.bf16.msra.mxu0 0
  %1966 = vmatpush.bf16.msra.mxu0 0
  %1967 = vmatpush.bf16.msra.mxu0 %v1763
  %1968 = vmatmul.bf16.gmra.mxu0 %v1731
  %v1969 = vpop.f32.mrf.mxu0
  %v1970 = vadd.f32 0.0, %v1969
  %v1971 = vpop.f32.mrf.mxu0
  %1972 = vdwg.mxu0
  %v1973 = vld [vmem:[%s1 + $0x104] sm:$0xf]
  %v1974 = vld [vmem:[#allocation2 + $0x40] sm:$0xff]
  %v1975 = vld [vmem:[#allocation2 + $0x48] sm:$0xff]
  %v1976 = vld [vmem:[#allocation2 + $0x50] sm:$0xff]
  %v1977 = vld [vmem:[#allocation2 + $0x58] sm:$0xff]
  %v1978 = vld [vmem:[%s1 + $0x184] sm:$0xf]
  %v1979 = vld [vmem:[#allocation2 + $0x60] sm:$0xff]
  %v1980 = vld [vmem:[#allocation2 + $0x68] sm:$0xff]
  %v1981 = vld [vmem:[#allocation2 + $0x70] sm:$0xff]
  %v1982 = vld [vmem:[#allocation2 + $0x78] sm:$0xff]
  %1984 = vst [vmem:[#allocation1] ss:$4 sm:$0xff] %v1979
  %s1986 = scalar_lea.vmem [#allocation1], 32
  %1987 = vst [vmem:[%s1986] ss:$4 sm:$0xff] %v1980
  %v1988 = vld.sshfl [vmem:[#allocation1] sm:$0xff pattern:$0x73625140]
  %v1989 = vld.sshfl [vmem:[#allocation1 + $0x8] sm:$0xff pattern:$0x73625140]
  %v1990 = vld.sshfl [vmem:[#allocation1 + $0x10] sm:$0xff pattern:$0x73625140]
  %v1991 = vld.sshfl [vmem:[#allocation1 + $0x18] sm:$0xff pattern:$0x73625140]
  %v1992 = vld.sshfl [vmem:[#allocation1 + $0x20] sm:$0xff pattern:$0x73625140]
  %v1993 = vld.sshfl [vmem:[#allocation1 + $0x28] sm:$0xff pattern:$0x73625140]
  %v1994 = vld.sshfl [vmem:[#allocation1 + $0x30] sm:$0xff pattern:$0x73625140]
  %v1995 = vld.sshfl [vmem:[#allocation1 + $0x38] sm:$0xff pattern:$0x73625140]
  %1997 = vst [vmem:[#allocation1] ss:$4 sm:$0xff] %v1981
  %1999 = vst [vmem:[%s1986] ss:$4 sm:$0xff] %v1982
  %v2000 = vld.sshfl [vmem:[#allocation1] sm:$0xff pattern:$0x73625140]
  %v2001 = vld.sshfl [vmem:[#allocation1 + $0x8] sm:$0xff pattern:$0x73625140]
  %v2002 = vld.sshfl [vmem:[#allocation1 + $0x10] sm:$0xff pattern:$0x73625140]
  %v2003 = vld.sshfl [vmem:[#allocation1 + $0x18] sm:$0xff pattern:$0x73625140]
  %v2004 = vld.sshfl [vmem:[#allocation1 + $0x20] sm:$0xff pattern:$0x73625140]
  %v2005 = vld.sshfl [vmem:[#allocation1 + $0x28] sm:$0xff pattern:$0x73625140]
  %v2006 = vld.sshfl [vmem:[#allocation1 + $0x30] sm:$0xff pattern:$0x73625140]
  %v2007 = vld.sshfl [vmem:[#allocation1 + $0x38] sm:$0xff pattern:$0x73625140]
  %v2009 = vsel %vm1729, %v1978, 0
  %v2011 = vsel %vm1547, %v1988, 0
  %v2013 = vsel %vm1547, %v1989, 0
  %v2015 = vsel %vm1547, %v1990, 0
  %v2017 = vsel %vm1547, %v1991, 0
  %v2019 = vsel %vm1547, %v1992, 0
  %v2021 = vsel %vm1547, %v1993, 0
  %v2023 = vsel %vm1547, %v1994, 0
  %v2025 = vsel %vm1547, %v1995, 0
  %v2027 = vsel %vm1547, %v2000, 0
  %v2029 = vsel %vm1547, %v2001, 0
  %v2031 = vsel %vm1547, %v2002, 0
  %v2033 = vsel %vm1547, %v2003, 0
  %v2035 = vsel %vm1547, %v2004, 0
  %v2037 = vsel %vm1547, %v2005, 0
  %v2039 = vsel %vm1547, %v2006, 0
  %v2041 = vsel %vm1547, %v2007, 0
  %2043 = vmatpush.bf16.msra.mxu0 0
  %2044 = vmatpush.bf16.msra.mxu0 0
  %2045 = vmatpush.bf16.msra.mxu0 0
  %2046 = vmatpush.bf16.msra.mxu0 0
  %2047 = vmatpush.bf16.msra.mxu0 0
  %2048 = vmatpush.bf16.msra.mxu0 0
  %2049 = vmatpush.bf16.msra.mxu0 0
  %2050 = vmatpush.bf16.msra.mxu0 %v2011
  %2051 = vmatmul.bf16.gmra.mxu0 %v2009
  %v2052 = vpop.f32.mrf.mxu0
  %v2053 = vadd.f32 0.0, %v2052
  %v2054 = vpop.f32.mrf.mxu0
  %2055 = vdwg.mxu0
  %2056 = vmatpush.bf16.msra.mxu0 0
  %2057 = vmatpush.bf16.msra.mxu0 0
  %2058 = vmatpush.bf16.msra.mxu0 0
  %2059 = vmatpush.bf16.msra.mxu0 0
  %2060 = vmatpush.bf16.msra.mxu0 0
  %2061 = vmatpush.bf16.msra.mxu0 0
  %2062 = vmatpush.bf16.msra.mxu0 0
  %2063 = vmatpush.bf16.msra.mxu0 %v2013
  %2064 = vmatmul.bf16.gmra.mxu0 %v2009
  %v2065 = vpop.f32.mrf.mxu0
  %v2066 = vadd.f32 0.0, %v2065
  %v2067 = vpop.f32.mrf.mxu0
  %2068 = vdwg.mxu0
  %2069 = vmatpush.bf16.msra.mxu0 0
  %2070 = vmatpush.bf16.msra.mxu0 0
  %2071 = vmatpush.bf16.msra.mxu0 0
  %2072 = vmatpush.bf16.msra.mxu0 0
  %2073 = vmatpush.bf16.msra.mxu0 0
  %2074 = vmatpush.bf16.msra.mxu0 0
  %2075 = vmatpush.bf16.msra.mxu0 0
  %2076 = vmatpush.bf16.msra.mxu0 %v2015
  %2077 = vmatmul.bf16.gmra.mxu0 %v2009
  %v2078 = vpop.f32.mrf.mxu0
  %v2079 = vadd.f32 0.0, %v2078
  %v2080 = vpop.f32.mrf.mxu0
  %2081 = vdwg.mxu0
  %2082 = vmatpush.bf16.msra.mxu0 0
  %2083 = vmatpush.bf16.msra.mxu0 0
  %2084 = vmatpush.bf16.msra.mxu0 0
  %2085 = vmatpush.bf16.msra.mxu0 0
  %2086 = vmatpush.bf16.msra.mxu0 0
  %2087 = vmatpush.bf16.msra.mxu0 0
  %2088 = vmatpush.bf16.msra.mxu0 0
  %2089 = vmatpush.bf16.msra.mxu0 %v2017
  %2090 = vmatmul.bf16.gmra.mxu0 %v2009
  %v2091 = vpop.f32.mrf.mxu0
  %v2092 = vadd.f32 0.0, %v2091
  %v2093 = vpop.f32.mrf.mxu0
  %2094 = vdwg.mxu0
  %2095 = vmatpush.bf16.msra.mxu0 0
  %2096 = vmatpush.bf16.msra.mxu0 0
  %2097 = vmatpush.bf16.msra.mxu0 0
  %2098 = vmatpush.bf16.msra.mxu0 0
  %2099 = vmatpush.bf16.msra.mxu0 0
  %2100 = vmatpush.bf16.msra.mxu0 0
  %2101 = vmatpush.bf16.msra.mxu0 0
  %2102 = vmatpush.bf16.msra.mxu0 %v2019
  %2103 = vmatmul.bf16.gmra.mxu0 %v2009
  %v2104 = vpop.f32.mrf.mxu0
  %v2105 = vadd.f32 0.0, %v2104
  %v2106 = vpop.f32.mrf.mxu0
  %2107 = vdwg.mxu0
  %2108 = vmatpush.bf16.msra.mxu0 0
  %2109 = vmatpush.bf16.msra.mxu0 0
  %2110 = vmatpush.bf16.msra.mxu0 0
  %2111 = vmatpush.bf16.msra.mxu0 0
  %2112 = vmatpush.bf16.msra.mxu0 0
  %2113 = vmatpush.bf16.msra.mxu0 0
  %2114 = vmatpush.bf16.msra.mxu0 0
  %2115 = vmatpush.bf16.msra.mxu0 %v2021
  %2116 = vmatmul.bf16.gmra.mxu0 %v2009
  %v2117 = vpop.f32.mrf.mxu0
  %v2118 = vadd.f32 0.0, %v2117
  %v2119 = vpop.f32.mrf.mxu0
  %2120 = vdwg.mxu0
  %2121 = vmatpush.bf16.msra.mxu0 0
  %2122 = vmatpush.bf16.msra.mxu0 0
  %2123 = vmatpush.bf16.msra.mxu0 0
  %2124 = vmatpush.bf16.msra.mxu0 0
  %2125 = vmatpush.bf16.msra.mxu0 0
  %2126 = vmatpush.bf16.msra.mxu0 0
  %2127 = vmatpush.bf16.msra.mxu0 0
  %2128 = vmatpush.bf16.msra.mxu0 %v2023
  %2129 = vmatmul.bf16.gmra.mxu0 %v2009
  %v2130 = vpop.f32.mrf.mxu0
  %v2131 = vadd.f32 0.0, %v2130
  %v2132 = vpop.f32.mrf.mxu0
  %2133 = vdwg.mxu0
  %2134 = vmatpush.bf16.msra.mxu0 0
  %2135 = vmatpush.bf16.msra.mxu0 0
  %2136 = vmatpush.bf16.msra.mxu0 0
  %2137 = vmatpush.bf16.msra.mxu0 0
  %2138 = vmatpush.bf16.msra.mxu0 0
  %2139 = vmatpush.bf16.msra.mxu0 0
  %2140 = vmatpush.bf16.msra.mxu0 0
  %2141 = vmatpush.bf16.msra.mxu0 %v2025
  %2142 = vmatmul.bf16.gmra.mxu0 %v2009
  %v2143 = vpop.f32.mrf.mxu0
  %v2144 = vadd.f32 0.0, %v2143
  %v2145 = vpop.f32.mrf.mxu0
  %2146 = vdwg.mxu0
  %2147 = vmatpush.bf16.msra.mxu0 0
  %2148 = vmatpush.bf16.msra.mxu0 0
  %2149 = vmatpush.bf16.msra.mxu0 0
  %2150 = vmatpush.bf16.msra.mxu0 0
  %2151 = vmatpush.bf16.msra.mxu0 0
  %2152 = vmatpush.bf16.msra.mxu0 0
  %2153 = vmatpush.bf16.msra.mxu0 0
  %2154 = vmatpush.bf16.msra.mxu0 %v2027
  %2155 = vmatmul.bf16.gmra.mxu0 %v2009
  %v2156 = vpop.f32.mrf.mxu0
  %v2157 = vadd.f32 0.0, %v2156
  %v2158 = vpop.f32.mrf.mxu0
  %2159 = vdwg.mxu0
  %2160 = vmatpush.bf16.msra.mxu0 0
  %2161 = vmatpush.bf16.msra.mxu0 0
  %2162 = vmatpush.bf16.msra.mxu0 0
  %2163 = vmatpush.bf16.msra.mxu0 0
  %2164 = vmatpush.bf16.msra.mxu0 0
  %2165 = vmatpush.bf16.msra.mxu0 0
  %2166 = vmatpush.bf16.msra.mxu0 0
  %2167 = vmatpush.bf16.msra.mxu0 %v2029
  %2168 = vmatmul.bf16.gmra.mxu0 %v2009
  %v2169 = vpop.f32.mrf.mxu0
  %v2170 = vadd.f32 0.0, %v2169
  %v2171 = vpop.f32.mrf.mxu0
  %2172 = vdwg.mxu0
  %2173 = vmatpush.bf16.msra.mxu0 0
  %2174 = vmatpush.bf16.msra.mxu0 0
  %2175 = vmatpush.bf16.msra.mxu0 0
  %2176 = vmatpush.bf16.msra.mxu0 0
  %2177 = vmatpush.bf16.msra.mxu0 0
  %2178 = vmatpush.bf16.msra.mxu0 0
  %2179 = vmatpush.bf16.msra.mxu0 0
  %2180 = vmatpush.bf16.msra.mxu0 %v2031
  %2181 = vmatmul.bf16.gmra.mxu0 %v2009
  %v2182 = vpop.f32.mrf.mxu0
  %v2183 = vadd.f32 0.0, %v2182
  %v2184 = vpop.f32.mrf.mxu0
  %2185 = vdwg.mxu0
  %2186 = vmatpush.bf16.msra.mxu0 0
  %2187 = vmatpush.bf16.msra.mxu0 0
  %2188 = vmatpush.bf16.msra.mxu0 0
  %2189 = vmatpush.bf16.msra.mxu0 0
  %2190 = vmatpush.bf16.msra.mxu0 0
  %2191 = vmatpush.bf16.msra.mxu0 0
  %2192 = vmatpush.bf16.msra.mxu0 0
  %2193 = vmatpush.bf16.msra.mxu0 %v2033
  %2194 = vmatmul.bf16.gmra.mxu0 %v2009
  %v2195 = vpop.f32.mrf.mxu0
  %v2196 = vadd.f32 0.0, %v2195
  %v2197 = vpop.f32.mrf.mxu0
  %2198 = vdwg.mxu0
  %2199 = vmatpush.bf16.msra.mxu0 0
  %2200 = vmatpush.bf16.msra.mxu0 0
  %2201 = vmatpush.bf16.msra.mxu0 0
  %2202 = vmatpush.bf16.msra.mxu0 0
  %2203 = vmatpush.bf16.msra.mxu0 0
  %2204 = vmatpush.bf16.msra.mxu0 0
  %2205 = vmatpush.bf16.msra.mxu0 0
  %2206 = vmatpush.bf16.msra.mxu0 %v2035
  %2207 = vmatmul.bf16.gmra.mxu0 %v2009
  %v2208 = vpop.f32.mrf.mxu0
  %v2209 = vadd.f32 0.0, %v2208
  %v2210 = vpop.f32.mrf.mxu0
  %2211 = vdwg.mxu0
  %2212 = vmatpush.bf16.msra.mxu0 0
  %2213 = vmatpush.bf16.msra.mxu0 0
  %2214 = vmatpush.bf16.msra.mxu0 0
  %2215 = vmatpush.bf16.msra.mxu0 0
  %2216 = vmatpush.bf16.msra.mxu0 0
  %2217 = vmatpush.bf16.msra.mxu0 0
  %2218 = vmatpush.bf16.msra.mxu0 0
  %2219 = vmatpush.bf16.msra.mxu0 %v2037
  %2220 = vmatmul.bf16.gmra.mxu0 %v2009
  %v2221 = vpop.f32.mrf.mxu0
  %v2222 = vadd.f32 0.0, %v2221
  %v2223 = vpop.f32.mrf.mxu0
  %2224 = vdwg.mxu0
  %2225 = vmatpush.bf16.msra.mxu0 0
  %2226 = vmatpush.bf16.msra.mxu0 0
  %2227 = vmatpush.bf16.msra.mxu0 0
  %2228 = vmatpush.bf16.msra.mxu0 0
  %2229 = vmatpush.bf16.msra.mxu0 0
  %2230 = vmatpush.bf16.msra.mxu0 0
  %2231 = vmatpush.bf16.msra.mxu0 0
  %2232 = vmatpush.bf16.msra.mxu0 %v2039
  %2233 = vmatmul.bf16.gmra.mxu0 %v2009
  %v2234 = vpop.f32.mrf.mxu0
  %v2235 = vadd.f32 0.0, %v2234
  %v2236 = vpop.f32.mrf.mxu0
  %2237 = vdwg.mxu0
  %2238 = vmatpush.bf16.msra.mxu0 0
  %2239 = vmatpush.bf16.msra.mxu0 0
  %2240 = vmatpush.bf16.msra.mxu0 0
  %2241 = vmatpush.bf16.msra.mxu0 0
  %2242 = vmatpush.bf16.msra.mxu0 0
  %2243 = vmatpush.bf16.msra.mxu0 0
  %2244 = vmatpush.bf16.msra.mxu0 0
  %2245 = vmatpush.bf16.msra.mxu0 %v2041
  %2246 = vmatmul.bf16.gmra.mxu0 %v2009
  %v2247 = vpop.f32.mrf.mxu0
  %v2248 = vadd.f32 0.0, %v2247
  %v2249 = vpop.f32.mrf.mxu0
  %2250 = vdwg.mxu0
  %2252 = vst [vmem:[#allocation1] ss:$4 sm:$0xff] %v1695
  %s2254 = scalar_lea.vmem [#allocation1], 32
  %2255 = vst [vmem:[%s2254] ss:$4 sm:$0xff] %v1696
  %v2256 = vld.sshfl [vmem:[#allocation1] sm:$0xff pattern:$0x73625140]
  %v2257 = vld.sshfl [vmem:[#allocation1 + $0x8] sm:$0xff pattern:$0x73625140]
  %v2258 = vld.sshfl [vmem:[#allocation1 + $0x10] sm:$0xff pattern:$0x73625140]
  %v2259 = vld.sshfl [vmem:[#allocation1 + $0x18] sm:$0xff pattern:$0x73625140]
  %v2260 = vld.sshfl [vmem:[#allocation1 + $0x20] sm:$0xff pattern:$0x73625140]
  %v2261 = vld.sshfl [vmem:[#allocation1 + $0x28] sm:$0xff pattern:$0x73625140]
  %v2262 = vld.sshfl [vmem:[#allocation1 + $0x30] sm:$0xff pattern:$0x73625140]
  %v2263 = vld.sshfl [vmem:[#allocation1 + $0x38] sm:$0xff pattern:$0x73625140]
  %2265 = vst [vmem:[#allocation1] ss:$4 sm:$0xff] %v1697
  %2267 = vst [vmem:[%s2254] ss:$4 sm:$0xff] %v1698
  %v2268 = vld.sshfl [vmem:[#allocation1] sm:$0xff pattern:$0x73625140]
  %v2269 = vld.sshfl [vmem:[#allocation1 + $0x8] sm:$0xff pattern:$0x73625140]
  %v2270 = vld.sshfl [vmem:[#allocation1 + $0x10] sm:$0xff pattern:$0x73625140]
  %v2271 = vld.sshfl [vmem:[#allocation1 + $0x18] sm:$0xff pattern:$0x73625140]
  %v2272 = vld.sshfl [vmem:[#allocation1 + $0x20] sm:$0xff pattern:$0x73625140]
  %v2273 = vld.sshfl [vmem:[#allocation1 + $0x28] sm:$0xff pattern:$0x73625140]
  %v2274 = vld.sshfl [vmem:[#allocation1 + $0x30] sm:$0xff pattern:$0x73625140]
  %v2275 = vld.sshfl [vmem:[#allocation1 + $0x38] sm:$0xff pattern:$0x73625140]
  %v2277 = vsel %vm1729, %v1694, 0
  %v2279 = vsel %vm1547, %v2256, 0
  %v2281 = vsel %vm1547, %v2257, 0
  %v2283 = vsel %vm1547, %v2258, 0
  %v2285 = vsel %vm1547, %v2259, 0
  %v2287 = vsel %vm1547, %v2260, 0
  %v2289 = vsel %vm1547, %v2261, 0
  %v2291 = vsel %vm1547, %v2262, 0
  %v2293 = vsel %vm1547, %v2263, 0
  %v2295 = vsel %vm1547, %v2268, 0
  %v2297 = vsel %vm1547, %v2269, 0
  %v2299 = vsel %vm1547, %v2270, 0
  %v2301 = vsel %vm1547, %v2271, 0
  %v2303 = vsel %vm1547, %v2272, 0
  %v2305 = vsel %vm1547, %v2273, 0
  %v2307 = vsel %vm1547, %v2274, 0
  %v2309 = vsel %vm1547, %v2275, 0
  %2311 = vmatpush.bf16.msra.mxu0 0
  %2312 = vmatpush.bf16.msra.mxu0 0
  %2313 = vmatpush.bf16.msra.mxu0 0
  %2314 = vmatpush.bf16.msra.mxu0 0
  %2315 = vmatpush.bf16.msra.mxu0 0
  %2316 = vmatpush.bf16.msra.mxu0 0
  %2317 = vmatpush.bf16.msra.mxu0 0
  %2318 = vmatpush.bf16.msra.mxu0 %v2279
  %2319 = vmatmul.bf16.gmra.mxu0 %v2277
  %v2320 = vpop.f32.mrf.mxu0
  %v2321 = vadd.f32 %v1775, %v2320
  %v2322 = vpop.f32.mrf.mxu0
  %2323 = vdwg.mxu0
  %2324 = vmatpush.bf16.msra.mxu0 0
  %2325 = vmatpush.bf16.msra.mxu0 0
  %2326 = vmatpush.bf16.msra.mxu0 0
  %2327 = vmatpush.bf16.msra.mxu0 0
  %2328 = vmatpush.bf16.msra.mxu0 0
  %2329 = vmatpush.bf16.msra.mxu0 0
  %2330 = vmatpush.bf16.msra.mxu0 0
  %2331 = vmatpush.bf16.msra.mxu0 %v2281
  %2332 = vmatmul.bf16.gmra.mxu0 %v2277
  %v2333 = vpop.f32.mrf.mxu0
  %v2334 = vadd.f32 %v1788, %v2333
  %v2335 = vpop.f32.mrf.mxu0
  %2336 = vdwg.mxu0
  %2337 = vmatpush.bf16.msra.mxu0 0
  %2338 = vmatpush.bf16.msra.mxu0 0
  %2339 = vmatpush.bf16.msra.mxu0 0
  %2340 = vmatpush.bf16.msra.mxu0 0
  %2341 = vmatpush.bf16.msra.mxu0 0
  %2342 = vmatpush.bf16.msra.mxu0 0
  %2343 = vmatpush.bf16.msra.mxu0 0
  %2344 = vmatpush.bf16.msra.mxu0 %v2283
  %2345 = vmatmul.bf16.gmra.mxu0 %v2277
  %v2346 = vpop.f32.mrf.mxu0
  %v2347 = vadd.f32 %v1801, %v2346
  %v2348 = vpop.f32.mrf.mxu0
  %2349 = vdwg.mxu0
  %2350 = vmatpush.bf16.msra.mxu0 0
  %2351 = vmatpush.bf16.msra.mxu0 0
  %2352 = vmatpush.bf16.msra.mxu0 0
  %2353 = vmatpush.bf16.msra.mxu0 0
  %2354 = vmatpush.bf16.msra.mxu0 0
  %2355 = vmatpush.bf16.msra.mxu0 0
  %2356 = vmatpush.bf16.msra.mxu0 0
  %2357 = vmatpush.bf16.msra.mxu0 %v2285
  %2358 = vmatmul.bf16.gmra.mxu0 %v2277
  %v2359 = vpop.f32.mrf.mxu0
  %v2360 = vadd.f32 %v1814, %v2359
  %v2361 = vpop.f32.mrf.mxu0
  %2362 = vdwg.mxu0
  %2363 = vmatpush.bf16.msra.mxu0 0
  %2364 = vmatpush.bf16.msra.mxu0 0
  %2365 = vmatpush.bf16.msra.mxu0 0
  %2366 = vmatpush.bf16.msra.mxu0 0
  %2367 = vmatpush.bf16.msra.mxu0 0
  %2368 = vmatpush.bf16.msra.mxu0 0
  %2369 = vmatpush.bf16.msra.mxu0 0
  %2370 = vmatpush.bf16.msra.mxu0 %v2287
  %2371 = vmatmul.bf16.gmra.mxu0 %v2277
  %v2372 = vpop.f32.mrf.mxu0
  %v2373 = vadd.f32 %v1827, %v2372
  %v2374 = vpop.f32.mrf.mxu0
  %2375 = vdwg.mxu0
  %2376 = vmatpush.bf16.msra.mxu0 0
  %2377 = vmatpush.bf16.msra.mxu0 0
  %2378 = vmatpush.bf16.msra.mxu0 0
  %2379 = vmatpush.bf16.msra.mxu0 0
  %2380 = vmatpush.bf16.msra.mxu0 0
  %2381 = vmatpush.bf16.msra.mxu0 0
  %2382 = vmatpush.bf16.msra.mxu0 0
  %2383 = vmatpush.bf16.msra.mxu0 %v2289
  %2384 = vmatmul.bf16.gmra.mxu0 %v2277
  %v2385 = vpop.f32.mrf.mxu0
  %v2386 = vadd.f32 %v1840, %v2385
  %v2387 = vpop.f32.mrf.mxu0
  %2388 = vdwg.mxu0
  %2389 = vmatpush.bf16.msra.mxu0 0
  %2390 = vmatpush.bf16.msra.mxu0 0
  %2391 = vmatpush.bf16.msra.mxu0 0
  %2392 = vmatpush.bf16.msra.mxu0 0
  %2393 = vmatpush.bf16.msra.mxu0 0
  %2394 = vmatpush.bf16.msra.mxu0 0
  %2395 = vmatpush.bf16.msra.mxu0 0
  %2396 = vmatpush.bf16.msra.mxu0 %v2291
  %2397 = vmatmul.bf16.gmra.mxu0 %v2277
  %v2398 = vpop.f32.mrf.mxu0
  %v2399 = vadd.f32 %v1853, %v2398
  %v2400 = vpop.f32.mrf.mxu0
  %2401 = vdwg.mxu0
  %2402 = vmatpush.bf16.msra.mxu0 0
  %2403 = vmatpush.bf16.msra.mxu0 0
  %2404 = vmatpush.bf16.msra.mxu0 0
  %2405 = vmatpush.bf16.msra.mxu0 0
  %2406 = vmatpush.bf16.msra.mxu0 0
  %2407 = vmatpush.bf16.msra.mxu0 0
  %2408 = vmatpush.bf16.msra.mxu0 0
  %2409 = vmatpush.bf16.msra.mxu0 %v2293
  %2410 = vmatmul.bf16.gmra.mxu0 %v2277
  %v2411 = vpop.f32.mrf.mxu0
  %v2412 = vadd.f32 %v1866, %v2411
  %v2413 = vpop.f32.mrf.mxu0
  %2414 = vdwg.mxu0
  %2415 = vmatpush.bf16.msra.mxu0 0
  %2416 = vmatpush.bf16.msra.mxu0 0
  %2417 = vmatpush.bf16.msra.mxu0 0
  %2418 = vmatpush.bf16.msra.mxu0 0
  %2419 = vmatpush.bf16.msra.mxu0 0
  %2420 = vmatpush.bf16.msra.mxu0 0
  %2421 = vmatpush.bf16.msra.mxu0 0
  %2422 = vmatpush.bf16.msra.mxu0 %v2295
  %2423 = vmatmul.bf16.gmra.mxu0 %v2277
  %v2424 = vpop.f32.mrf.mxu0
  %v2425 = vadd.f32 %v1879, %v2424
  %v2426 = vpop.f32.mrf.mxu0
  %2427 = vdwg.mxu0
  %2428 = vmatpush.bf16.msra.mxu0 0
  %2429 = vmatpush.bf16.msra.mxu0 0
  %2430 = vmatpush.bf16.msra.mxu0 0
  %2431 = vmatpush.bf16.msra.mxu0 0
  %2432 = vmatpush.bf16.msra.mxu0 0
  %2433 = vmatpush.bf16.msra.mxu0 0
  %2434 = vmatpush.bf16.msra.mxu0 0
  %2435 = vmatpush.bf16.msra.mxu0 %v2297
  %2436 = vmatmul.bf16.gmra.mxu0 %v2277
  %v2437 = vpop.f32.mrf.mxu0
  %v2438 = vadd.f32 %v1892, %v2437
  %v2439 = vpop.f32.mrf.mxu0
  %2440 = vdwg.mxu0
  %2441 = vmatpush.bf16.msra.mxu0 0
  %2442 = vmatpush.bf16.msra.mxu0 0
  %2443 = vmatpush.bf16.msra.mxu0 0
  %2444 = vmatpush.bf16.msra.mxu0 0
  %2445 = vmatpush.bf16.msra.mxu0 0
  %2446 = vmatpush.bf16.msra.mxu0 0
  %2447 = vmatpush.bf16.msra.mxu0 0
  %2448 = vmatpush.bf16.msra.mxu0 %v2299
  %2449 = vmatmul.bf16.gmra.mxu0 %v2277
  %v2450 = vpop.f32.mrf.mxu0
  %v2451 = vadd.f32 %v1905, %v2450
  %v2452 = vpop.f32.mrf.mxu0
  %2453 = vdwg.mxu0
  %2454 = vmatpush.bf16.msra.mxu0 0
  %2455 = vmatpush.bf16.msra.mxu0 0
  %2456 = vmatpush.bf16.msra.mxu0 0
  %2457 = vmatpush.bf16.msra.mxu0 0
  %2458 = vmatpush.bf16.msra.mxu0 0
  %2459 = vmatpush.bf16.msra.mxu0 0
  %2460 = vmatpush.bf16.msra.mxu0 0
  %2461 = vmatpush.bf16.msra.mxu0 %v2301
  %2462 = vmatmul.bf16.gmra.mxu0 %v2277
  %v2463 = vpop.f32.mrf.mxu0
  %v2464 = vadd.f32 %v1918, %v2463
  %v2465 = vpop.f32.mrf.mxu0
  %2466 = vdwg.mxu0
  %2467 = vmatpush.bf16.msra.mxu0 0
  %2468 = vmatpush.bf16.msra.mxu0 0
  %2469 = vmatpush.bf16.msra.mxu0 0
  %2470 = vmatpush.bf16.msra.mxu0 0
  %2471 = vmatpush.bf16.msra.mxu0 0
  %2472 = vmatpush.bf16.msra.mxu0 0
  %2473 = vmatpush.bf16.msra.mxu0 0
  %2474 = vmatpush.bf16.msra.mxu0 %v2303
  %2475 = vmatmul.bf16.gmra.mxu0 %v2277
  %v2476 = vpop.f32.mrf.mxu0
  %v2477 = vadd.f32 %v1931, %v2476
  %v2478 = vpop.f32.mrf.mxu0
  %2479 = vdwg.mxu0
  %2480 = vmatpush.bf16.msra.mxu0 0
  %2481 = vmatpush.bf16.msra.mxu0 0
  %2482 = vmatpush.bf16.msra.mxu0 0
  %2483 = vmatpush.bf16.msra.mxu0 0
  %2484 = vmatpush.bf16.msra.mxu0 0
  %2485 = vmatpush.bf16.msra.mxu0 0
  %2486 = vmatpush.bf16.msra.mxu0 0
  %2487 = vmatpush.bf16.msra.mxu0 %v2305
  %2488 = vmatmul.bf16.gmra.mxu0 %v2277
  %v2489 = vpop.f32.mrf.mxu0
  %v2490 = vadd.f32 %v1944, %v2489
  %v2491 = vpop.f32.mrf.mxu0
  %2492 = vdwg.mxu0
  %2493 = vmatpush.bf16.msra.mxu0 0
  %2494 = vmatpush.bf16.msra.mxu0 0
  %2495 = vmatpush.bf16.msra.mxu0 0
  %2496 = vmatpush.bf16.msra.mxu0 0
  %2497 = vmatpush.bf16.msra.mxu0 0
  %2498 = vmatpush.bf16.msra.mxu0 0
  %2499 = vmatpush.bf16.msra.mxu0 0
  %2500 = vmatpush.bf16.msra.mxu0 %v2307
  %2501 = vmatmul.bf16.gmra.mxu0 %v2277
  %v2502 = vpop.f32.mrf.mxu0
  %v2503 = vadd.f32 %v1957, %v2502
  %v2504 = vpop.f32.mrf.mxu0
  %2505 = vdwg.mxu0
  %2506 = vmatpush.bf16.msra.mxu0 0
  %2507 = vmatpush.bf16.msra.mxu0 0
  %2508 = vmatpush.bf16.msra.mxu0 0
  %2509 = vmatpush.bf16.msra.mxu0 0
  %2510 = vmatpush.bf16.msra.mxu0 0
  %2511 = vmatpush.bf16.msra.mxu0 0
  %2512 = vmatpush.bf16.msra.mxu0 0
  %2513 = vmatpush.bf16.msra.mxu0 %v2309
  %2514 = vmatmul.bf16.gmra.mxu0 %v2277
  %v2515 = vpop.f32.mrf.mxu0
  %v2516 = vadd.f32 %v1970, %v2515
  %v2517 = vpop.f32.mrf.mxu0
  %2518 = vdwg.mxu0
  %2520 = vst [vmem:[#allocation1] ss:$4 sm:$0xff] %v1974
  %s2522 = scalar_lea.vmem [#allocation1], 32
  %2523 = vst [vmem:[%s2522] ss:$4 sm:$0xff] %v1975
  %v2524 = vld.sshfl [vmem:[#allocation1] sm:$0xff pattern:$0x73625140]
  %v2525 = vld.sshfl [vmem:[#allocation1 + $0x8] sm:$0xff pattern:$0x73625140]
  %v2526 = vld.sshfl [vmem:[#allocation1 + $0x10] sm:$0xff pattern:$0x73625140]
  %v2527 = vld.sshfl [vmem:[#allocation1 + $0x18] sm:$0xff pattern:$0x73625140]
  %v2528 = vld.sshfl [vmem:[#allocation1 + $0x20] sm:$0xff pattern:$0x73625140]
  %v2529 = vld.sshfl [vmem:[#allocation1 + $0x28] sm:$0xff pattern:$0x73625140]
  %v2530 = vld.sshfl [vmem:[#allocation1 + $0x30] sm:$0xff pattern:$0x73625140]
  %v2531 = vld.sshfl [vmem:[#allocation1 + $0x38] sm:$0xff pattern:$0x73625140]
  %2533 = vst [vmem:[#allocation1] ss:$4 sm:$0xff] %v1976
  %2535 = vst [vmem:[%s2522] ss:$4 sm:$0xff] %v1977
  %v2536 = vld.sshfl [vmem:[#allocation1] sm:$0xff pattern:$0x73625140]
  %v2537 = vld.sshfl [vmem:[#allocation1 + $0x8] sm:$0xff pattern:$0x73625140]
  %v2538 = vld.sshfl [vmem:[#allocation1 + $0x10] sm:$0xff pattern:$0x73625140]
  %v2539 = vld.sshfl [vmem:[#allocation1 + $0x18] sm:$0xff pattern:$0x73625140]
  %v2540 = vld.sshfl [vmem:[#allocation1 + $0x20] sm:$0xff pattern:$0x73625140]
  %v2541 = vld.sshfl [vmem:[#allocation1 + $0x28] sm:$0xff pattern:$0x73625140]
  %v2542 = vld.sshfl [vmem:[#allocation1 + $0x30] sm:$0xff pattern:$0x73625140]
  %v2543 = vld.sshfl [vmem:[#allocation1 + $0x38] sm:$0xff pattern:$0x73625140]
  %v2545 = vsel %vm1729, %v1973, 0
  %v2547 = vsel %vm1547, %v2524, 0
  %v2549 = vsel %vm1547, %v2525, 0
  %v2551 = vsel %vm1547, %v2526, 0
  %v2553 = vsel %vm1547, %v2527, 0
  %v2555 = vsel %vm1547, %v2528, 0
  %v2557 = vsel %vm1547, %v2529, 0
  %v2559 = vsel %vm1547, %v2530, 0
  %v2561 = vsel %vm1547, %v2531, 0
  %v2563 = vsel %vm1547, %v2536, 0
  %v2565 = vsel %vm1547, %v2537, 0
  %v2567 = vsel %vm1547, %v2538, 0
  %v2569 = vsel %vm1547, %v2539, 0
  %v2571 = vsel %vm1547, %v2540, 0
  %v2573 = vsel %vm1547, %v2541, 0
  %v2575 = vsel %vm1547, %v2542, 0
  %v2577 = vsel %vm1547, %v2543, 0
  %2579 = vmatpush.bf16.msra.mxu0 0
  %2580 = vmatpush.bf16.msra.mxu0 0
  %2581 = vmatpush.bf16.msra.mxu0 0
  %2582 = vmatpush.bf16.msra.mxu0 0
  %2583 = vmatpush.bf16.msra.mxu0 0
  %2584 = vmatpush.bf16.msra.mxu0 0
  %2585 = vmatpush.bf16.msra.mxu0 0
  %2586 = vmatpush.bf16.msra.mxu0 %v2547
  %2587 = vmatmul.bf16.gmra.mxu0 %v2545
  %v2588 = vpop.f32.mrf.mxu0
  %v2589 = vadd.f32 %v2053, %v2588
  %v2590 = vpop.f32.mrf.mxu0
  %2591 = vdwg.mxu0
  %2592 = vmatpush.bf16.msra.mxu0 0
  %2593 = vmatpush.bf16.msra.mxu0 0
  %2594 = vmatpush.bf16.msra.mxu0 0
  %2595 = vmatpush.bf16.msra.mxu0 0
  %2596 = vmatpush.bf16.msra.mxu0 0
  %2597 = vmatpush.bf16.msra.mxu0 0
  %2598 = vmatpush.bf16.msra.mxu0 0
  %2599 = vmatpush.bf16.msra.mxu0 %v2549
  %2600 = vmatmul.bf16.gmra.mxu0 %v2545
  %v2601 = vpop.f32.mrf.mxu0
  %v2602 = vadd.f32 %v2066, %v2601
  %v2603 = vpop.f32.mrf.mxu0
  %2604 = vdwg.mxu0
  %2605 = vmatpush.bf16.msra.mxu0 0
  %2606 = vmatpush.bf16.msra.mxu0 0
  %2607 = vmatpush.bf16.msra.mxu0 0
  %2608 = vmatpush.bf16.msra.mxu0 0
  %2609 = vmatpush.bf16.msra.mxu0 0
  %2610 = vmatpush.bf16.msra.mxu0 0
  %2611 = vmatpush.bf16.msra.mxu0 0
  %2612 = vmatpush.bf16.msra.mxu0 %v2551
  %2613 = vmatmul.bf16.gmra.mxu0 %v2545
  %v2614 = vpop.f32.mrf.mxu0
  %v2615 = vadd.f32 %v2079, %v2614
  %v2616 = vpop.f32.mrf.mxu0
  %2617 = vdwg.mxu0
  %2618 = vmatpush.bf16.msra.mxu0 0
  %2619 = vmatpush.bf16.msra.mxu0 0
  %2620 = vmatpush.bf16.msra.mxu0 0
  %2621 = vmatpush.bf16.msra.mxu0 0
  %2622 = vmatpush.bf16.msra.mxu0 0
  %2623 = vmatpush.bf16.msra.mxu0 0
  %2624 = vmatpush.bf16.msra.mxu0 0
  %2625 = vmatpush.bf16.msra.mxu0 %v2553
  %2626 = vmatmul.bf16.gmra.mxu0 %v2545
  %v2627 = vpop.f32.mrf.mxu0
  %v2628 = vadd.f32 %v2092, %v2627
  %v2629 = vpop.f32.mrf.mxu0
  %2630 = vdwg.mxu0
  %2631 = vmatpush.bf16.msra.mxu0 0
  %2632 = vmatpush.bf16.msra.mxu0 0
  %2633 = vmatpush.bf16.msra.mxu0 0
  %2634 = vmatpush.bf16.msra.mxu0 0
  %2635 = vmatpush.bf16.msra.mxu0 0
  %2636 = vmatpush.bf16.msra.mxu0 0
  %2637 = vmatpush.bf16.msra.mxu0 0
  %2638 = vmatpush.bf16.msra.mxu0 %v2555
  %2639 = vmatmul.bf16.gmra.mxu0 %v2545
  %v2640 = vpop.f32.mrf.mxu0
  %v2641 = vadd.f32 %v2105, %v2640
  %v2642 = vpop.f32.mrf.mxu0
  %2643 = vdwg.mxu0
  %2644 = vmatpush.bf16.msra.mxu0 0
  %2645 = vmatpush.bf16.msra.mxu0 0
  %2646 = vmatpush.bf16.msra.mxu0 0
  %2647 = vmatpush.bf16.msra.mxu0 0
  %2648 = vmatpush.bf16.msra.mxu0 0
  %2649 = vmatpush.bf16.msra.mxu0 0
  %2650 = vmatpush.bf16.msra.mxu0 0
  %2651 = vmatpush.bf16.msra.mxu0 %v2557
  %2652 = vmatmul.bf16.gmra.mxu0 %v2545
  %v2653 = vpop.f32.mrf.mxu0
  %v2654 = vadd.f32 %v2118, %v2653
  %v2655 = vpop.f32.mrf.mxu0
  %2656 = vdwg.mxu0
  %2657 = vmatpush.bf16.msra.mxu0 0
  %2658 = vmatpush.bf16.msra.mxu0 0
  %2659 = vmatpush.bf16.msra.mxu0 0
  %2660 = vmatpush.bf16.msra.mxu0 0
  %2661 = vmatpush.bf16.msra.mxu0 0
  %2662 = vmatpush.bf16.msra.mxu0 0
  %2663 = vmatpush.bf16.msra.mxu0 0
  %2664 = vmatpush.bf16.msra.mxu0 %v2559
  %2665 = vmatmul.bf16.gmra.mxu0 %v2545
  %v2666 = vpop.f32.mrf.mxu0
  %v2667 = vadd.f32 %v2131, %v2666
  %v2668 = vpop.f32.mrf.mxu0
  %2669 = vdwg.mxu0
  %2670 = vmatpush.bf16.msra.mxu0 0
  %2671 = vmatpush.bf16.msra.mxu0 0
  %2672 = vmatpush.bf16.msra.mxu0 0
  %2673 = vmatpush.bf16.msra.mxu0 0
  %2674 = vmatpush.bf16.msra.mxu0 0
  %2675 = vmatpush.bf16.msra.mxu0 0
  %2676 = vmatpush.bf16.msra.mxu0 0
  %2677 = vmatpush.bf16.msra.mxu0 %v2561
  %2678 = vmatmul.bf16.gmra.mxu0 %v2545
  %v2679 = vpop.f32.mrf.mxu0
  %v2680 = vadd.f32 %v2144, %v2679
  %v2681 = vpop.f32.mrf.mxu0
  %2682 = vdwg.mxu0
  %2683 = vmatpush.bf16.msra.mxu0 0
  %2684 = vmatpush.bf16.msra.mxu0 0
  %2685 = vmatpush.bf16.msra.mxu0 0
  %2686 = vmatpush.bf16.msra.mxu0 0
  %2687 = vmatpush.bf16.msra.mxu0 0
  %2688 = vmatpush.bf16.msra.mxu0 0
  %2689 = vmatpush.bf16.msra.mxu0 0
  %2690 = vmatpush.bf16.msra.mxu0 %v2563
  %2691 = vmatmul.bf16.gmra.mxu0 %v2545
  %v2692 = vpop.f32.mrf.mxu0
  %v2693 = vadd.f32 %v2157, %v2692
  %v2694 = vpop.f32.mrf.mxu0
  %2695 = vdwg.mxu0
  %2696 = vmatpush.bf16.msra.mxu0 0
  %2697 = vmatpush.bf16.msra.mxu0 0
  %2698 = vmatpush.bf16.msra.mxu0 0
  %2699 = vmatpush.bf16.msra.mxu0 0
  %2700 = vmatpush.bf16.msra.mxu0 0
  %2701 = vmatpush.bf16.msra.mxu0 0
  %2702 = vmatpush.bf16.msra.mxu0 0
  %2703 = vmatpush.bf16.msra.mxu0 %v2565
  %2704 = vmatmul.bf16.gmra.mxu0 %v2545
  %v2705 = vpop.f32.mrf.mxu0
  %v2706 = vadd.f32 %v2170, %v2705
  %v2707 = vpop.f32.mrf.mxu0
  %2708 = vdwg.mxu0
  %2709 = vmatpush.bf16.msra.mxu0 0
  %2710 = vmatpush.bf16.msra.mxu0 0
  %2711 = vmatpush.bf16.msra.mxu0 0
  %2712 = vmatpush.bf16.msra.mxu0 0
  %2713 = vmatpush.bf16.msra.mxu0 0
  %2714 = vmatpush.bf16.msra.mxu0 0
  %2715 = vmatpush.bf16.msra.mxu0 0
  %2716 = vmatpush.bf16.msra.mxu0 %v2567
  %2717 = vmatmul.bf16.gmra.mxu0 %v2545
  %v2718 = vpop.f32.mrf.mxu0
  %v2719 = vadd.f32 %v2183, %v2718
  %v2720 = vpop.f32.mrf.mxu0
  %2721 = vdwg.mxu0
  %2722 = vmatpush.bf16.msra.mxu0 0
  %2723 = vmatpush.bf16.msra.mxu0 0
  %2724 = vmatpush.bf16.msra.mxu0 0
  %2725 = vmatpush.bf16.msra.mxu0 0
  %2726 = vmatpush.bf16.msra.mxu0 0
  %2727 = vmatpush.bf16.msra.mxu0 0
  %2728 = vmatpush.bf16.msra.mxu0 0
  %2729 = vmatpush.bf16.msra.mxu0 %v2569
  %2730 = vmatmul.bf16.gmra.mxu0 %v2545
  %v2731 = vpop.f32.mrf.mxu0
  %v2732 = vadd.f32 %v2196, %v2731
  %v2733 = vpop.f32.mrf.mxu0
  %2734 = vdwg.mxu0
  %2735 = vmatpush.bf16.msra.mxu0 0
  %2736 = vmatpush.bf16.msra.mxu0 0
  %2737 = vmatpush.bf16.msra.mxu0 0
  %2738 = vmatpush.bf16.msra.mxu0 0
  %2739 = vmatpush.bf16.msra.mxu0 0
  %2740 = vmatpush.bf16.msra.mxu0 0
  %2741 = vmatpush.bf16.msra.mxu0 0
  %2742 = vmatpush.bf16.msra.mxu0 %v2571
  %2743 = vmatmul.bf16.gmra.mxu0 %v2545
  %v2744 = vpop.f32.mrf.mxu0
  %v2745 = vadd.f32 %v2209, %v2744
  %v2746 = vpop.f32.mrf.mxu0
  %2747 = vdwg.mxu0
  %2748 = vmatpush.bf16.msra.mxu0 0
  %2749 = vmatpush.bf16.msra.mxu0 0
  %2750 = vmatpush.bf16.msra.mxu0 0
  %2751 = vmatpush.bf16.msra.mxu0 0
  %2752 = vmatpush.bf16.msra.mxu0 0
  %2753 = vmatpush.bf16.msra.mxu0 0
  %2754 = vmatpush.bf16.msra.mxu0 0
  %2755 = vmatpush.bf16.msra.mxu0 %v2573
  %2756 = vmatmul.bf16.gmra.mxu0 %v2545
  %v2757 = vpop.f32.mrf.mxu0
  %v2758 = vadd.f32 %v2222, %v2757
  %v2759 = vpop.f32.mrf.mxu0
  %2760 = vdwg.mxu0
  %2761 = vmatpush.bf16.msra.mxu0 0
  %2762 = vmatpush.bf16.msra.mxu0 0
  %2763 = vmatpush.bf16.msra.mxu0 0
  %2764 = vmatpush.bf16.msra.mxu0 0
  %2765 = vmatpush.bf16.msra.mxu0 0
  %2766 = vmatpush.bf16.msra.mxu0 0
  %2767 = vmatpush.bf16.msra.mxu0 0
  %2768 = vmatpush.bf16.msra.mxu0 %v2575
  %2769 = vmatmul.bf16.gmra.mxu0 %v2545
  %v2770 = vpop.f32.mrf.mxu0
  %v2771 = vadd.f32 %v2235, %v2770
  %v2772 = vpop.f32.mrf.mxu0
  %2773 = vdwg.mxu0
  %2774 = vmatpush.bf16.msra.mxu0 0
  %2775 = vmatpush.bf16.msra.mxu0 0
  %2776 = vmatpush.bf16.msra.mxu0 0
  %2777 = vmatpush.bf16.msra.mxu0 0
  %2778 = vmatpush.bf16.msra.mxu0 0
  %2779 = vmatpush.bf16.msra.mxu0 0
  %2780 = vmatpush.bf16.msra.mxu0 0
  %2781 = vmatpush.bf16.msra.mxu0 %v2577
  %2782 = vmatmul.bf16.gmra.mxu0 %v2545
  %v2783 = vpop.f32.mrf.mxu0
  %v2784 = vadd.f32 %v2248, %v2783
  %v2785 = vpop.f32.mrf.mxu0
  %2786 = vdwg.mxu0
  %v2787 = vadd.f32 %v2321, %v2589
  %v2788 = vadd.f32 %v2334, %v2602
  %v2789 = vadd.f32 %v2347, %v2615
  %v2790 = vadd.f32 %v2360, %v2628
  %v2791 = vadd.f32 %v2373, %v2641
  %v2792 = vadd.f32 %v2386, %v2654
  %v2793 = vadd.f32 %v2399, %v2667
  %v2794 = vadd.f32 %v2412, %v2680
  %v2795 = vadd.f32 %v2425, %v2693
  %v2796 = vadd.f32 %v2438, %v2706
  %v2797 = vadd.f32 %v2451, %v2719
  %v2798 = vadd.f32 %v2464, %v2732
  %v2799 = vadd.f32 %v2477, %v2745
  %v2800 = vadd.f32 %v2490, %v2758
  %v2801 = vadd.f32 %v2503, %v2771
  %v2802 = vadd.f32 %v2516, %v2784
  %v2803 = vld [vmem:[%s2 + $0x8] sm:$0xff]
  %2805 = vset.pattern.permute.xlu0 0
  %2806 = vperm.xlu0 %2805, %v2803
  %v2807 = vpop.permute.xlu0 %2806
  %v2809 = vadd.f32 %v2787, %v2807
  %v2810 = vadd.f32 %v2788, %v2807
  %v2811 = vadd.f32 %v2789, %v2807
  %v2812 = vadd.f32 %v2790, %v2807
  %v2813 = vadd.f32 %v2791, %v2807
  %v2814 = vadd.f32 %v2792, %v2807
  %v2815 = vadd.f32 %v2793, %v2807
  %v2816 = vadd.f32 %v2794, %v2807
  %v2817 = vadd.f32 %v2795, %v2807
  %v2818 = vadd.f32 %v2796, %v2807
  %v2819 = vadd.f32 %v2797, %v2807
  %v2820 = vadd.f32 %v2798, %v2807
  %v2821 = vadd.f32 %v2799, %v2807
  %v2822 = vadd.f32 %v2800, %v2807
  %v2823 = vadd.f32 %v2801, %v2807
  %v2824 = vadd.f32 %v2802, %v2807
  %v2825 = vmax.f32 %v2809, 0.0
  %v2826 = vmax.f32 %v2810, 0.0
  %v2827 = vmax.f32 %v2811, 0.0
  %v2828 = vmax.f32 %v2812, 0.0
  %v2829 = vmax.f32 %v2813, 0.0
  %v2830 = vmax.f32 %v2814, 0.0
  %v2831 = vmax.f32 %v2815, 0.0
  %v2832 = vmax.f32 %v2816, 0.0
  %v2833 = vmax.f32 %v2817, 0.0
  %v2834 = vmax.f32 %v2818, 0.0
  %v2835 = vmax.f32 %v2819, 0.0
  %v2836 = vmax.f32 %v2820, 0.0
  %v2837 = vmax.f32 %v2821, 0.0
  %v2838 = vmax.f32 %v2822, 0.0
  %v2839 = vmax.f32 %v2823, 0.0
  %v2840 = vmax.f32 %v2824, 0.0
  %v2841 = vpack.c.bf16 %v2826, %v2825
  %v2842 = vpack.c.bf16 %v2828, %v2827
  %v2843 = vpack.c.bf16 %v2830, %v2829
  %v2844 = vpack.c.bf16 %v2832, %v2831
  %v2845 = vpack.c.bf16 %v2834, %v2833
  %v2846 = vpack.c.bf16 %v2836, %v2835
  %v2847 = vpack.c.bf16 %v2838, %v2837
  %v2848 = vpack.c.bf16 %v2840, %v2839
  %v2849 = vld [vmem:[%s1 + $0x8] sm:$0xf]
  %v2850 = vld [vmem:[%s1 + $0xc] sm:$0xf]
  %v2851 = vld [vmem:[%s1 + $0x88] sm:$0xf]
  %v2852 = vld [vmem:[%s1 + $0x8c] sm:$0xf]
  %v2855 = vunpack.c.l.b16 %v2851
  %v2856 = vunpack.c.l.b16 %v2852
  %v2857 = vpack.c.b16 %v2856, %v2855
  %v2860 = vunpack.c.l.b16 %v2843
  %v2861 = vunpack.c.h.b16 %v2843
  %v2862 = vunpack.c.l.b16 %v2844
  %v2863 = vunpack.c.h.b16 %v2844
  %v2864 = vpack.c.b16 %v2860, %v2860
  %v2865 = vpack.c.b16 %v2861, %v2861
  %v2866 = vpack.c.b16 %v2862, %v2862
  %v2867 = vpack.c.b16 %v2863, %v2863
  %vm2868 = vcmask 64512
  %v2870 = vsel %vm2868, %v2857, 0
  %v2873 = vsel %vm1555, %v2864, 0
  %v2876 = vsel %vm1555, %v2865, 0
  %v2879 = vsel %vm1555, %v2866, 0
  %v2882 = vsel %vm1555, %v2867, 0
  %2884 = vmatpush.bf16.msra.mxu0 0
  %2885 = vmatpush.bf16.msra.mxu0 0
  %2886 = vmatpush.bf16.msra.mxu0 0
  %2887 = vmatpush.bf16.msra.mxu0 0
  %2888 = vmatpush.bf16.msra.mxu0 0
  %2889 = vmatpush.bf16.msra.mxu0 0
  %2890 = vmatpush.bf16.msra.mxu0 0
  %2891 = vmatpush.bf16.msra.mxu0 %v2873
  %2892 = vmatmul.bf16.gmra.mxu0 %v2870
  %v2893 = vpop.f32.mrf.mxu0
  %v2894 = vadd.f32 0.0, %v2893
  %v2895 = vpop.f32.mrf.mxu0
  %v2896 = vadd.f32 0.0, %v2895
  %2897 = vdwg.mxu0
  %2898 = vmatpush.bf16.msra.mxu0 0
  %2899 = vmatpush.bf16.msra.mxu0 0
  %2900 = vmatpush.bf16.msra.mxu0 0
  %2901 = vmatpush.bf16.msra.mxu0 0
  %2902 = vmatpush.bf16.msra.mxu0 0
  %2903 = vmatpush.bf16.msra.mxu0 0
  %2904 = vmatpush.bf16.msra.mxu0 0
  %2905 = vmatpush.bf16.msra.mxu0 %v2876
  %2906 = vmatmul.bf16.gmra.mxu0 %v2870
  %v2907 = vpop.f32.mrf.mxu0
  %v2908 = vadd.f32 0.0, %v2907
  %v2909 = vpop.f32.mrf.mxu0
  %v2910 = vadd.f32 0.0, %v2909
  %2911 = vdwg.mxu0
  %2912 = vmatpush.bf16.msra.mxu0 0
  %2913 = vmatpush.bf16.msra.mxu0 0
  %2914 = vmatpush.bf16.msra.mxu0 0
  %2915 = vmatpush.bf16.msra.mxu0 0
  %2916 = vmatpush.bf16.msra.mxu0 0
  %2917 = vmatpush.bf16.msra.mxu0 0
  %2918 = vmatpush.bf16.msra.mxu0 0
  %2919 = vmatpush.bf16.msra.mxu0 %v2879
  %2920 = vmatmul.bf16.gmra.mxu0 %v2870
  %v2921 = vpop.f32.mrf.mxu0
  %v2922 = vadd.f32 0.0, %v2921
  %v2923 = vpop.f32.mrf.mxu0
  %v2924 = vadd.f32 0.0, %v2923
  %2925 = vdwg.mxu0
  %2926 = vmatpush.bf16.msra.mxu0 0
  %2927 = vmatpush.bf16.msra.mxu0 0
  %2928 = vmatpush.bf16.msra.mxu0 0
  %2929 = vmatpush.bf16.msra.mxu0 0
  %2930 = vmatpush.bf16.msra.mxu0 0
  %2931 = vmatpush.bf16.msra.mxu0 0
  %2932 = vmatpush.bf16.msra.mxu0 0
  %2933 = vmatpush.bf16.msra.mxu0 %v2882
  %2934 = vmatmul.bf16.gmra.mxu0 %v2870
  %v2935 = vpop.f32.mrf.mxu0
  %v2936 = vadd.f32 0.0, %v2935
  %v2937 = vpop.f32.mrf.mxu0
  %v2938 = vadd.f32 0.0, %v2937
  %2939 = vdwg.mxu0
  %v2940 = vld [vmem:[%s1 + $0x108] sm:$0xf]
  %v2941 = vld [vmem:[%s1 + $0x10c] sm:$0xf]
  %v2942 = vld [vmem:[%s1 + $0x188] sm:$0xf]
  %v2943 = vld [vmem:[%s1 + $0x18c] sm:$0xf]
  %v2946 = vunpack.c.l.b16 %v2942
  %v2947 = vunpack.c.l.b16 %v2943
  %v2948 = vpack.c.b16 %v2947, %v2946
  %v2951 = vunpack.c.l.b16 %v2847
  %v2952 = vunpack.c.h.b16 %v2847
  %v2953 = vunpack.c.l.b16 %v2848
  %v2954 = vunpack.c.h.b16 %v2848
  %v2955 = vpack.c.b16 %v2951, %v2951
  %v2956 = vpack.c.b16 %v2952, %v2952
  %v2957 = vpack.c.b16 %v2953, %v2953
  %v2958 = vpack.c.b16 %v2954, %v2954
  %v2960 = vsel %vm2868, %v2948, 0
  %v2963 = vsel %vm1555, %v2955, 0
  %v2966 = vsel %vm1555, %v2956, 0
  %v2969 = vsel %vm1555, %v2957, 0
  %v2972 = vsel %vm1555, %v2958, 0
  %2974 = vmatpush.bf16.msra.mxu0 0
  %2975 = vmatpush.bf16.msra.mxu0 0
  %2976 = vmatpush.bf16.msra.mxu0 0
  %2977 = vmatpush.bf16.msra.mxu0 0
  %2978 = vmatpush.bf16.msra.mxu0 0
  %2979 = vmatpush.bf16.msra.mxu0 0
  %2980 = vmatpush.bf16.msra.mxu0 0
  %2981 = vmatpush.bf16.msra.mxu0 %v2963
  %2982 = vmatmul.bf16.gmra.mxu0 %v2960
  %v2983 = vpop.f32.mrf.mxu0
  %v2984 = vadd.f32 0.0, %v2983
  %v2985 = vpop.f32.mrf.mxu0
  %v2986 = vadd.f32 0.0, %v2985
  %2987 = vdwg.mxu0
  %2988 = vmatpush.bf16.msra.mxu0 0
  %2989 = vmatpush.bf16.msra.mxu0 0
  %2990 = vmatpush.bf16.msra.mxu0 0
  %2991 = vmatpush.bf16.msra.mxu0 0
  %2992 = vmatpush.bf16.msra.mxu0 0
  %2993 = vmatpush.bf16.msra.mxu0 0
  %2994 = vmatpush.bf16.msra.mxu0 0
  %2995 = vmatpush.bf16.msra.mxu0 %v2966
  %2996 = vmatmul.bf16.gmra.mxu0 %v2960
  %v2997 = vpop.f32.mrf.mxu0
  %v2998 = vadd.f32 0.0, %v2997
  %v2999 = vpop.f32.mrf.mxu0
  %v3000 = vadd.f32 0.0, %v2999
  %3001 = vdwg.mxu0
  %3002 = vmatpush.bf16.msra.mxu0 0
  %3003 = vmatpush.bf16.msra.mxu0 0
  %3004 = vmatpush.bf16.msra.mxu0 0
  %3005 = vmatpush.bf16.msra.mxu0 0
  %3006 = vmatpush.bf16.msra.mxu0 0
  %3007 = vmatpush.bf16.msra.mxu0 0
  %3008 = vmatpush.bf16.msra.mxu0 0
  %3009 = vmatpush.bf16.msra.mxu0 %v2969
  %3010 = vmatmul.bf16.gmra.mxu0 %v2960
  %v3011 = vpop.f32.mrf.mxu0
  %v3012 = vadd.f32 0.0, %v3011
  %v3013 = vpop.f32.mrf.mxu0
  %v3014 = vadd.f32 0.0, %v3013
  %3015 = vdwg.mxu0
  %3016 = vmatpush.bf16.msra.mxu0 0
  %3017 = vmatpush.bf16.msra.mxu0 0
  %3018 = vmatpush.bf16.msra.mxu0 0
  %3019 = vmatpush.bf16.msra.mxu0 0
  %3020 = vmatpush.bf16.msra.mxu0 0
  %3021 = vmatpush.bf16.msra.mxu0 0
  %3022 = vmatpush.bf16.msra.mxu0 0
  %3023 = vmatpush.bf16.msra.mxu0 %v2972
  %3024 = vmatmul.bf16.gmra.mxu0 %v2960
  %v3025 = vpop.f32.mrf.mxu0
  %v3026 = vadd.f32 0.0, %v3025
  %v3027 = vpop.f32.mrf.mxu0
  %v3028 = vadd.f32 0.0, %v3027
  %3029 = vdwg.mxu0
  %v3032 = vunpack.c.l.b16 %v2849
  %v3033 = vunpack.c.l.b16 %v2850
  %v3034 = vpack.c.b16 %v3033, %v3032
  %v3037 = vunpack.c.l.b16 %v2841
  %v3038 = vunpack.c.h.b16 %v2841
  %v3039 = vunpack.c.l.b16 %v2842
  %v3040 = vunpack.c.h.b16 %v2842
  %v3041 = vpack.c.b16 %v3037, %v3037
  %v3042 = vpack.c.b16 %v3038, %v3038
  %v3043 = vpack.c.b16 %v3039, %v3039
  %v3044 = vpack.c.b16 %v3040, %v3040
  %v3046 = vsel %vm2868, %v3034, 0
  %v3049 = vsel %vm1555, %v3041, 0
  %v3052 = vsel %vm1555, %v3042, 0
  %v3055 = vsel %vm1555, %v3043, 0
  %v3058 = vsel %vm1555, %v3044, 0
  %3060 = vmatpush.bf16.msra.mxu0 0
  %3061 = vmatpush.bf16.msra.mxu0 0
  %3062 = vmatpush.bf16.msra.mxu0 0
  %3063 = vmatpush.bf16.msra.mxu0 0
  %3064 = vmatpush.bf16.msra.mxu0 0
  %3065 = vmatpush.bf16.msra.mxu0 0
  %3066 = vmatpush.bf16.msra.mxu0 0
  %3067 = vmatpush.bf16.msra.mxu0 %v3049
  %3068 = vmatmul.bf16.gmra.mxu0 %v3046
  %v3069 = vpop.f32.mrf.mxu0
  %v3070 = vadd.f32 %v2894, %v3069
  %v3071 = vpop.f32.mrf.mxu0
  %v3072 = vadd.f32 %v2896, %v3071
  %3073 = vdwg.mxu0
  %3074 = vmatpush.bf16.msra.mxu0 0
  %3075 = vmatpush.bf16.msra.mxu0 0
  %3076 = vmatpush.bf16.msra.mxu0 0
  %3077 = vmatpush.bf16.msra.mxu0 0
  %3078 = vmatpush.bf16.msra.mxu0 0
  %3079 = vmatpush.bf16.msra.mxu0 0
  %3080 = vmatpush.bf16.msra.mxu0 0
  %3081 = vmatpush.bf16.msra.mxu0 %v3052
  %3082 = vmatmul.bf16.gmra.mxu0 %v3046
  %v3083 = vpop.f32.mrf.mxu0
  %v3084 = vadd.f32 %v2908, %v3083
  %v3085 = vpop.f32.mrf.mxu0
  %v3086 = vadd.f32 %v2910, %v3085
  %3087 = vdwg.mxu0
  %3088 = vmatpush.bf16.msra.mxu0 0
  %3089 = vmatpush.bf16.msra.mxu0 0
  %3090 = vmatpush.bf16.msra.mxu0 0
  %3091 = vmatpush.bf16.msra.mxu0 0
  %3092 = vmatpush.bf16.msra.mxu0 0
  %3093 = vmatpush.bf16.msra.mxu0 0
  %3094 = vmatpush.bf16.msra.mxu0 0
  %3095 = vmatpush.bf16.msra.mxu0 %v3055
  %3096 = vmatmul.bf16.gmra.mxu0 %v3046
  %v3097 = vpop.f32.mrf.mxu0
  %v3098 = vadd.f32 %v2922, %v3097
  %v3099 = vpop.f32.mrf.mxu0
  %v3100 = vadd.f32 %v2924, %v3099
  %3101 = vdwg.mxu0
  %3102 = vmatpush.bf16.msra.mxu0 0
  %3103 = vmatpush.bf16.msra.mxu0 0
  %3104 = vmatpush.bf16.msra.mxu0 0
  %3105 = vmatpush.bf16.msra.mxu0 0
  %3106 = vmatpush.bf16.msra.mxu0 0
  %3107 = vmatpush.bf16.msra.mxu0 0
  %3108 = vmatpush.bf16.msra.mxu0 0
  %3109 = vmatpush.bf16.msra.mxu0 %v3058
  %3110 = vmatmul.bf16.gmra.mxu0 %v3046
  %v3111 = vpop.f32.mrf.mxu0
  %v3112 = vadd.f32 %v2936, %v3111
  %v3113 = vpop.f32.mrf.mxu0
  %v3114 = vadd.f32 %v2938, %v3113
  %3115 = vdwg.mxu0
  %v3118 = vunpack.c.l.b16 %v2940
  %v3119 = vunpack.c.l.b16 %v2941
  %v3120 = vpack.c.b16 %v3119, %v3118
  %v3123 = vunpack.c.l.b16 %v2845
  %v3124 = vunpack.c.h.b16 %v2845
  %v3125 = vunpack.c.l.b16 %v2846
  %v3126 = vunpack.c.h.b16 %v2846
  %v3127 = vpack.c.b16 %v3123, %v3123
  %v3128 = vpack.c.b16 %v3124, %v3124
  %v3129 = vpack.c.b16 %v3125, %v3125
  %v3130 = vpack.c.b16 %v3126, %v3126
  %v3132 = vsel %vm2868, %v3120, 0
  %v3135 = vsel %vm1555, %v3127, 0
  %v3138 = vsel %vm1555, %v3128, 0
  %v3141 = vsel %vm1555, %v3129, 0
  %v3144 = vsel %vm1555, %v3130, 0
  %3146 = vmatpush.bf16.msra.mxu0 0
  %3147 = vmatpush.bf16.msra.mxu0 0
  %3148 = vmatpush.bf16.msra.mxu0 0
  %3149 = vmatpush.bf16.msra.mxu0 0
  %3150 = vmatpush.bf16.msra.mxu0 0
  %3151 = vmatpush.bf16.msra.mxu0 0
  %3152 = vmatpush.bf16.msra.mxu0 0
  %3153 = vmatpush.bf16.msra.mxu0 %v3135
  %3154 = vmatmul.bf16.gmra.mxu0 %v3132
  %v3155 = vpop.f32.mrf.mxu0
  %v3156 = vadd.f32 %v2984, %v3155
  %v3157 = vpop.f32.mrf.mxu0
  %v3158 = vadd.f32 %v2986, %v3157
  %3159 = vdwg.mxu0
  %3160 = vmatpush.bf16.msra.mxu0 0
  %3161 = vmatpush.bf16.msra.mxu0 0
  %3162 = vmatpush.bf16.msra.mxu0 0
  %3163 = vmatpush.bf16.msra.mxu0 0
  %3164 = vmatpush.bf16.msra.mxu0 0
  %3165 = vmatpush.bf16.msra.mxu0 0
  %3166 = vmatpush.bf16.msra.mxu0 0
  %3167 = vmatpush.bf16.msra.mxu0 %v3138
  %3168 = vmatmul.bf16.gmra.mxu0 %v3132
  %v3169 = vpop.f32.mrf.mxu0
  %v3170 = vadd.f32 %v2998, %v3169
  %v3171 = vpop.f32.mrf.mxu0
  %v3172 = vadd.f32 %v3000, %v3171
  %3173 = vdwg.mxu0
  %3174 = vmatpush.bf16.msra.mxu0 0
  %3175 = vmatpush.bf16.msra.mxu0 0
  %3176 = vmatpush.bf16.msra.mxu0 0
  %3177 = vmatpush.bf16.msra.mxu0 0
  %3178 = vmatpush.bf16.msra.mxu0 0
  %3179 = vmatpush.bf16.msra.mxu0 0
  %3180 = vmatpush.bf16.msra.mxu0 0
  %3181 = vmatpush.bf16.msra.mxu0 %v3141
  %3182 = vmatmul.bf16.gmra.mxu0 %v3132
  %v3183 = vpop.f32.mrf.mxu0
  %v3184 = vadd.f32 %v3012, %v3183
  %v3185 = vpop.f32.mrf.mxu0
  %v3186 = vadd.f32 %v3014, %v3185
  %3187 = vdwg.mxu0
  %3188 = vmatpush.bf16.msra.mxu0 0
  %3189 = vmatpush.bf16.msra.mxu0 0
  %3190 = vmatpush.bf16.msra.mxu0 0
  %3191 = vmatpush.bf16.msra.mxu0 0
  %3192 = vmatpush.bf16.msra.mxu0 0
  %3193 = vmatpush.bf16.msra.mxu0 0
  %3194 = vmatpush.bf16.msra.mxu0 0
  %3195 = vmatpush.bf16.msra.mxu0 %v3144
  %3196 = vmatmul.bf16.gmra.mxu0 %v3132
  %v3197 = vpop.f32.mrf.mxu0
  %v3198 = vadd.f32 %v3026, %v3197
  %v3199 = vpop.f32.mrf.mxu0
  %v3200 = vadd.f32 %v3028, %v3199
  %3201 = vdwg.mxu0
  %v3202 = vadd.f32 %v3070, %v3156
  %v3203 = vadd.f32 %v3084, %v3170
  %v3204 = vadd.f32 %v3098, %v3184
  %v3205 = vadd.f32 %v3112, %v3198
  %v3206 = vadd.f32 %v3072, %v3158
  %v3207 = vadd.f32 %v3086, %v3172
  %v3208 = vadd.f32 %v3100, %v3186
  %v3209 = vadd.f32 %v3114, %v3200
  %v3210 = vld [vmem:[%s2 + $0x10] sm:$0xff]
  %v3211 = vld [vmem:[%s2 + $0x18] sm:$0xff]
  %3213 = vset.pattern.permute.xlu0 0
  %3214 = vperm.xlu0 %3213, %v3210
  %v3215 = vpop.permute.xlu0 %3214
  %3218 = vset.pattern.permute.xlu0 0
  %3219 = vperm.xlu0 %3218, %v3211
  %v3220 = vpop.permute.xlu0 %3219
  %v3222 = vadd.f32 %v3202, %v3215
  %v3223 = vadd.f32 %v3203, %v3215
  %v3224 = vadd.f32 %v3204, %v3215
  %v3225 = vadd.f32 %v3205, %v3215
  %v3226 = vadd.f32 %v3206, %v3220
  %v3227 = vadd.f32 %v3207, %v3220
  %v3228 = vadd.f32 %v3208, %v3220
  %v3229 = vadd.f32 %v3209, %v3220
  %v3230 = vmax.f32 %v3222, 0.0
  %v3231 = vmax.f32 %v3223, 0.0
  %v3232 = vmax.f32 %v3224, 0.0
  %v3233 = vmax.f32 %v3225, 0.0
  %v3234 = vmax.f32 %v3226, 0.0
  %v3235 = vmax.f32 %v3227, 0.0
  %v3236 = vmax.f32 %v3228, 0.0
  %v3237 = vmax.f32 %v3229, 0.0
  %v3238 = vpack.c.bf16 %v3231, %v3230
  %v3239 = vpack.c.bf16 %v3233, %v3232
  %v3240 = vpack.c.bf16 %v3235, %v3234
  %v3241 = vpack.c.bf16 %v3237, %v3236
  %v3242 = vld [vmem:[%s1 + $0x10] sm:$0xf]
  %v3243 = vld [vmem:[%s1 + $0x14] sm:$0xf]
  %v3244 = vld [vmem:[%s1 + $0x18] sm:$0xf]
  %v3245 = vld [vmem:[%s1 + $0x1c] sm:$0xf]
  %v3246 = vld [vmem:[%s1 + $0x90] sm:$0xf]
  %v3247 = vld [vmem:[%s1 + $0x94] sm:$0xf]
  %v3248 = vld [vmem:[%s1 + $0x98] sm:$0xf]
  %v3249 = vld [vmem:[%s1 + $0x9c] sm:$0xf]
  %v3254 = vunpack.c.l.b16 %v3246
  %v3255 = vunpack.c.l.b16 %v3247
  %v3256 = vunpack.c.l.b16 %v3248
  %v3257 = vunpack.c.l.b16 %v3249
  %v3258 = vpack.c.b16 %v3255, %v3254
  %v3259 = vpack.c.b16 %v3257, %v3256
  %v3262 = vunpack.c.h.b16 %v3238
  %v3263 = vunpack.c.h.b16 %v3240
  %v3264 = vpack.c.b16 %v3263, %v3262
  %vm3266 = vcmask 130048
  %v3268 = vsel %vm3266, %v3258, 0
  %v3271 = vsel %vm3266, %v3259, 0
  %3273 = vmatpush.bf16.msra.mxu0 0
  %3274 = vmatpush.bf16.msra.mxu0 0
  %3275 = vmatpush.bf16.msra.mxu0 0
  %3276 = vmatpush.bf16.msra.mxu0 0
  %3277 = vmatpush.bf16.msra.mxu0 0
  %3278 = vmatpush.bf16.msra.mxu0 0
  %3279 = vmatpush.bf16.msra.mxu0 0
  %3280 = vmatpush.bf16.msra.mxu0 %v3264
  %3281 = vmatmul.bf16.gmra.mxu0 %v3268
  %v3282 = vpop.f32.mrf.mxu0
  %v3283 = vadd.f32 0.0, %v3282
  %v3284 = vpop.f32.mrf.mxu0
  %v3285 = vadd.f32 0.0, %v3284
  %3286 = vmatmul.bf16.gmra.mxu0 %v3271
  %v3287 = vpop.f32.mrf.mxu0
  %v3288 = vadd.f32 0.0, %v3287
  %v3289 = vpop.f32.mrf.mxu0
  %v3290 = vadd.f32 0.0, %v3289
  %3291 = vdwg.mxu0
  %v3292 = vld [vmem:[%s1 + $0x110] sm:$0xf]
  %v3293 = vld [vmem:[%s1 + $0x114] sm:$0xf]
  %v3294 = vld [vmem:[%s1 + $0x118] sm:$0xf]
  %v3295 = vld [vmem:[%s1 + $0x11c] sm:$0xf]
  %v3296 = vld [vmem:[%s1 + $0x190] sm:$0xf]
  %v3297 = vld [vmem:[%s1 + $0x194] sm:$0xf]
  %v3298 = vld [vmem:[%s1 + $0x198] sm:$0xf]
  %v3299 = vld [vmem:[%s1 + $0x19c] sm:$0xf]
  %v3304 = vunpack.c.l.b16 %v3296
  %v3305 = vunpack.c.l.b16 %v3297
  %v3306 = vunpack.c.l.b16 %v3298
  %v3307 = vunpack.c.l.b16 %v3299
  %v3308 = vpack.c.b16 %v3305, %v3304
  %v3309 = vpack.c.b16 %v3307, %v3306
  %v3312 = vunpack.c.h.b16 %v3239
  %v3313 = vunpack.c.h.b16 %v3241
  %v3314 = vpack.c.b16 %v3313, %v3312
  %v3317 = vsel %vm3266, %v3308, 0
  %v3320 = vsel %vm3266, %v3309, 0
  %3322 = vmatpush.bf16.msra.mxu0 0
  %3323 = vmatpush.bf16.msra.mxu0 0
  %3324 = vmatpush.bf16.msra.mxu0 0
  %3325 = vmatpush.bf16.msra.mxu0 0
  %3326 = vmatpush.bf16.msra.mxu0 0
  %3327 = vmatpush.bf16.msra.mxu0 0
  %3328 = vmatpush.bf16.msra.mxu0 0
  %3329 = vmatpush.bf16.msra.mxu0 %v3314
  %3330 = vmatmul.bf16.gmra.mxu0 %v3317
  %v3331 = vpop.f32.mrf.mxu0
  %v3332 = vadd.f32 0.0, %v3331
  %v3333 = vpop.f32.mrf.mxu0
  %v3334 = vadd.f32 0.0, %v3333
  %3335 = vmatmul.bf16.gmra.mxu0 %v3320
  %v3336 = vpop.f32.mrf.mxu0
  %v3337 = vadd.f32 0.0, %v3336
  %v3338 = vpop.f32.mrf.mxu0
  %v3339 = vadd.f32 0.0, %v3338
  %3340 = vdwg.mxu0
  %v3345 = vunpack.c.l.b16 %v3242
  %v3346 = vunpack.c.l.b16 %v3243
  %v3347 = vunpack.c.l.b16 %v3244
  %v3348 = vunpack.c.l.b16 %v3245
  %v3349 = vpack.c.b16 %v3346, %v3345
  %v3350 = vpack.c.b16 %v3348, %v3347
  %v3351 = vunpack.c.l.b16 %v3238
  %v3352 = vunpack.c.l.b16 %v3240
  %v3353 = vpack.c.b16 %v3352, %v3351
  %v3356 = vsel %vm3266, %v3349, 0
  %v3359 = vsel %vm3266, %v3350, 0
  %3361 = vmatpush.bf16.msra.mxu0 0
  %3362 = vmatpush.bf16.msra.mxu0 0
  %3363 = vmatpush.bf16.msra.mxu0 0
  %3364 = vmatpush.bf16.msra.mxu0 0
  %3365 = vmatpush.bf16.msra.mxu0 0
  %3366 = vmatpush.bf16.msra.mxu0 0
  %3367 = vmatpush.bf16.msra.mxu0 0
  %3368 = vmatpush.bf16.msra.mxu0 %v3353
  %3369 = vmatmul.bf16.gmra.mxu0 %v3356
  %v3370 = vpop.f32.mrf.mxu0
  %v3371 = vadd.f32 %v3283, %v3370
  %v3372 = vpop.f32.mrf.mxu0
  %v3373 = vadd.f32 %v3285, %v3372
  %3374 = vmatmul.bf16.gmra.mxu0 %v3359
  %v3375 = vpop.f32.mrf.mxu0
  %v3376 = vadd.f32 %v3288, %v3375
  %v3377 = vpop.f32.mrf.mxu0
  %v3378 = vadd.f32 %v3290, %v3377
  %3379 = vdwg.mxu0
  %v3384 = vunpack.c.l.b16 %v3292
  %v3385 = vunpack.c.l.b16 %v3293
  %v3386 = vunpack.c.l.b16 %v3294
  %v3387 = vunpack.c.l.b16 %v3295
  %v3388 = vpack.c.b16 %v3385, %v3384
  %v3389 = vpack.c.b16 %v3387, %v3386
  %v3390 = vunpack.c.l.b16 %v3239
  %v3391 = vunpack.c.l.b16 %v3241
  %v3392 = vpack.c.b16 %v3391, %v3390
  %v3395 = vsel %vm3266, %v3388, 0
  %v3398 = vsel %vm3266, %v3389, 0
  %3400 = vmatpush.bf16.msra.mxu0 0
  %3401 = vmatpush.bf16.msra.mxu0 0
  %3402 = vmatpush.bf16.msra.mxu0 0
  %3403 = vmatpush.bf16.msra.mxu0 0
  %3404 = vmatpush.bf16.msra.mxu0 0
  %3405 = vmatpush.bf16.msra.mxu0 0
  %3406 = vmatpush.bf16.msra.mxu0 0
  %3407 = vmatpush.bf16.msra.mxu0 %v3392
  %3408 = vmatmul.bf16.gmra.mxu0 %v3395
  %v3409 = vpop.f32.mrf.mxu0
  %v3410 = vadd.f32 %v3332, %v3409
  %v3411 = vpop.f32.mrf.mxu0
  %v3412 = vadd.f32 %v3334, %v3411
  %3413 = vmatmul.bf16.gmra.mxu0 %v3398
  %v3414 = vpop.f32.mrf.mxu0
  %v3415 = vadd.f32 %v3337, %v3414
  %v3416 = vpop.f32.mrf.mxu0
  %v3417 = vadd.f32 %v3339, %v3416
  %3418 = vdwg.mxu0
  %v3419 = vadd.f32 %v3371, %v3410
  %v3420 = vadd.f32 %v3373, %v3412
  %v3421 = vadd.f32 %v3376, %v3415
  %v3422 = vadd.f32 %v3378, %v3417
  %v3423 = vld [vmem:[%s2 + $0x20] sm:$0xff]
  %v3424 = vld [vmem:[%s2 + $0x28] sm:$0xff]
  %v3425 = vld [vmem:[%s2 + $0x30] sm:$0xff]
  %v3426 = vld [vmem:[%s2 + $0x38] sm:$0xff]
  %3428 = vset.pattern.permute.xlu0 0
  %3429 = vperm.xlu0 %3428, %v3423
  %v3430 = vpop.permute.xlu0 %3429
  %3433 = vset.pattern.permute.xlu0 0
  %3434 = vperm.xlu0 %3433, %v3424
  %v3435 = vpop.permute.xlu0 %3434
  %3438 = vset.pattern.permute.xlu0 0
  %3439 = vperm.xlu0 %3438, %v3425
  %v3440 = vpop.permute.xlu0 %3439
  %3443 = vset.pattern.permute.xlu0 0
  %3444 = vperm.xlu0 %3443, %v3426
  %v3445 = vpop.permute.xlu0 %3444
  %v3447 = vadd.f32 %v3419, %v3430
  %v3448 = vadd.f32 %v3420, %v3435
  %v3449 = vadd.f32 %v3421, %v3440
  %v3450 = vadd.f32 %v3422, %v3445
  %v3451 = vmax.f32 %v3447, 0.0
  %v3452 = vmax.f32 %v3448, 0.0
  %v3453 = vmax.f32 %v3449, 0.0
  %v3454 = vmax.f32 %v3450, 0.0
  %v3455 = vpack.c.bf16 %v3451, %v3451
  %v3456 = vpack.c.bf16 %v3452, %v3452
  %v3457 = vpack.c.bf16 %v3453, %v3453
  %v3458 = vpack.c.bf16 %v3454, %v3454
  %v3459 = vld [vmem:[%s1 + $0x20] sm:$0xf]
  %v3460 = vld [vmem:[%s1 + $0x24] sm:$0xf]
  %v3461 = vld [vmem:[%s1 + $0x28] sm:$0xf]
  %v3462 = vld [vmem:[%s1 + $0x2c] sm:$0xf]
  %v3463 = vld [vmem:[%s1 + $0x30] sm:$0xf]
  %v3464 = vld [vmem:[%s1 + $0x34] sm:$0xf]
  %v3465 = vld [vmem:[%s1 + $0x38] sm:$0xf]
  %v3466 = vld [vmem:[%s1 + $0x3c] sm:$0xf]
  %v3467 = vld [vmem:[%s1 + $0xa0] sm:$0xf]
  %v3468 = vld [vmem:[%s1 + $0xa4] sm:$0xf]
  %v3469 = vld [vmem:[%s1 + $0xa8] sm:$0xf]
  %v3470 = vld [vmem:[%s1 + $0xac] sm:$0xf]
  %v3471 = vld [vmem:[%s1 + $0xb0] sm:$0xf]
  %v3472 = vld [vmem:[%s1 + $0xb4] sm:$0xf]
  %v3473 = vld [vmem:[%s1 + $0xb8] sm:$0xf]
  %v3474 = vld [vmem:[%s1 + $0xbc] sm:$0xf]
  %v3483 = vunpack.c.l.b16 %v3467
  %v3484 = vunpack.c.l.b16 %v3468
  %v3485 = vunpack.c.l.b16 %v3469
  %v3486 = vunpack.c.l.b16 %v3470
  %v3487 = vunpack.c.l.b16 %v3471
  %v3488 = vunpack.c.l.b16 %v3472
  %v3489 = vunpack.c.l.b16 %v3473
  %v3490 = vunpack.c.l.b16 %v3474
  %v3491 = vpack.c.b16 %v3484, %v3483
  %v3492 = vpack.c.b16 %v3486, %v3485
  %v3493 = vpack.c.b16 %v3488, %v3487
  %v3494 = vpack.c.b16 %v3490, %v3489
  %v3499 = vunpack.c.l.b16 %v3455
  %v3500 = vunpack.c.l.b16 %v3456
  %v3501 = vunpack.c.l.b16 %v3457
  %v3502 = vunpack.c.l.b16 %v3458
  %v3503 = vpack.c.b16 %v3500, %v3499
  %v3504 = vpack.c.b16 %v3502, %v3501
  %3505 = vrot.lane.b32.xlu0 %v3503, 96
  %v3506 = vpop.permute.xlu0 %3505
  %3507 = vrot.lane.b32.xlu0 %v3504, 96
  %v3508 = vpop.permute.xlu0 %3507
  %vm3511 = vcmask 261120
  %v3513 = vsel %vm3511, %v3491, 0
  %v3516 = vsel %vm3511, %v3492, 0
  %v3519 = vsel %vm3511, %v3493, 0
  %v3522 = vsel %vm3511, %v3494, 0
  %3524 = vmatpush.bf16.msra.mxu0 0
  %3525 = vmatpush.bf16.msra.mxu0 0
  %3526 = vmatpush.bf16.msra.mxu0 0
  %3527 = vmatpush.bf16.msra.mxu0 0
  %3528 = vmatpush.bf16.msra.mxu0 0
  %3529 = vmatpush.bf16.msra.mxu0 0
  %3530 = vmatpush.bf16.msra.mxu0 %v3508
  %3531 = vmatpush.bf16.msra.mxu0 %v3506
  %3532 = vmatmul.bf16.gmra.mxu0 %v3513
  %v3533 = vpop.f32.mrf.mxu0
  %v3534 = vadd.f32 0.0, %v3533
  %v3535 = vpop.f32.mrf.mxu0
  %v3536 = vadd.f32 0.0, %v3535
  %3537 = vmatmul.bf16.gmra.mxu0 %v3516
  %v3538 = vpop.f32.mrf.mxu0
  %v3539 = vadd.f32 0.0, %v3538
  %v3540 = vpop.f32.mrf.mxu0
  %v3541 = vadd.f32 0.0, %v3540
  %3542 = vmatmul.bf16.gmra.mxu0 %v3519
  %v3543 = vpop.f32.mrf.mxu0
  %v3544 = vadd.f32 0.0, %v3543
  %v3545 = vpop.f32.mrf.mxu0
  %v3546 = vadd.f32 0.0, %v3545
  %3547 = vmatmul.bf16.gmra.mxu0 %v3522
  %v3548 = vpop.f32.mrf.mxu0
  %v3549 = vadd.f32 0.0, %v3548
  %v3550 = vpop.f32.mrf.mxu0
  %v3551 = vadd.f32 0.0, %v3550
  %3552 = vdwg.mxu0
  %v3553 = vld [vmem:[%s1 + $0x120] sm:$0xf]
  %v3554 = vld [vmem:[%s1 + $0x124] sm:$0xf]
  %v3555 = vld [vmem:[%s1 + $0x128] sm:$0xf]
  %v3556 = vld [vmem:[%s1 + $0x12c] sm:$0xf]
  %v3557 = vld [vmem:[%s1 + $0x130] sm:$0xf]
  %v3558 = vld [vmem:[%s1 + $0x134] sm:$0xf]
  %v3559 = vld [vmem:[%s1 + $0x138] sm:$0xf]
  %v3560 = vld [vmem:[%s1 + $0x13c] sm:$0xf]
  %v3561 = vld [vmem:[%s1 + $0x1a0] sm:$0xf]
  %v3562 = vld [vmem:[%s1 + $0x1a4] sm:$0xf]
  %v3563 = vld [vmem:[%s1 + $0x1a8] sm:$0xf]
  %v3564 = vld [vmem:[%s1 + $0x1ac] sm:$0xf]
  %v3565 = vld [vmem:[%s1 + $0x1b0] sm:$0xf]
  %v3566 = vld [vmem:[%s1 + $0x1b4] sm:$0xf]
  %v3567 = vld [vmem:[%s1 + $0x1b8] sm:$0xf]
  %v3568 = vld [vmem:[%s1 + $0x1bc] sm:$0xf]
  %v3577 = vunpack.c.l.b16 %v3561
  %v3578 = vunpack.c.l.b16 %v3562
  %v3579 = vunpack.c.l.b16 %v3563
  %v3580 = vunpack.c.l.b16 %v3564
  %v3581 = vunpack.c.l.b16 %v3565
  %v3582 = vunpack.c.l.b16 %v3566
  %v3583 = vunpack.c.l.b16 %v3567
  %v3584 = vunpack.c.l.b16 %v3568
  %v3585 = vpack.c.b16 %v3578, %v3577
  %v3586 = vpack.c.b16 %v3580, %v3579
  %v3587 = vpack.c.b16 %v3582, %v3581
  %v3588 = vpack.c.b16 %v3584, %v3583
  %3589 = vrot.lane.b32.xlu0 %v3503, 32
  %v3590 = vpop.permute.xlu0 %3589
  %3591 = vrot.lane.b32.xlu0 %v3504, 32
  %v3592 = vpop.permute.xlu0 %3591
  %v3596 = vsel %vm3511, %v3585, 0
  %v3599 = vsel %vm3511, %v3586, 0
  %v3602 = vsel %vm3511, %v3587, 0
  %v3605 = vsel %vm3511, %v3588, 0
  %3607 = vmatpush.bf16.msra.mxu0 0
  %3608 = vmatpush.bf16.msra.mxu0 0
  %3609 = vmatpush.bf16.msra.mxu0 0
  %3610 = vmatpush.bf16.msra.mxu0 0
  %3611 = vmatpush.bf16.msra.mxu0 0
  %3612 = vmatpush.bf16.msra.mxu0 0
  %3613 = vmatpush.bf16.msra.mxu0 %v3592
  %3614 = vmatpush.bf16.msra.mxu0 %v3590
  %3615 = vmatmul.bf16.gmra.mxu0 %v3596
  %v3616 = vpop.f32.mrf.mxu0
  %v3617 = vadd.f32 0.0, %v3616
  %v3618 = vpop.f32.mrf.mxu0
  %v3619 = vadd.f32 0.0, %v3618
  %3620 = vmatmul.bf16.gmra.mxu0 %v3599
  %v3621 = vpop.f32.mrf.mxu0
  %v3622 = vadd.f32 0.0, %v3621
  %v3623 = vpop.f32.mrf.mxu0
  %v3624 = vadd.f32 0.0, %v3623
  %3625 = vmatmul.bf16.gmra.mxu0 %v3602
  %v3626 = vpop.f32.mrf.mxu0
  %v3627 = vadd.f32 0.0, %v3626
  %v3628 = vpop.f32.mrf.mxu0
  %v3629 = vadd.f32 0.0, %v3628
  %3630 = vmatmul.bf16.gmra.mxu0 %v3605
  %v3631 = vpop.f32.mrf.mxu0
  %v3632 = vadd.f32 0.0, %v3631
  %v3633 = vpop.f32.mrf.mxu0
  %v3634 = vadd.f32 0.0, %v3633
  %3635 = vdwg.mxu0
  %v3644 = vunpack.c.l.b16 %v3459
  %v3645 = vunpack.c.l.b16 %v3460
  %v3646 = vunpack.c.l.b16 %v3461
  %v3647 = vunpack.c.l.b16 %v3462
  %v3648 = vunpack.c.l.b16 %v3463
  %v3649 = vunpack.c.l.b16 %v3464
  %v3650 = vunpack.c.l.b16 %v3465
  %v3651 = vunpack.c.l.b16 %v3466
  %v3652 = vpack.c.b16 %v3645, %v3644
  %v3653 = vpack.c.b16 %v3647, %v3646
  %v3654 = vpack.c.b16 %v3649, %v3648
  %v3655 = vpack.c.b16 %v3651, %v3650
  %v3659 = vsel %vm3511, %v3652, 0
  %v3662 = vsel %vm3511, %v3653, 0
  %v3665 = vsel %vm3511, %v3654, 0
  %v3668 = vsel %vm3511, %v3655, 0
  %3670 = vmatpush.bf16.msra.mxu0 0
  %3671 = vmatpush.bf16.msra.mxu0 0
  %3672 = vmatpush.bf16.msra.mxu0 0
  %3673 = vmatpush.bf16.msra.mxu0 0
  %3674 = vmatpush.bf16.msra.mxu0 0
  %3675 = vmatpush.bf16.msra.mxu0 0
  %3676 = vmatpush.bf16.msra.mxu0 %v3504
  %3677 = vmatpush.bf16.msra.mxu0 %v3503
  %3678 = vmatmul.bf16.gmra.mxu0 %v3659
  %v3679 = vpop.f32.mrf.mxu0
  %v3680 = vadd.f32 %v3534, %v3679
  %v3681 = vpop.f32.mrf.mxu0
  %v3682 = vadd.f32 %v3536, %v3681
  %3683 = vmatmul.bf16.gmra.mxu0 %v3662
  %v3684 = vpop.f32.mrf.mxu0
  %v3685 = vadd.f32 %v3539, %v3684
  %v3686 = vpop.f32.mrf.mxu0
  %v3687 = vadd.f32 %v3541, %v3686
  %3688 = vmatmul.bf16.gmra.mxu0 %v3665
  %v3689 = vpop.f32.mrf.mxu0
  %v3690 = vadd.f32 %v3544, %v3689
  %v3691 = vpop.f32.mrf.mxu0
  %v3692 = vadd.f32 %v3546, %v3691
  %3693 = vmatmul.bf16.gmra.mxu0 %v3668
  %v3694 = vpop.f32.mrf.mxu0
  %v3695 = vadd.f32 %v3549, %v3694
  %v3696 = vpop.f32.mrf.mxu0
  %v3697 = vadd.f32 %v3551, %v3696
  %3698 = vdwg.mxu0
  %v3707 = vunpack.c.l.b16 %v3553
  %v3708 = vunpack.c.l.b16 %v3554
  %v3709 = vunpack.c.l.b16 %v3555
  %v3710 = vunpack.c.l.b16 %v3556
  %v3711 = vunpack.c.l.b16 %v3557
  %v3712 = vunpack.c.l.b16 %v3558
  %v3713 = vunpack.c.l.b16 %v3559
  %v3714 = vunpack.c.l.b16 %v3560
  %v3715 = vpack.c.b16 %v3708, %v3707
  %v3716 = vpack.c.b16 %v3710, %v3709
  %v3717 = vpack.c.b16 %v3712, %v3711
  %v3718 = vpack.c.b16 %v3714, %v3713
  %3719 = vrot.lane.b32.xlu0 %v3503, 64
  %v3720 = vpop.permute.xlu0 %3719
  %3721 = vrot.lane.b32.xlu0 %v3504, 64
  %v3722 = vpop.permute.xlu0 %3721
  %v3726 = vsel %vm3511, %v3715, 0
  %v3729 = vsel %vm3511, %v3716, 0
  %v3732 = vsel %vm3511, %v3717, 0
  %v3735 = vsel %vm3511, %v3718, 0
  %3737 = vmatpush.bf16.msra.mxu0 0
  %3738 = vmatpush.bf16.msra.mxu0 0
  %3739 = vmatpush.bf16.msra.mxu0 0
  %3740 = vmatpush.bf16.msra.mxu0 0
  %3741 = vmatpush.bf16.msra.mxu0 0
  %3742 = vmatpush.bf16.msra.mxu0 0
  %3743 = vmatpush.bf16.msra.mxu0 %v3722
  %3744 = vmatpush.bf16.msra.mxu0 %v3720
  %3745 = vmatmul.bf16.gmra.mxu0 %v3726
  %v3746 = vpop.f32.mrf.mxu0
  %v3747 = vadd.f32 %v3617, %v3746
  %v3748 = vpop.f32.mrf.mxu0
  %v3749 = vadd.f32 %v3619, %v3748
  %3750 = vmatmul.bf16.gmra.mxu0 %v3729
  %v3751 = vpop.f32.mrf.mxu0
  %v3752 = vadd.f32 %v3622, %v3751
  %v3753 = vpop.f32.mrf.mxu0
  %v3754 = vadd.f32 %v3624, %v3753
  %3755 = vmatmul.bf16.gmra.mxu0 %v3732
  %v3756 = vpop.f32.mrf.mxu0
  %v3757 = vadd.f32 %v3627, %v3756
  %v3758 = vpop.f32.mrf.mxu0
  %v3759 = vadd.f32 %v3629, %v3758
  %3760 = vmatmul.bf16.gmra.mxu0 %v3735
  %v3761 = vpop.f32.mrf.mxu0
  %v3762 = vadd.f32 %v3632, %v3761
  %v3763 = vpop.f32.mrf.mxu0
  %v3764 = vadd.f32 %v3634, %v3763
  %3765 = vdwg.mxu0
  %v3766 = vadd.f32 %v3680, %v3747
  %v3767 = vadd.f32 %v3682, %v3749
  %v3768 = vadd.f32 %v3685, %v3752
  %v3769 = vadd.f32 %v3687, %v3754
  %v3770 = vadd.f32 %v3690, %v3757
  %v3771 = vadd.f32 %v3692, %v3759
  %v3772 = vadd.f32 %v3695, %v3762
  %v3773 = vadd.f32 %v3697, %v3764
  %v3774 = vld [vmem:[%s2 + $0x40] sm:$0xff]
  %v3775 = vld [vmem:[%s2 + $0x48] sm:$0xff]
  %v3776 = vld [vmem:[%s2 + $0x50] sm:$0xff]
  %v3777 = vld [vmem:[%s2 + $0x58] sm:$0xff]
  %v3778 = vld [vmem:[%s2 + $0x60] sm:$0xff]
  %v3779 = vld [vmem:[%s2 + $0x68] sm:$0xff]
  %v3780 = vld [vmem:[%s2 + $0x70] sm:$0xff]
  %v3781 = vld [vmem:[%s2 + $0x78] sm:$0xff]
  %3783 = vset.pattern.permute.xlu0 0
  %3784 = vperm.xlu0 %3783, %v3774
  %v3785 = vpop.permute.xlu0 %3784
  %3788 = vset.pattern.permute.xlu0 0
  %3789 = vperm.xlu0 %3788, %v3775
  %v3790 = vpop.permute.xlu0 %3789
  %3793 = vset.pattern.permute.xlu0 0
  %3794 = vperm.xlu0 %3793, %v3776
  %v3795 = vpop.permute.xlu0 %3794
  %3798 = vset.pattern.permute.xlu0 0
  %3799 = vperm.xlu0 %3798, %v3777
  %v3800 = vpop.permute.xlu0 %3799
  %3803 = vset.pattern.permute.xlu0 0
  %3804 = vperm.xlu0 %3803, %v3778
  %v3805 = vpop.permute.xlu0 %3804
  %3808 = vset.pattern.permute.xlu0 0
  %3809 = vperm.xlu0 %3808, %v3779
  %v3810 = vpop.permute.xlu0 %3809
  %3813 = vset.pattern.permute.xlu0 0
  %3814 = vperm.xlu0 %3813, %v3780
  %v3815 = vpop.permute.xlu0 %3814
  %3818 = vset.pattern.permute.xlu0 0
  %3819 = vperm.xlu0 %3818, %v3781
  %v3820 = vpop.permute.xlu0 %3819
  %v3822 = vadd.f32 %v3766, %v3785
  %v3823 = vadd.f32 %v3767, %v3790
  %v3824 = vadd.f32 %v3768, %v3795
  %v3825 = vadd.f32 %v3769, %v3800
  %v3826 = vadd.f32 %v3770, %v3805
  %v3827 = vadd.f32 %v3771, %v3810
  %v3828 = vadd.f32 %v3772, %v3815
  %v3829 = vadd.f32 %v3773, %v3820
  %v3830 = vmax.f32 %v3822, 0.0
  %v3831 = vmax.f32 %v3823, 0.0
  %v3832 = vmax.f32 %v3824, 0.0
  %v3833 = vmax.f32 %v3825, 0.0
  %v3834 = vmax.f32 %v3826, 0.0
  %v3835 = vmax.f32 %v3827, 0.0
  %v3836 = vmax.f32 %v3828, 0.0
  %v3837 = vmax.f32 %v3829, 0.0
  %v3838 = vpack.c.bf16 %v3830, %v3830
  %v3839 = vpack.c.bf16 %v3831, %v3831
  %v3840 = vpack.c.bf16 %v3832, %v3832
  %v3841 = vpack.c.bf16 %v3833, %v3833
  %v3842 = vpack.c.bf16 %v3834, %v3834
  %v3843 = vpack.c.bf16 %v3835, %v3835
  %v3844 = vpack.c.bf16 %v3836, %v3836
  %v3845 = vpack.c.bf16 %v3837, %v3837
  %v3846 = vld [vmem:[%s1 + $0x40] sm:$0xf]
  %v3847 = vld [vmem:[%s1 + $0x44] sm:$0xf]
  %v3848 = vld [vmem:[%s1 + $0x48] sm:$0xf]
  %v3849 = vld [vmem:[%s1 + $0x4c] sm:$0xf]
  %v3850 = vld [vmem:[%s1 + $0x50] sm:$0xf]
  %v3851 = vld [vmem:[%s1 + $0x54] sm:$0xf]
  %v3852 = vld [vmem:[%s1 + $0x58] sm:$0xf]
  %v3853 = vld [vmem:[%s1 + $0x5c] sm:$0xf]
  %v3854 = vld [vmem:[%s1 + $0xc0] sm:$0xf]
  %v3855 = vld [vmem:[%s1 + $0xc4] sm:$0xf]
  %v3856 = vld [vmem:[%s1 + $0xc8] sm:$0xf]
  %v3857 = vld [vmem:[%s1 + $0xcc] sm:$0xf]
  %v3858 = vld [vmem:[%s1 + $0xd0] sm:$0xf]
  %v3859 = vld [vmem:[%s1 + $0xd4] sm:$0xf]
  %v3860 = vld [vmem:[%s1 + $0xd8] sm:$0xf]
  %v3861 = vld [vmem:[%s1 + $0xdc] sm:$0xf]
  %v3870 = vunpack.c.l.b16 %v3854
  %v3871 = vunpack.c.l.b16 %v3855
  %v3872 = vunpack.c.l.b16 %v3856
  %v3873 = vunpack.c.l.b16 %v3857
  %v3874 = vunpack.c.l.b16 %v3858
  %v3875 = vunpack.c.l.b16 %v3859
  %v3876 = vunpack.c.l.b16 %v3860
  %v3877 = vunpack.c.l.b16 %v3861
  %v3878 = vpack.c.b16 %v3871, %v3870
  %v3879 = vpack.c.b16 %v3873, %v3872
  %v3880 = vpack.c.b16 %v3875, %v3874
  %v3881 = vpack.c.b16 %v3877, %v3876
  %v3890 = vunpack.c.l.b16 %v3838
  %v3891 = vunpack.c.l.b16 %v3839
  %v3892 = vunpack.c.l.b16 %v3840
  %v3893 = vunpack.c.l.b16 %v3841
  %v3894 = vunpack.c.l.b16 %v3842
  %v3895 = vunpack.c.l.b16 %v3843
  %v3896 = vunpack.c.l.b16 %v3844
  %v3897 = vunpack.c.l.b16 %v3845
  %v3898 = vpack.c.b16 %v3891, %v3890
  %v3899 = vpack.c.b16 %v3893, %v3892
  %v3900 = vpack.c.b16 %v3895, %v3894
  %v3901 = vpack.c.b16 %v3897, %v3896
  %3902 = vrot.lane.b32.xlu0 %v3898, 120
  %v3903 = vpop.permute.xlu0 %3902
  %3904 = vrot.lane.b32.xlu0 %v3899, 120
  %v3905 = vpop.permute.xlu0 %3904
  %3906 = vrot.lane.b32.xlu0 %v3900, 120
  %v3907 = vpop.permute.xlu0 %3906
  %3908 = vrot.lane.b32.xlu0 %v3901, 120
  %v3909 = vpop.permute.xlu0 %3908
  %vm3914 = vcmask 523264
  %v3916 = vsel %vm3914, %v3878, 0
  %v3919 = vsel %vm3914, %v3879, 0
  %v3922 = vsel %vm3914, %v3880, 0
  %v3925 = vsel %vm3914, %v3881, 0
  %3927 = vmatpush.bf16.msra.mxu0 0
  %3928 = vmatpush.bf16.msra.mxu0 0
  %3929 = vmatpush.bf16.msra.mxu0 0
  %3930 = vmatpush.bf16.msra.mxu0 0
  %3931 = vmatpush.bf16.msra.mxu0 %v3909
  %3932 = vmatpush.bf16.msra.mxu0 %v3907
  %3933 = vmatpush.bf16.msra.mxu0 %v3905
  %3934 = vmatpush.bf16.msra.mxu0 %v3903
  %3935 = vmatmul.bf16.gmra.mxu0 %v3916
  %v3936 = vpop.f32.mrf.mxu0
  %v3937 = vadd.f32 0.0, %v3936
  %v3938 = vpop.f32.mrf.mxu0
  %v3939 = vadd.f32 0.0, %v3938
  %3940 = vmatmul.bf16.gmra.mxu0 %v3919
  %v3941 = vpop.f32.mrf.mxu0
  %v3942 = vadd.f32 0.0, %v3941
  %v3943 = vpop.f32.mrf.mxu0
  %v3944 = vadd.f32 0.0, %v3943
  %3945 = vmatmul.bf16.gmra.mxu0 %v3922
  %v3946 = vpop.f32.mrf.mxu0
  %v3947 = vadd.f32 0.0, %v3946
  %v3948 = vpop.f32.mrf.mxu0
  %v3949 = vadd.f32 0.0, %v3948
  %3950 = vmatmul.bf16.gmra.mxu0 %v3925
  %v3951 = vpop.f32.mrf.mxu0
  %v3952 = vadd.f32 0.0, %v3951
  %v3953 = vpop.f32.mrf.mxu0
  %v3954 = vadd.f32 0.0, %v3953
  %3955 = vdwg.mxu0
  %v3956 = vld [vmem:[%s1 + $0x140] sm:$0xf]
  %v3957 = vld [vmem:[%s1 + $0x144] sm:$0xf]
  %v3958 = vld [vmem:[%s1 + $0x148] sm:$0xf]
  %v3959 = vld [vmem:[%s1 + $0x14c] sm:$0xf]
  %v3960 = vld [vmem:[%s1 + $0x150] sm:$0xf]
  %v3961 = vld [vmem:[%s1 + $0x154] sm:$0xf]
  %v3962 = vld [vmem:[%s1 + $0x158] sm:$0xf]
  %v3963 = vld [vmem:[%s1 + $0x15c] sm:$0xf]
  %v3964 = vld [vmem:[%s1 + $0x1c0] sm:$0xf]
  %v3965 = vld [vmem:[%s1 + $0x1c4] sm:$0xf]
  %v3966 = vld [vmem:[%s1 + $0x1c8] sm:$0xf]
  %v3967 = vld [vmem:[%s1 + $0x1cc] sm:$0xf]
  %v3968 = vld [vmem:[%s1 + $0x1d0] sm:$0xf]
  %v3969 = vld [vmem:[%s1 + $0x1d4] sm:$0xf]
  %v3970 = vld [vmem:[%s1 + $0x1d8] sm:$0xf]
  %v3971 = vld [vmem:[%s1 + $0x1dc] sm:$0xf]
  %v3980 = vunpack.c.l.b16 %v3964
  %v3981 = vunpack.c.l.b16 %v3965
  %v3982 = vunpack.c.l.b16 %v3966
  %v3983 = vunpack.c.l.b16 %v3967
  %v3984 = vunpack.c.l.b16 %v3968
  %v3985 = vunpack.c.l.b16 %v3969
  %v3986 = vunpack.c.l.b16 %v3970
  %v3987 = vunpack.c.l.b16 %v3971
  %v3988 = vpack.c.b16 %v3981, %v3980
  %v3989 = vpack.c.b16 %v3983, %v3982
  %v3990 = vpack.c.b16 %v3985, %v3984
  %v3991 = vpack.c.b16 %v3987, %v3986
  %3992 = vrot.lane.b32.xlu0 %v3898, 104
  %v3993 = vpop.permute.xlu0 %3992
  %3994 = vrot.lane.b32.xlu0 %v3899, 104
  %v3995 = vpop.permute.xlu0 %3994
  %3996 = vrot.lane.b32.xlu0 %v3900, 104
  %v3997 = vpop.permute.xlu0 %3996
  %3998 = vrot.lane.b32.xlu0 %v3901, 104
  %v3999 = vpop.permute.xlu0 %3998
  %v4005 = vsel %vm3914, %v3988, 0
  %v4008 = vsel %vm3914, %v3989, 0
  %v4011 = vsel %vm3914, %v3990, 0
  %v4014 = vsel %vm3914, %v3991, 0
  %4016 = vmatpush.bf16.msra.mxu0 0
  %4017 = vmatpush.bf16.msra.mxu0 0
  %4018 = vmatpush.bf16.msra.mxu0 0
  %4019 = vmatpush.bf16.msra.mxu0 0
  %4020 = vmatpush.bf16.msra.mxu0 %v3999
  %4021 = vmatpush.bf16.msra.mxu0 %v3997
  %4022 = vmatpush.bf16.msra.mxu0 %v3995
  %4023 = vmatpush.bf16.msra.mxu0 %v3993
  %4024 = vmatmul.bf16.gmra.mxu0 %v4005
  %v4025 = vpop.f32.mrf.mxu0
  %v4026 = vadd.f32 0.0, %v4025
  %v4027 = vpop.f32.mrf.mxu0
  %v4028 = vadd.f32 0.0, %v4027
  %4029 = vmatmul.bf16.gmra.mxu0 %v4008
  %v4030 = vpop.f32.mrf.mxu0
  %v4031 = vadd.f32 0.0, %v4030
  %v4032 = vpop.f32.mrf.mxu0
  %v4033 = vadd.f32 0.0, %v4032
  %4034 = vmatmul.bf16.gmra.mxu0 %v4011
  %v4035 = vpop.f32.mrf.mxu0
  %v4036 = vadd.f32 0.0, %v4035
  %v4037 = vpop.f32.mrf.mxu0
  %v4038 = vadd.f32 0.0, %v4037
  %4039 = vmatmul.bf16.gmra.mxu0 %v4014
  %v4040 = vpop.f32.mrf.mxu0
  %v4041 = vadd.f32 0.0, %v4040
  %v4042 = vpop.f32.mrf.mxu0
  %v4043 = vadd.f32 0.0, %v4042
  %4044 = vdwg.mxu0
  %v4053 = vunpack.c.l.b16 %v3846
  %v4054 = vunpack.c.l.b16 %v3847
  %v4055 = vunpack.c.l.b16 %v3848
  %v4056 = vunpack.c.l.b16 %v3849
  %v4057 = vunpack.c.l.b16 %v3850
  %v4058 = vunpack.c.l.b16 %v3851
  %v4059 = vunpack.c.l.b16 %v3852
  %v4060 = vunpack.c.l.b16 %v3853
  %v4061 = vpack.c.b16 %v4054, %v4053
  %v4062 = vpack.c.b16 %v4056, %v4055
  %v4063 = vpack.c.b16 %v4058, %v4057
  %v4064 = vpack.c.b16 %v4060, %v4059
  %v4070 = vsel %vm3914, %v4061, 0
  %v4073 = vsel %vm3914, %v4062, 0
  %v4076 = vsel %vm3914, %v4063, 0
  %v4079 = vsel %vm3914, %v4064, 0
  %4081 = vmatpush.bf16.msra.mxu0 0
  %4082 = vmatpush.bf16.msra.mxu0 0
  %4083 = vmatpush.bf16.msra.mxu0 0
  %4084 = vmatpush.bf16.msra.mxu0 0
  %4085 = vmatpush.bf16.msra.mxu0 %v3901
  %4086 = vmatpush.bf16.msra.mxu0 %v3900
  %4087 = vmatpush.bf16.msra.mxu0 %v3899
  %4088 = vmatpush.bf16.msra.mxu0 %v3898
  %4089 = vmatmul.bf16.gmra.mxu0 %v4070
  %v4090 = vpop.f32.mrf.mxu0
  %v4091 = vadd.f32 %v3937, %v4090
  %v4092 = vpop.f32.mrf.mxu0
  %v4093 = vadd.f32 %v3939, %v4092
  %4094 = vmatmul.bf16.gmra.mxu0 %v4073
  %v4095 = vpop.f32.mrf.mxu0
  %v4096 = vadd.f32 %v3942, %v4095
  %v4097 = vpop.f32.mrf.mxu0
  %v4098 = vadd.f32 %v3944, %v4097
  %4099 = vmatmul.bf16.gmra.mxu0 %v4076
  %v4100 = vpop.f32.mrf.mxu0
  %v4101 = vadd.f32 %v3947, %v4100
  %v4102 = vpop.f32.mrf.mxu0
  %v4103 = vadd.f32 %v3949, %v4102
  %4104 = vmatmul.bf16.gmra.mxu0 %v4079
  %v4105 = vpop.f32.mrf.mxu0
  %v4106 = vadd.f32 %v3952, %v4105
  %v4107 = vpop.f32.mrf.mxu0
  %v4108 = vadd.f32 %v3954, %v4107
  %4109 = vdwg.mxu0
  %v4118 = vunpack.c.l.b16 %v3956
  %v4119 = vunpack.c.l.b16 %v3957
  %v4120 = vunpack.c.l.b16 %v3958
  %v4121 = vunpack.c.l.b16 %v3959
  %v4122 = vunpack.c.l.b16 %v3960
  %v4123 = vunpack.c.l.b16 %v3961
  %v4124 = vunpack.c.l.b16 %v3962
  %v4125 = vunpack.c.l.b16 %v3963
  %v4126 = vpack.c.b16 %v4119, %v4118
  %v4127 = vpack.c.b16 %v4121, %v4120
  %v4128 = vpack.c.b16 %v4123, %v4122
  %v4129 = vpack.c.b16 %v4125, %v4124
  %4130 = vrot.lane.b32.xlu0 %v3898, 112
  %v4131 = vpop.permute.xlu0 %4130
  %4132 = vrot.lane.b32.xlu0 %v3899, 112
  %v4133 = vpop.permute.xlu0 %4132
  %4134 = vrot.lane.b32.xlu0 %v3900, 112
  %v4135 = vpop.permute.xlu0 %4134
  %4136 = vrot.lane.b32.xlu0 %v3901, 112
  %v4137 = vpop.permute.xlu0 %4136
  %v4143 = vsel %vm3914, %v4126, 0
  %v4146 = vsel %vm3914, %v4127, 0
  %v4149 = vsel %vm3914, %v4128, 0
  %v4152 = vsel %vm3914, %v4129, 0
  %4154 = vmatpush.bf16.msra.mxu0 0
  %4155 = vmatpush.bf16.msra.mxu0 0
  %4156 = vmatpush.bf16.msra.mxu0 0
  %4157 = vmatpush.bf16.msra.mxu0 0
  %4158 = vmatpush.bf16.msra.mxu0 %v4137
  %4159 = vmatpush.bf16.msra.mxu0 %v4135
  %4160 = vmatpush.bf16.msra.mxu0 %v4133
  %4161 = vmatpush.bf16.msra.mxu0 %v4131
  %4162 = vmatmul.bf16.gmra.mxu0 %v4143
  %v4163 = vpop.f32.mrf.mxu0
  %v4164 = vadd.f32 %v4026, %v4163
  %v4165 = vpop.f32.mrf.mxu0
  %v4166 = vadd.f32 %v4028, %v4165
  %4167 = vmatmul.bf16.gmra.mxu0 %v4146
  %v4168 = vpop.f32.mrf.mxu0
  %v4169 = vadd.f32 %v4031, %v4168
  %v4170 = vpop.f32.mrf.mxu0
  %v4171 = vadd.f32 %v4033, %v4170
  %4172 = vmatmul.bf16.gmra.mxu0 %v4149
  %v4173 = vpop.f32.mrf.mxu0
  %v4174 = vadd.f32 %v4036, %v4173
  %v4175 = vpop.f32.mrf.mxu0
  %v4176 = vadd.f32 %v4038, %v4175
  %4177 = vmatmul.bf16.gmra.mxu0 %v4152
  %v4178 = vpop.f32.mrf.mxu0
  %v4179 = vadd.f32 %v4041, %v4178
  %v4180 = vpop.f32.mrf.mxu0
  %v4181 = vadd.f32 %v4043, %v4180
  %4182 = vdwg.mxu0
  %v4183 = vadd.f32 %v4091, %v4164
  %v4184 = vadd.f32 %v4093, %v4166
  %v4185 = vadd.f32 %v4096, %v4169
  %v4186 = vadd.f32 %v4098, %v4171
  %v4187 = vadd.f32 %v4101, %v4174
  %v4188 = vadd.f32 %v4103, %v4176
  %v4189 = vadd.f32 %v4106, %v4179
  %v4190 = vadd.f32 %v4108, %v4181
  %v4191 = vld [vmem:[%s2 + $0x80] sm:$0xff]
  %v4192 = vld [vmem:[%s2 + $0x88] sm:$0xff]
  %v4193 = vld [vmem:[%s2 + $0x90] sm:$0xff]
  %v4194 = vld [vmem:[%s2 + $0x98] sm:$0xff]
  %v4195 = vld [vmem:[%s2 + $0xa0] sm:$0xff]
  %v4196 = vld [vmem:[%s2 + $0xa8] sm:$0xff]
  %v4197 = vld [vmem:[%s2 + $0xb0] sm:$0xff]
  %v4198 = vld [vmem:[%s2 + $0xb8] sm:$0xff]
  %4200 = vset.pattern.permute.xlu0 0
  %4201 = vperm.xlu0 %4200, %v4191
  %v4202 = vpop.permute.xlu0 %4201
  %4205 = vset.pattern.permute.xlu0 0
  %4206 = vperm.xlu0 %4205, %v4192
  %v4207 = vpop.permute.xlu0 %4206
  %4210 = vset.pattern.permute.xlu0 0
  %4211 = vperm.xlu0 %4210, %v4193
  %v4212 = vpop.permute.xlu0 %4211
  %4215 = vset.pattern.permute.xlu0 0
  %4216 = vperm.xlu0 %4215, %v4194
  %v4217 = vpop.permute.xlu0 %4216
  %4220 = vset.pattern.permute.xlu0 0
  %4221 = vperm.xlu0 %4220, %v4195
  %v4222 = vpop.permute.xlu0 %4221
  %4225 = vset.pattern.permute.xlu0 0
  %4226 = vperm.xlu0 %4225, %v4196
  %v4227 = vpop.permute.xlu0 %4226
  %4230 = vset.pattern.permute.xlu0 0
  %4231 = vperm.xlu0 %4230, %v4197
  %v4232 = vpop.permute.xlu0 %4231
  %4235 = vset.pattern.permute.xlu0 0
  %4236 = vperm.xlu0 %4235, %v4198
  %v4237 = vpop.permute.xlu0 %4236
  %v4239 = vadd.f32 %v4183, %v4202
  %v4240 = vadd.f32 %v4184, %v4207
  %v4241 = vadd.f32 %v4185, %v4212
  %v4242 = vadd.f32 %v4186, %v4217
  %v4243 = vadd.f32 %v4187, %v4222
  %v4244 = vadd.f32 %v4188, %v4227
  %v4245 = vadd.f32 %v4189, %v4232
  %v4246 = vadd.f32 %v4190, %v4237
  %v4247 = vmax.f32 %v4239, 0.0
  %v4248 = vmax.f32 %v4240, 0.0
  %v4249 = vmax.f32 %v4241, 0.0
  %v4250 = vmax.f32 %v4242, 0.0
  %v4251 = vmax.f32 %v4243, 0.0
  %v4252 = vmax.f32 %v4244, 0.0
  %v4253 = vmax.f32 %v4245, 0.0
  %v4254 = vmax.f32 %v4246, 0.0
  %v4255 = vpack.c.bf16 %v4247, %v4247
  %v4256 = vpack.c.bf16 %v4248, %v4248
  %v4257 = vpack.c.bf16 %v4249, %v4249
  %v4258 = vpack.c.bf16 %v4250, %v4250
  %v4259 = vpack.c.bf16 %v4251, %v4251
  %v4260 = vpack.c.bf16 %v4252, %v4252
  %v4261 = vpack.c.bf16 %v4253, %v4253
  %v4262 = vpack.c.bf16 %v4254, %v4254
  %v4263 = vld [vmem:[%s1 + $0x60] sm:$0xf]
  %v4264 = vld [vmem:[%s1 + $0x64] sm:$0xf]
  %v4265 = vld [vmem:[%s1 + $0x68] sm:$0xf]
  %v4266 = vld [vmem:[%s1 + $0x6c] sm:$0xf]
  %v4267 = vld [vmem:[%s1 + $0x70] sm:$0xf]
  %v4268 = vld [vmem:[%s1 + $0x74] sm:$0xf]
  %v4269 = vld [vmem:[%s1 + $0x78] sm:$0xf]
  %v4270 = vld [vmem:[%s1 + $0x7c] sm:$0xf]
  %v4271 = vld [vmem:[%s1 + $0xe0] sm:$0xf]
  %v4272 = vld [vmem:[%s1 + $0xe4] sm:$0xf]
  %v4273 = vld [vmem:[%s1 + $0xe8] sm:$0xf]
  %v4274 = vld [vmem:[%s1 + $0xec] sm:$0xf]
  %v4275 = vld [vmem:[%s1 + $0xf0] sm:$0xf]
  %v4276 = vld [vmem:[%s1 + $0xf4] sm:$0xf]
  %v4277 = vld [vmem:[%s1 + $0xf8] sm:$0xf]
  %v4278 = vld [vmem:[%s1 + $0xfc] sm:$0xf]
  %v4287 = vunpack.c.l.b16 %v4271
  %v4288 = vunpack.c.l.b16 %v4272
  %v4289 = vunpack.c.l.b16 %v4273
  %v4290 = vunpack.c.l.b16 %v4274
  %v4291 = vunpack.c.l.b16 %v4275
  %v4292 = vunpack.c.l.b16 %v4276
  %v4293 = vunpack.c.l.b16 %v4277
  %v4294 = vunpack.c.l.b16 %v4278
  %v4295 = vpack.c.b16 %v4288, %v4287
  %v4296 = vpack.c.b16 %v4290, %v4289
  %v4297 = vpack.c.b16 %v4292, %v4291
  %v4298 = vpack.c.b16 %v4294, %v4293
  %v4307 = vunpack.c.l.b16 %v4255
  %v4308 = vunpack.c.l.b16 %v4256
  %v4309 = vunpack.c.l.b16 %v4257
  %v4310 = vunpack.c.l.b16 %v4258
  %v4311 = vunpack.c.l.b16 %v4259
  %v4312 = vunpack.c.l.b16 %v4260
  %v4313 = vunpack.c.l.b16 %v4261
  %v4314 = vunpack.c.l.b16 %v4262
  %v4315 = vpack.c.b16 %v4308, %v4307
  %v4316 = vpack.c.b16 %v4310, %v4309
  %v4317 = vpack.c.b16 %v4312, %v4311
  %v4318 = vpack.c.b16 %v4314, %v4313
  %4319 = vrot.lane.b32.xlu0 %v4315, 126
  %v4320 = vpop.permute.xlu0 %4319
  %4321 = vrot.lane.b32.xlu0 %v4316, 126
  %v4322 = vpop.permute.xlu0 %4321
  %4323 = vrot.lane.b32.xlu0 %v4317, 126
  %v4324 = vpop.permute.xlu0 %4323
  %4325 = vrot.lane.b32.xlu0 %v4318, 126
  %v4326 = vpop.permute.xlu0 %4325
  %v4332 = vsel %vm3914, %v4295, 0
  %v4335 = vsel %vm3914, %v4296, 0
  %v4338 = vsel %vm3914, %v4297, 0
  %v4341 = vsel %vm3914, %v4298, 0
  %4343 = vmatpush.bf16.msra.mxu0 0
  %4344 = vmatpush.bf16.msra.mxu0 0
  %4345 = vmatpush.bf16.msra.mxu0 0
  %4346 = vmatpush.bf16.msra.mxu0 0
  %4347 = vmatpush.bf16.msra.mxu0 %v4326
  %4348 = vmatpush.bf16.msra.mxu0 %v4324
  %4349 = vmatpush.bf16.msra.mxu0 %v4322
  %4350 = vmatpush.bf16.msra.mxu0 %v4320
  %4351 = vmatmul.bf16.gmra.mxu0 %v4332
  %v4352 = vpop.f32.mrf.mxu0
  %v4353 = vadd.f32 0.0, %v4352
  %v4354 = vpop.f32.mrf.mxu0
  %v4355 = vadd.f32 0.0, %v4354
  %4356 = vmatmul.bf16.gmra.mxu0 %v4335
  %v4357 = vpop.f32.mrf.mxu0
  %v4358 = vadd.f32 0.0, %v4357
  %v4359 = vpop.f32.mrf.mxu0
  %v4360 = vadd.f32 0.0, %v4359
  %4361 = vmatmul.bf16.gmra.mxu0 %v4338
  %v4362 = vpop.f32.mrf.mxu0
  %v4363 = vadd.f32 0.0, %v4362
  %v4364 = vpop.f32.mrf.mxu0
  %v4365 = vadd.f32 0.0, %v4364
  %4366 = vmatmul.bf16.gmra.mxu0 %v4341
  %v4367 = vpop.f32.mrf.mxu0
  %v4368 = vadd.f32 0.0, %v4367
  %v4369 = vpop.f32.mrf.mxu0
  %v4370 = vadd.f32 0.0, %v4369
  %4371 = vdwg.mxu0
  %v4372 = vld [vmem:[%s1 + $0x160] sm:$0xf]
  %v4373 = vld [vmem:[%s1 + $0x164] sm:$0xf]
  %v4374 = vld [vmem:[%s1 + $0x168] sm:$0xf]
  %v4375 = vld [vmem:[%s1 + $0x16c] sm:$0xf]
  %v4376 = vld [vmem:[%s1 + $0x170] sm:$0xf]
  %v4377 = vld [vmem:[%s1 + $0x174] sm:$0xf]
  %v4378 = vld [vmem:[%s1 + $0x178] sm:$0xf]
  %v4379 = vld [vmem:[%s1 + $0x17c] sm:$0xf]
  %v4380 = vld [vmem:[%s1 + $0x1e0] sm:$0xf]
  %v4381 = vld [vmem:[%s1 + $0x1e4] sm:$0xf]
  %v4382 = vld [vmem:[%s1 + $0x1e8] sm:$0xf]
  %v4383 = vld [vmem:[%s1 + $0x1ec] sm:$0xf]
  %v4384 = vld [vmem:[%s1 + $0x1f0] sm:$0xf]
  %v4385 = vld [vmem:[%s1 + $0x1f4] sm:$0xf]
  %v4386 = vld [vmem:[%s1 + $0x1f8] sm:$0xf]
  %v4387 = vld [vmem:[%s1 + $0x1fc] sm:$0xf]
  %v4396 = vunpack.c.l.b16 %v4380
  %v4397 = vunpack.c.l.b16 %v4381
  %v4398 = vunpack.c.l.b16 %v4382
  %v4399 = vunpack.c.l.b16 %v4383
  %v4400 = vunpack.c.l.b16 %v4384
  %v4401 = vunpack.c.l.b16 %v4385
  %v4402 = vunpack.c.l.b16 %v4386
  %v4403 = vunpack.c.l.b16 %v4387
  %v4404 = vpack.c.b16 %v4397, %v4396
  %v4405 = vpack.c.b16 %v4399, %v4398
  %v4406 = vpack.c.b16 %v4401, %v4400
  %v4407 = vpack.c.b16 %v4403, %v4402
  %4408 = vrot.lane.b32.xlu0 %v4315, 122
  %v4409 = vpop.permute.xlu0 %4408
  %4410 = vrot.lane.b32.xlu0 %v4316, 122
  %v4411 = vpop.permute.xlu0 %4410
  %4412 = vrot.lane.b32.xlu0 %v4317, 122
  %v4413 = vpop.permute.xlu0 %4412
  %4414 = vrot.lane.b32.xlu0 %v4318, 122
  %v4415 = vpop.permute.xlu0 %4414
  %v4421 = vsel %vm3914, %v4404, 0
  %v4424 = vsel %vm3914, %v4405, 0
  %v4427 = vsel %vm3914, %v4406, 0
  %v4430 = vsel %vm3914, %v4407, 0
  %4432 = vmatpush.bf16.msra.mxu0 0
  %4433 = vmatpush.bf16.msra.mxu0 0
  %4434 = vmatpush.bf16.msra.mxu0 0
  %4435 = vmatpush.bf16.msra.mxu0 0
  %4436 = vmatpush.bf16.msra.mxu0 %v4415
  %4437 = vmatpush.bf16.msra.mxu0 %v4413
  %4438 = vmatpush.bf16.msra.mxu0 %v4411
  %4439 = vmatpush.bf16.msra.mxu0 %v4409
  %4440 = vmatmul.bf16.gmra.mxu0 %v4421
  %v4441 = vpop.f32.mrf.mxu0
  %v4442 = vadd.f32 0.0, %v4441
  %v4443 = vpop.f32.mrf.mxu0
  %v4444 = vadd.f32 0.0, %v4443
  %4445 = vmatmul.bf16.gmra.mxu0 %v4424
  %v4446 = vpop.f32.mrf.mxu0
  %v4447 = vadd.f32 0.0, %v4446
  %v4448 = vpop.f32.mrf.mxu0
  %v4449 = vadd.f32 0.0, %v4448
  %4450 = vmatmul.bf16.gmra.mxu0 %v4427
  %v4451 = vpop.f32.mrf.mxu0
  %v4452 = vadd.f32 0.0, %v4451
  %v4453 = vpop.f32.mrf.mxu0
  %v4454 = vadd.f32 0.0, %v4453
  %4455 = vmatmul.bf16.gmra.mxu0 %v4430
  %v4456 = vpop.f32.mrf.mxu0
  %v4457 = vadd.f32 0.0, %v4456
  %v4458 = vpop.f32.mrf.mxu0
  %v4459 = vadd.f32 0.0, %v4458
  %4460 = vdwg.mxu0
  %v4469 = vunpack.c.l.b16 %v4263
  %v4470 = vunpack.c.l.b16 %v4264
  %v4471 = vunpack.c.l.b16 %v4265
  %v4472 = vunpack.c.l.b16 %v4266
  %v4473 = vunpack.c.l.b16 %v4267
  %v4474 = vunpack.c.l.b16 %v4268
  %v4475 = vunpack.c.l.b16 %v4269
  %v4476 = vunpack.c.l.b16 %v4270
  %v4477 = vpack.c.b16 %v4470, %v4469
  %v4478 = vpack.c.b16 %v4472, %v4471
  %v4479 = vpack.c.b16 %v4474, %v4473
  %v4480 = vpack.c.b16 %v4476, %v4475
  %v4486 = vsel %vm3914, %v4477, 0
  %v4489 = vsel %vm3914, %v4478, 0
  %v4492 = vsel %vm3914, %v4479, 0
  %v4495 = vsel %vm3914, %v4480, 0
  %4497 = vmatpush.bf16.msra.mxu0 0
  %4498 = vmatpush.bf16.msra.mxu0 0
  %4499 = vmatpush.bf16.msra.mxu0 0
  %4500 = vmatpush.bf16.msra.mxu0 0
  %4501 = vmatpush.bf16.msra.mxu0 %v4318
  %4502 = vmatpush.bf16.msra.mxu0 %v4317
  %4503 = vmatpush.bf16.msra.mxu0 %v4316
  %4504 = vmatpush.bf16.msra.mxu0 %v4315
  %4505 = vmatmul.bf16.gmra.mxu0 %v4486
  %v4506 = vpop.f32.mrf.mxu0
  %v4507 = vadd.f32 %v4353, %v4506
  %v4508 = vpop.f32.mrf.mxu0
  %v4509 = vadd.f32 %v4355, %v4508
  %4510 = vmatmul.bf16.gmra.mxu0 %v4489
  %v4511 = vpop.f32.mrf.mxu0
  %v4512 = vadd.f32 %v4358, %v4511
  %v4513 = vpop.f32.mrf.mxu0
  %v4514 = vadd.f32 %v4360, %v4513
  %4515 = vmatmul.bf16.gmra.mxu0 %v4492
  %v4516 = vpop.f32.mrf.mxu0
  %v4517 = vadd.f32 %v4363, %v4516
  %v4518 = vpop.f32.mrf.mxu0
  %v4519 = vadd.f32 %v4365, %v4518
  %4520 = vmatmul.bf16.gmra.mxu0 %v4495
  %v4521 = vpop.f32.mrf.mxu0
  %v4522 = vadd.f32 %v4368, %v4521
  %v4523 = vpop.f32.mrf.mxu0
  %v4524 = vadd.f32 %v4370, %v4523
  %4525 = vdwg.mxu0
  %v4534 = vunpack.c.l.b16 %v4372
  %v4535 = vunpack.c.l.b16 %v4373
  %v4536 = vunpack.c.l.b16 %v4374
  %v4537 = vunpack.c.l.b16 %v4375
  %v4538 = vunpack.c.l.b16 %v4376
  %v4539 = vunpack.c.l.b16 %v4377
  %v4540 = vunpack.c.l.b16 %v4378
  %v4541 = vunpack.c.l.b16 %v4379
  %v4542 = vpack.c.b16 %v4535, %v4534
  %v4543 = vpack.c.b16 %v4537, %v4536
  %v4544 = vpack.c.b16 %v4539, %v4538
  %v4545 = vpack.c.b16 %v4541, %v4540
  %4546 = vrot.lane.b32.xlu0 %v4315, 124
  %v4547 = vpop.permute.xlu0 %4546
  %4548 = vrot.lane.b32.xlu0 %v4316, 124
  %v4549 = vpop.permute.xlu0 %4548
  %4550 = vrot.lane.b32.xlu0 %v4317, 124
  %v4551 = vpop.permute.xlu0 %4550
  %4552 = vrot.lane.b32.xlu0 %v4318, 124
  %v4553 = vpop.permute.xlu0 %4552
  %v4559 = vsel %vm3914, %v4542, 0
  %v4562 = vsel %vm3914, %v4543, 0
  %v4565 = vsel %vm3914, %v4544, 0
  %v4568 = vsel %vm3914, %v4545, 0
  %4570 = vmatpush.bf16.msra.mxu0 0
  %4571 = vmatpush.bf16.msra.mxu0 0
  %4572 = vmatpush.bf16.msra.mxu0 0
  %4573 = vmatpush.bf16.msra.mxu0 0
  %4574 = vmatpush.bf16.msra.mxu0 %v4553
  %4575 = vmatpush.bf16.msra.mxu0 %v4551
  %4576 = vmatpush.bf16.msra.mxu0 %v4549
  %4577 = vmatpush.bf16.msra.mxu0 %v4547
  %4578 = vmatmul.bf16.gmra.mxu0 %v4559
  %v4579 = vpop.f32.mrf.mxu0
  %v4580 = vadd.f32 %v4442, %v4579
  %v4581 = vpop.f32.mrf.mxu0
  %v4582 = vadd.f32 %v4444, %v4581
  %4583 = vmatmul.bf16.gmra.mxu0 %v4562
  %v4584 = vpop.f32.mrf.mxu0
  %v4585 = vadd.f32 %v4447, %v4584
  %v4586 = vpop.f32.mrf.mxu0
  %v4587 = vadd.f32 %v4449, %v4586
  %4588 = vmatmul.bf16.gmra.mxu0 %v4565
  %v4589 = vpop.f32.mrf.mxu0
  %v4590 = vadd.f32 %v4452, %v4589
  %v4591 = vpop.f32.mrf.mxu0
  %v4592 = vadd.f32 %v4454, %v4591
  %4593 = vmatmul.bf16.gmra.mxu0 %v4568
  %v4594 = vpop.f32.mrf.mxu0
  %v4595 = vadd.f32 %v4457, %v4594
  %v4596 = vpop.f32.mrf.mxu0
  %v4597 = vadd.f32 %v4459, %v4596
  %4598 = vdwg.mxu0
  %v4599 = vadd.f32 %v4507, %v4580
  %v4600 = vadd.f32 %v4509, %v4582
  %v4601 = vadd.f32 %v4512, %v4585
  %v4602 = vadd.f32 %v4514, %v4587
  %v4603 = vadd.f32 %v4517, %v4590
  %v4604 = vadd.f32 %v4519, %v4592
  %v4605 = vadd.f32 %v4522, %v4595
  %v4606 = vadd.f32 %v4524, %v4597
  %v4607 = vld [vmem:[%s2 + $0xc0] sm:$0xff]
  %v4608 = vld [vmem:[%s2 + $0xc8] sm:$0xff]
  %v4609 = vld [vmem:[%s2 + $0xd0] sm:$0xff]
  %v4610 = vld [vmem:[%s2 + $0xd8] sm:$0xff]
  %v4611 = vld [vmem:[%s2 + $0xe0] sm:$0xff]
  %v4612 = vld [vmem:[%s2 + $0xe8] sm:$0xff]
  %v4613 = vld [vmem:[%s2 + $0xf0] sm:$0xff]
  %v4614 = vld [vmem:[%s2 + $0xf8] sm:$0xff]
  %4616 = vset.pattern.permute.xlu0 0
  %4617 = vperm.xlu0 %4616, %v4607
  %v4618 = vpop.permute.xlu0 %4617
  %4621 = vset.pattern.permute.xlu0 0
  %4622 = vperm.xlu0 %4621, %v4608
  %v4623 = vpop.permute.xlu0 %4622
  %4626 = vset.pattern.permute.xlu0 0
  %4627 = vperm.xlu0 %4626, %v4609
  %v4628 = vpop.permute.xlu0 %4627
  %4631 = vset.pattern.permute.xlu0 0
  %4632 = vperm.xlu0 %4631, %v4610
  %v4633 = vpop.permute.xlu0 %4632
  %4636 = vset.pattern.permute.xlu0 0
  %4637 = vperm.xlu0 %4636, %v4611
  %v4638 = vpop.permute.xlu0 %4637
  %4641 = vset.pattern.permute.xlu0 0
  %4642 = vperm.xlu0 %4641, %v4612
  %v4643 = vpop.permute.xlu0 %4642
  %4646 = vset.pattern.permute.xlu0 0
  %4647 = vperm.xlu0 %4646, %v4613
  %v4648 = vpop.permute.xlu0 %4647
  %4651 = vset.pattern.permute.xlu0 0
  %4652 = vperm.xlu0 %4651, %v4614
  %v4653 = vpop.permute.xlu0 %4652
  %v4655 = vadd.f32 %v4599, %v4618
  %v4656 = vadd.f32 %v4600, %v4623
  %v4657 = vadd.f32 %v4601, %v4628
  %v4658 = vadd.f32 %v4602, %v4633
  %v4659 = vadd.f32 %v4603, %v4638
  %v4660 = vadd.f32 %v4604, %v4643
  %v4661 = vadd.f32 %v4605, %v4648
  %v4662 = vadd.f32 %v4606, %v4653
  %v4663 = vmax.f32 %v4655, 0.0
  %v4664 = vmax.f32 %v4656, 0.0
  %v4665 = vmax.f32 %v4657, 0.0
  %v4666 = vmax.f32 %v4658, 0.0
  %v4667 = vmax.f32 %v4659, 0.0
  %v4668 = vmax.f32 %v4660, 0.0
  %v4669 = vmax.f32 %v4661, 0.0
  %v4670 = vmax.f32 %v4662, 0.0
  %vm4671 = vcmask 15360
  %4672 = vst.msk [vmem:[%s3] sm:$0xff] %vm4671, %v4663
  %4673 = vst.msk [vmem:[%s3 + $0x8] sm:$0xff] %vm4671, %v4664
  %4674 = vst.msk [vmem:[%s3 + $0x10] sm:$0xff] %vm4671, %v4665
  %4675 = vst.msk [vmem:[%s3 + $0x18] sm:$0xff] %vm4671, %v4666
  %4676 = vst.msk [vmem:[%s3 + $0x20] sm:$0xff] %vm4671, %v4667
  %4677 = vst.msk [vmem:[%s3 + $0x28] sm:$0xff] %vm4671, %v4668
  %4678 = vst.msk [vmem:[%s3 + $0x30] sm:$0xff] %vm4671, %v4669
  %4679 = vst.msk [vmem:[%s3 + $0x38] sm:$0xff] %vm4671, %v4670
  // Predicated region
  $region14: #{feature_extractor_forward.1} parent=0 // pred_check
    _
  $region15: #{feature_extractor_forward.1} parent=0 // pred_check_branch
    %4681 = sbr.rel (0) target = $region17
  $region16: #{feature_extractor_forward.1} parent=0 // pred_region
    _
  $region17: #{feature_extractor_forward.1} parent=0 // pred_fallthru
    _
  // Predicated region
  $region18: #{feature_extractor_forward.1} parent=0 // pred_check
    _
  $region19: #{feature_extractor_forward.1} parent=0 // pred_check_branch
    %4683 = sbr.rel (0) target = $region21
  $region20: #{feature_extractor_forward.1} parent=0 // pred_region
    _
  $region21: #{feature_extractor_forward.1} parent=0 // pred_fallthru
    _

</llo_original>
